<compile_context>
chip_gen: v5e
topology: v5e:2x2
jax: 0.10.0
libtpu: 0.0.40
codegen_flags: <defaults>
</compile_context>

<pallas_src>
import jax
import jax.numpy as jnp
from jax.experimental import pallas as pl
from jax.experimental.pallas import tpu as pltpu

EMBED_LEN = 256
HIDDEN = 256
NUM_CLASSES = 7
OUT_PAD = 128            # lane-dense padded output width
EMBED_MAX_NORM = 1.0
VOCAB = 100              # stand-in for len(ALL_WORDS_DIC)


def lstm_fc_softmax_kernel(
    lens_ref,      # VMEM (B, 1)        int32     valid sequence lengths
    gx_ref,        # VMEM (T, B, 4H)    float32   x @ W_ih^T + b_ih + b_hh (time-major)
    w_hh_ref,      # VMEM (H, 4H)       bfloat16  W_hh^T, gate order i,f,g,o
    w_fc_ref,      # VMEM (H, OUT_PAD)  float32   zero-padded past NUM_CLASSES
    b_fc_ref,      # VMEM (1, OUT_PAD)  float32   zero-padded past NUM_CLASSES
    out_ref,       # VMEM (B, OUT_PAD)  float32
):
    T, B, G = gx_ref.shape
    H = w_hh_ref.shape[0]

    lens = lens_ref[...]                                     # (B, 1) int32

    # Single-tanh gate nonlinearity (hoisted scale vectors):
    #   sigmoid(x) = 0.5 * tanh(0.5 x) + 0.5   for i, f, o slabs
    #   tanh(x)                                 for the g slab
    col = jax.lax.broadcasted_iota(jnp.int32, (1, G), 1)
    is_g = jnp.logical_and(col >= 2 * H, col < 3 * H)
    pre = jnp.where(is_g, 1.0, 0.5).astype(jnp.float32)      # also the post-scale
    post_b = jnp.where(is_g, 0.0, 0.5).astype(jnp.float32)

    def step(t, carry):
        h, c = carry
        # recurrent-only matmul: (B, H) bf16 @ (H, 4H) bf16 -> f32
        gates = gx_ref[t] + jnp.dot(
            h.astype(jnp.bfloat16), w_hh_ref[...],
            preferred_element_type=jnp.float32)               # (B, 4H) f32
        act = jnp.tanh(gates * pre) * pre + post_b            # one EUP pass
        i_g = act[:, 0 * H:1 * H]
        f_g = act[:, 1 * H:2 * H]
        g_g = act[:, 2 * H:3 * H]
        o_g = act[:, 3 * H:4 * H]
        c_new = f_g * c + i_g * g_g
        h_new = o_g * jnp.tanh(c_new)
        # pack_padded semantics: freeze state once t >= length[b]; the final h
        # then equals the hidden state at the last valid step of each sequence.
        active = t < lens                                     # (B, 1) bool
        h = jnp.where(active, h_new, h)
        c = jnp.where(active, c_new, c)
        return h, c

    h0 = jnp.zeros((B, H), jnp.float32)
    c0 = jnp.zeros((B, H), jnp.float32)
    h_last, _ = jax.lax.fori_loop(0, T, step, (h0, c0), unroll=True)

    # dropout is identity at inference; fc -> relu -> softmax over valid lanes
    logits = (
        jnp.dot(h_last, w_fc_ref[...], preferred_element_type=jnp.float32)
        + b_fc_ref[...]
    )                                                         # (B, OUT_PAD)
    logits = jnp.maximum(logits, 0.0)
    lane_ids = jax.lax.broadcasted_iota(jnp.int32, logits.shape, 1)
    logits = jnp.where(lane_ids < NUM_CLASSES, logits, -1e30)  # mask pad lanes
    m = jnp.max(logits, axis=1, keepdims=True)
    e = jnp.exp(logits - m)
    denom = jnp.sum(e, axis=1, keepdims=True)
    out_ref[...] = e * pl.reciprocal(denom, approx=True)


def rnn_forward(sentences, lengths, params):
    """sentences: (B, T) int32 token ids; lengths: (B,) int32 valid lengths."""
    B, T = sentences.shape
    E, H = EMBED_LEN, HIDDEN

    # --- glue: time-major embedding gather + max_norm renorm of gathered rows ---
    emb = params["embed"]
    x = jnp.take(emb, sentences.T, axis=0)                    # (T, B, E)
    norms = jnp.sqrt(jnp.sum(x * x, axis=-1, keepdims=True))
    x = x * jnp.minimum(1.0, EMBED_MAX_NORM / jnp.maximum(norms, 1e-12))
    x = x.astype(jnp.float32)

    # --- hoisted input projection with fused bias (one big matmul for all T) ---
    w_ih_t = params["w_ih"].T.astype(jnp.float32)             # (E, 4H)
    b_all = (params["b_ih"] + params["b_hh"]).astype(jnp.float32)  # (4H,)
    gates_x = (
        jnp.dot(x.reshape(T * B, E), w_ih_t) + b_all
    ).reshape(T, B, 4 * H)                                    # (T, B, 4H) f32

    # recurrent weight as bf16 MXU operand (f32 accumulate in-kernel)
    w_hh_t = params["w_hh"].T.astype(jnp.bfloat16)            # (H, 4H)

    # lane-dense fc: zero-pad 7 -> 128 output columns, slice back after the call
    w_fc_pad = jnp.zeros((H, OUT_PAD), jnp.float32)
    w_fc_pad = w_fc_pad.at[:, :NUM_CLASSES].set(params["w_fc"].T)
    b_fc_pad = jnp.zeros((1, OUT_PAD), jnp.float32)
    b_fc_pad = b_fc_pad.at[:, :NUM_CLASSES].set(params["b_fc"].reshape(1, -1))

    lens_col = lengths.astype(jnp.int32).reshape(B, 1)

    out_pad = pl.pallas_call(
        lstm_fc_softmax_kernel,
        out_shape=jax.ShapeDtypeStruct((B, OUT_PAD), jnp.float32),
        in_specs=[
            pl.BlockSpec(memory_space=pltpu.MemorySpace.VMEM),  # lens (B, 1)
            pl.BlockSpec(memory_space=pltpu.MemorySpace.VMEM),  # gates_x (T, B, 4H)
            pl.BlockSpec(memory_space=pltpu.MemorySpace.VMEM),  # W_hh^T (H, 4H)
            pl.BlockSpec(memory_space=pltpu.MemorySpace.VMEM),  # W_fc (H, 128)
            pl.BlockSpec(memory_space=pltpu.MemorySpace.VMEM),  # b_fc (1, 128)
        ],
        out_specs=pl.BlockSpec(memory_space=pltpu.MemorySpace.VMEM),
    )(lens_col, gates_x, w_hh_t, w_fc_pad, b_fc_pad)

    return out_pad[:, :NUM_CLASSES]


def rnn_reference(sentences, lengths, params):
    """Pure-JAX f32 reference with identical semantics (for a sanity check)."""
    B, T = sentences.shape
    H = HIDDEN
    emb = params["embed"]
    x = jnp.take(emb, sentences.T, axis=0)                    # (T, B, E)
    norms = jnp.sqrt(jnp.sum(x * x, axis=-1, keepdims=True))
    x = x * jnp.minimum(1.0, EMBED_MAX_NORM / jnp.maximum(norms, 1e-12))

    w_ih_t = params["w_ih"].T
    w_hh_t = params["w_hh"].T
    b_all = params["b_ih"] + params["b_hh"]
    lens = lengths.astype(jnp.int32).reshape(B, 1)

    def step(carry, xt_t):
        h, c, t = carry
        gates = xt_t @ w_ih_t + h @ w_hh_t + b_all
        i_g = jax.nn.sigmoid(gates[:, 0 * H:1 * H])
        f_g = jax.nn.sigmoid(gates[:, 1 * H:2 * H])
        g_g = jnp.tanh(gates[:, 2 * H:3 * H])
        o_g = jax.nn.sigmoid(gates[:, 3 * H:4 * H])
        c_new = f_g * c + i_g * g_g
        h_new = o_g * jnp.tanh(c_new)
        active = t < lens
        h = jnp.where(active, h_new, h)
        c = jnp.where(active, c_new, c)
        return (h, c, t + 1), None

    h0 = jnp.zeros((B, H), jnp.float32)
    c0 = jnp.zeros((B, H), jnp.float32)
    (h_last, _, _), _ = jax.lax.scan(step, (h0, c0, jnp.int32(0)), x)
    logits = jnp.maximum(h_last @ params["w_fc"].T + params["b_fc"], 0.0)
    return jax.nn.softmax(logits, axis=1)


def init_params(key):
    E, H = EMBED_LEN, HIDDEN
    k = 1.0 / jnp.sqrt(H)
    keys = jax.random.split(key, 7)
    return {
        "embed": jax.random.normal(keys[0], (VOCAB, E), jnp.float32),
        "w_ih": jax.random.uniform(keys[1], (4 * H, E), jnp.float32, -k, k),
        "w_hh": jax.random.uniform(keys[2], (4 * H, H), jnp.float32, -k, k),
        "b_ih": jax.random.uniform(keys[3], (4 * H,), jnp.float32, -k, k),
        "b_hh": jax.random.uniform(keys[4], (4 * H,), jnp.float32, -k, k),
        "w_fc": jax.random.uniform(keys[5], (NUM_CLASSES, H), jnp.float32, -k, k),
        "b_fc": jax.random.uniform(keys[6], (NUM_CLASSES,), jnp.float32, -k, k),
    }


if __name__ == "__main__":
    key = jax.random.PRNGKey(0)
    params = init_params(key)

    B, T = 2, 8
    sent_key, _ = jax.random.split(key)
    sentences = jax.random.randint(sent_key, (B, T), 0, VOCAB, dtype=jnp.int32)
    lengths = jnp.array([8, 5], dtype=jnp.int32)  # variable-length sequences

    out = rnn_forward(sentences, lengths, params)
    out = jax.block_until_ready(out)

    assert out.shape == (B, NUM_CLASSES)
    # softmax rows sum to 1 (approx reciprocal -> ~1e-3 tolerance)
    assert bool(jnp.all(jnp.abs(jnp.sum(out, axis=1) - 1.0) < 5e-3))
    # match the pure-f32 reference (bf16 recurrent matmul -> loose tolerance)
    ref = rnn_reference(sentences, lengths, params)
    assert bool(jnp.all(jnp.abs(out - ref) < 5e-2))
    print("KERNEL_OK")
</pallas_src>

<mosaic_0001>
module attributes {stable_mosaic.version = 11 : i64} {
  func.func @lstm_fc_softmax_kernel(%arg0: memref<2x1xi32, #tpu.memory_space<vmem>>, %arg1: memref<8x2x1024xf32, #tpu.memory_space<vmem>>, %arg2: memref<256x1024xbf16, #tpu.memory_space<vmem>>, %arg3: memref<256x128xf32, #tpu.memory_space<vmem>>, %arg4: memref<1x128xf32, #tpu.memory_space<vmem>>, %arg5: memref<2x128xf32, #tpu.memory_space<vmem>>) attributes {dimension_semantics = [], scalar_prefetch = 0 : i64, scratch_operands = 0 : i64, tpu.core_type = #tpu.core_type<tc>} {
    %c0 = arith.constant 0 : index
    %c0_0 = arith.constant 0 : index
    %0 = vector.load %arg0[%c0, %c0_0] : memref<2x1xi32, #tpu.memory_space<vmem>>, vector<2x1xi32>
    %1 = tpu.iota {dimensions = array<i32: 1>} : vector<1x1024xi32>
    %c512_i32 = arith.constant 512 : i32
    %2 = vector.broadcast %c512_i32 : i32 to vector<1x1024xi32>
    %3 = arith.cmpi sge, %1, %2 : vector<1x1024xi32>
    %c768_i32 = arith.constant 768 : i32
    %4 = vector.broadcast %c768_i32 : i32 to vector<1x1024xi32>
    %5 = arith.cmpi slt, %1, %4 : vector<1x1024xi32>
    %6 = arith.andi %3, %5 : vector<1x1024xi1>
    %cst = arith.constant 1.000000e+00 : f32
    %cst_1 = arith.constant 5.000000e-01 : f32
    %7 = vector.broadcast %cst : f32 to vector<1x1024xf32>
    %8 = vector.broadcast %cst_1 : f32 to vector<1x1024xf32>
    %9 = arith.select %6, %7, %8 : vector<1x1024xi1>, vector<1x1024xf32>
    %cst_2 = arith.constant 0.000000e+00 : f32
    %cst_3 = arith.constant 5.000000e-01 : f32
    %10 = vector.broadcast %cst_2 : f32 to vector<1x1024xf32>
    %11 = vector.broadcast %cst_3 : f32 to vector<1x1024xf32>
    %12 = arith.select %6, %10, %11 : vector<1x1024xi1>, vector<1x1024xf32>
    %cst_4 = arith.constant 0.000000e+00 : f32
    %13 = vector.broadcast %cst_4 : f32 to vector<2x256xf32>
    %cst_5 = arith.constant 0.000000e+00 : f32
    %14 = vector.broadcast %cst_5 : f32 to vector<2x256xf32>
    %c0_i32 = arith.constant 0 : i32
    %15 = arith.index_cast %c0_i32 : i32 to index
    %c0_6 = arith.constant 0 : index
    %c0_7 = arith.constant 0 : index
    %16 = vector.load %arg1[%15, %c0_6, %c0_7] : memref<8x2x1024xf32, #tpu.memory_space<vmem>>, vector<1x2x1024xf32>
    %17 = vector.shape_cast %16 : vector<1x2x1024xf32> to vector<2x1024xf32>
    %18 = arith.truncf %13 : vector<2x256xf32> to vector<2x256xbf16>
    %c0_8 = arith.constant 0 : index
    %c0_9 = arith.constant 0 : index
    %19 = vector.load %arg2[%c0_8, %c0_9] : memref<256x1024xbf16, #tpu.memory_space<vmem>>, vector<256x1024xbf16>
    %cst_10 = arith.constant dense<0.000000e+00> : vector<2x1024xf32>
    %20 = tpu.matmul %18, %19, %cst_10 {dimension_numbers = #tpu.dot_dimension_numbers<[1], [0], [0], [1], [0, 0, 1, 1], [], []>} : vector<2x256xbf16>, vector<256x1024xbf16>, vector<2x1024xf32> -> vector<2x1024xf32>
    %21 = arith.addf %17, %20 : vector<2x1024xf32>
    %22 = vector.broadcast %9 : vector<1x1024xf32> to vector<2x1024xf32>
    %23 = arith.mulf %21, %22 : vector<2x1024xf32>
    %24 = math.tanh %23 : vector<2x1024xf32>
    %25 = vector.broadcast %9 : vector<1x1024xf32> to vector<2x1024xf32>
    %26 = arith.mulf %24, %25 : vector<2x1024xf32>
    %27 = vector.broadcast %12 : vector<1x1024xf32> to vector<2x1024xf32>
    %28 = arith.addf %26, %27 : vector<2x1024xf32>
    %29 = vector.extract_strided_slice %28 {offsets = [0, 0], sizes = [2, 256], strides = [1, 1]} : vector<2x1024xf32> to vector<2x256xf32>
    %30 = vector.extract_strided_slice %28 {offsets = [0, 256], sizes = [2, 256], strides = [1, 1]} : vector<2x1024xf32> to vector<2x256xf32>
    %31 = vector.extract_strided_slice %28 {offsets = [0, 512], sizes = [2, 256], strides = [1, 1]} : vector<2x1024xf32> to vector<2x256xf32>
    %32 = vector.extract_strided_slice %28 {offsets = [0, 768], sizes = [2, 256], strides = [1, 1]} : vector<2x1024xf32> to vector<2x256xf32>
    %33 = arith.mulf %30, %14 : vector<2x256xf32>
    %34 = arith.mulf %29, %31 : vector<2x256xf32>
    %35 = arith.addf %33, %34 : vector<2x256xf32>
    %36 = math.tanh %35 : vector<2x256xf32>
    %37 = arith.mulf %32, %36 : vector<2x256xf32>
    %38 = vector.broadcast %c0_i32 : i32 to vector<2x1xi32>
    %39 = arith.cmpi slt, %38, %0 : vector<2x1xi32>
    %40 = vector.shape_cast %39 : vector<2x1xi1> to vector<2x1xi1>
    %41 = vector.broadcast %40 : vector<2x1xi1> to vector<2x256xi1>
    %42 = arith.select %41, %37, %13 : vector<2x256xi1>, vector<2x256xf32>
    %43 = vector.shape_cast %39 : vector<2x1xi1> to vector<2x1xi1>
    %44 = vector.broadcast %43 : vector<2x1xi1> to vector<2x256xi1>
    %45 = arith.select %44, %35, %14 : vector<2x256xi1>, vector<2x256xf32>
    %c1_i32 = arith.constant 1 : i32
    %46 = arith.index_cast %c1_i32 : i32 to index
    %c0_11 = arith.constant 0 : index
    %c0_12 = arith.constant 0 : index
    %47 = vector.load %arg1[%46, %c0_11, %c0_12] : memref<8x2x1024xf32, #tpu.memory_space<vmem>>, vector<1x2x1024xf32>
    %48 = vector.shape_cast %47 : vector<1x2x1024xf32> to vector<2x1024xf32>
    %49 = arith.truncf %42 : vector<2x256xf32> to vector<2x256xbf16>
    %c0_13 = arith.constant 0 : index
    %c0_14 = arith.constant 0 : index
    %50 = vector.load %arg2[%c0_13, %c0_14] : memref<256x1024xbf16, #tpu.memory_space<vmem>>, vector<256x1024xbf16>
    %cst_15 = arith.constant dense<0.000000e+00> : vector<2x1024xf32>
    %51 = tpu.matmul %49, %50, %cst_15 {dimension_numbers = #tpu.dot_dimension_numbers<[1], [0], [0], [1], [0, 0, 1, 1], [], []>} : vector<2x256xbf16>, vector<256x1024xbf16>, vector<2x1024xf32> -> vector<2x1024xf32>
    %52 = arith.addf %48, %51 : vector<2x1024xf32>
    %53 = vector.broadcast %9 : vector<1x1024xf32> to vector<2x1024xf32>
    %54 = arith.mulf %52, %53 : vector<2x1024xf32>
    %55 = math.tanh %54 : vector<2x1024xf32>
    %56 = vector.broadcast %9 : vector<1x1024xf32> to vector<2x1024xf32>
    %57 = arith.mulf %55, %56 : vector<2x1024xf32>
    %58 = vector.broadcast %12 : vector<1x1024xf32> to vector<2x1024xf32>
    %59 = arith.addf %57, %58 : vector<2x1024xf32>
    %60 = vector.extract_strided_slice %59 {offsets = [0, 0], sizes = [2, 256], strides = [1, 1]} : vector<2x1024xf32> to vector<2x256xf32>
    %61 = vector.extract_strided_slice %59 {offsets = [0, 256], sizes = [2, 256], strides = [1, 1]} : vector<2x1024xf32> to vector<2x256xf32>
    %62 = vector.extract_strided_slice %59 {offsets = [0, 512], sizes = [2, 256], strides = [1, 1]} : vector<2x1024xf32> to vector<2x256xf32>
    %63 = vector.extract_strided_slice %59 {offsets = [0, 768], sizes = [2, 256], strides = [1, 1]} : vector<2x1024xf32> to vector<2x256xf32>
    %64 = arith.mulf %61, %45 : vector<2x256xf32>
    %65 = arith.mulf %60, %62 : vector<2x256xf32>
    %66 = arith.addf %64, %65 : vector<2x256xf32>
    %67 = math.tanh %66 : vector<2x256xf32>
    %68 = arith.mulf %63, %67 : vector<2x256xf32>
    %69 = vector.broadcast %c1_i32 : i32 to vector<2x1xi32>
    %70 = arith.cmpi slt, %69, %0 : vector<2x1xi32>
    %71 = vector.shape_cast %70 : vector<2x1xi1> to vector<2x1xi1>
    %72 = vector.broadcast %71 : vector<2x1xi1> to vector<2x256xi1>
    %73 = arith.select %72, %68, %42 : vector<2x256xi1>, vector<2x256xf32>
    %74 = vector.shape_cast %70 : vector<2x1xi1> to vector<2x1xi1>
    %75 = vector.broadcast %74 : vector<2x1xi1> to vector<2x256xi1>
    %76 = arith.select %75, %66, %45 : vector<2x256xi1>, vector<2x256xf32>
    %c2_i32 = arith.constant 2 : i32
    %77 = arith.index_cast %c2_i32 : i32 to index
    %c0_16 = arith.constant 0 : index
    %c0_17 = arith.constant 0 : index
    %78 = vector.load %arg1[%77, %c0_16, %c0_17] : memref<8x2x1024xf32, #tpu.memory_space<vmem>>, vector<1x2x1024xf32>
    %79 = vector.shape_cast %78 : vector<1x2x1024xf32> to vector<2x1024xf32>
    %80 = arith.truncf %73 : vector<2x256xf32> to vector<2x256xbf16>
    %c0_18 = arith.constant 0 : index
    %c0_19 = arith.constant 0 : index
    %81 = vector.load %arg2[%c0_18, %c0_19] : memref<256x1024xbf16, #tpu.memory_space<vmem>>, vector<256x1024xbf16>
    %cst_20 = arith.constant dense<0.000000e+00> : vector<2x1024xf32>
    %82 = tpu.matmul %80, %81, %cst_20 {dimension_numbers = #tpu.dot_dimension_numbers<[1], [0], [0], [1], [0, 0, 1, 1], [], []>} : vector<2x256xbf16>, vector<256x1024xbf16>, vector<2x1024xf32> -> vector<2x1024xf32>
    %83 = arith.addf %79, %82 : vector<2x1024xf32>
    %84 = vector.broadcast %9 : vector<1x1024xf32> to vector<2x1024xf32>
    %85 = arith.mulf %83, %84 : vector<2x1024xf32>
    %86 = math.tanh %85 : vector<2x1024xf32>
    %87 = vector.broadcast %9 : vector<1x1024xf32> to vector<2x1024xf32>
    %88 = arith.mulf %86, %87 : vector<2x1024xf32>
    %89 = vector.broadcast %12 : vector<1x1024xf32> to vector<2x1024xf32>
    %90 = arith.addf %88, %89 : vector<2x1024xf32>
    %91 = vector.extract_strided_slice %90 {offsets = [0, 0], sizes = [2, 256], strides = [1, 1]} : vector<2x1024xf32> to vector<2x256xf32>
    %92 = vector.extract_strided_slice %90 {offsets = [0, 256], sizes = [2, 256], strides = [1, 1]} : vector<2x1024xf32> to vector<2x256xf32>
    %93 = vector.extract_strided_slice %90 {offsets = [0, 512], sizes = [2, 256], strides = [1, 1]} : vector<2x1024xf32> to vector<2x256xf32>
    %94 = vector.extract_strided_slice %90 {offsets = [0, 768], sizes = [2, 256], strides = [1, 1]} : vector<2x1024xf32> to vector<2x256xf32>
    %95 = arith.mulf %92, %76 : vector<2x256xf32>
    %96 = arith.mulf %91, %93 : vector<2x256xf32>
    %97 = arith.addf %95, %96 : vector<2x256xf32>
    %98 = math.tanh %97 : vector<2x256xf32>
    %99 = arith.mulf %94, %98 : vector<2x256xf32>
    %100 = vector.broadcast %c2_i32 : i32 to vector<2x1xi32>
    %101 = arith.cmpi slt, %100, %0 : vector<2x1xi32>
    %102 = vector.shape_cast %101 : vector<2x1xi1> to vector<2x1xi1>
    %103 = vector.broadcast %102 : vector<2x1xi1> to vector<2x256xi1>
    %104 = arith.select %103, %99, %73 : vector<2x256xi1>, vector<2x256xf32>
    %105 = vector.shape_cast %101 : vector<2x1xi1> to vector<2x1xi1>
    %106 = vector.broadcast %105 : vector<2x1xi1> to vector<2x256xi1>
    %107 = arith.select %106, %97, %76 : vector<2x256xi1>, vector<2x256xf32>
    %c3_i32 = arith.constant 3 : i32
    %108 = arith.index_cast %c3_i32 : i32 to index
    %c0_21 = arith.constant 0 : index
    %c0_22 = arith.constant 0 : index
    %109 = vector.load %arg1[%108, %c0_21, %c0_22] : memref<8x2x1024xf32, #tpu.memory_space<vmem>>, vector<1x2x1024xf32>
    %110 = vector.shape_cast %109 : vector<1x2x1024xf32> to vector<2x1024xf32>
    %111 = arith.truncf %104 : vector<2x256xf32> to vector<2x256xbf16>
    %c0_23 = arith.constant 0 : index
    %c0_24 = arith.constant 0 : index
    %112 = vector.load %arg2[%c0_23, %c0_24] : memref<256x1024xbf16, #tpu.memory_space<vmem>>, vector<256x1024xbf16>
    %cst_25 = arith.constant dense<0.000000e+00> : vector<2x1024xf32>
    %113 = tpu.matmul %111, %112, %cst_25 {dimension_numbers = #tpu.dot_dimension_numbers<[1], [0], [0], [1], [0, 0, 1, 1], [], []>} : vector<2x256xbf16>, vector<256x1024xbf16>, vector<2x1024xf32> -> vector<2x1024xf32>
    %114 = arith.addf %110, %113 : vector<2x1024xf32>
    %115 = vector.broadcast %9 : vector<1x1024xf32> to vector<2x1024xf32>
    %116 = arith.mulf %114, %115 : vector<2x1024xf32>
    %117 = math.tanh %116 : vector<2x1024xf32>
    %118 = vector.broadcast %9 : vector<1x1024xf32> to vector<2x1024xf32>
    %119 = arith.mulf %117, %118 : vector<2x1024xf32>
    %120 = vector.broadcast %12 : vector<1x1024xf32> to vector<2x1024xf32>
    %121 = arith.addf %119, %120 : vector<2x1024xf32>
    %122 = vector.extract_strided_slice %121 {offsets = [0, 0], sizes = [2, 256], strides = [1, 1]} : vector<2x1024xf32> to vector<2x256xf32>
    %123 = vector.extract_strided_slice %121 {offsets = [0, 256], sizes = [2, 256], strides = [1, 1]} : vector<2x1024xf32> to vector<2x256xf32>
    %124 = vector.extract_strided_slice %121 {offsets = [0, 512], sizes = [2, 256], strides = [1, 1]} : vector<2x1024xf32> to vector<2x256xf32>
    %125 = vector.extract_strided_slice %121 {offsets = [0, 768], sizes = [2, 256], strides = [1, 1]} : vector<2x1024xf32> to vector<2x256xf32>
    %126 = arith.mulf %123, %107 : vector<2x256xf32>
    %127 = arith.mulf %122, %124 : vector<2x256xf32>
    %128 = arith.addf %126, %127 : vector<2x256xf32>
    %129 = math.tanh %128 : vector<2x256xf32>
    %130 = arith.mulf %125, %129 : vector<2x256xf32>
    %131 = vector.broadcast %c3_i32 : i32 to vector<2x1xi32>
    %132 = arith.cmpi slt, %131, %0 : vector<2x1xi32>
    %133 = vector.shape_cast %132 : vector<2x1xi1> to vector<2x1xi1>
    %134 = vector.broadcast %133 : vector<2x1xi1> to vector<2x256xi1>
    %135 = arith.select %134, %130, %104 : vector<2x256xi1>, vector<2x256xf32>
    %136 = vector.shape_cast %132 : vector<2x1xi1> to vector<2x1xi1>
    %137 = vector.broadcast %136 : vector<2x1xi1> to vector<2x256xi1>
    %138 = arith.select %137, %128, %107 : vector<2x256xi1>, vector<2x256xf32>
    %c4_i32 = arith.constant 4 : i32
    %139 = arith.index_cast %c4_i32 : i32 to index
    %c0_26 = arith.constant 0 : index
    %c0_27 = arith.constant 0 : index
    %140 = vector.load %arg1[%139, %c0_26, %c0_27] : memref<8x2x1024xf32, #tpu.memory_space<vmem>>, vector<1x2x1024xf32>
    %141 = vector.shape_cast %140 : vector<1x2x1024xf32> to vector<2x1024xf32>
    %142 = arith.truncf %135 : vector<2x256xf32> to vector<2x256xbf16>
    %c0_28 = arith.constant 0 : index
    %c0_29 = arith.constant 0 : index
    %143 = vector.load %arg2[%c0_28, %c0_29] : memref<256x1024xbf16, #tpu.memory_space<vmem>>, vector<256x1024xbf16>
    %cst_30 = arith.constant dense<0.000000e+00> : vector<2x1024xf32>
    %144 = tpu.matmul %142, %143, %cst_30 {dimension_numbers = #tpu.dot_dimension_numbers<[1], [0], [0], [1], [0, 0, 1, 1], [], []>} : vector<2x256xbf16>, vector<256x1024xbf16>, vector<2x1024xf32> -> vector<2x1024xf32>
    %145 = arith.addf %141, %144 : vector<2x1024xf32>
    %146 = vector.broadcast %9 : vector<1x1024xf32> to vector<2x1024xf32>
    %147 = arith.mulf %145, %146 : vector<2x1024xf32>
    %148 = math.tanh %147 : vector<2x1024xf32>
    %149 = vector.broadcast %9 : vector<1x1024xf32> to vector<2x1024xf32>
    %150 = arith.mulf %148, %149 : vector<2x1024xf32>
    %151 = vector.broadcast %12 : vector<1x1024xf32> to vector<2x1024xf32>
    %152 = arith.addf %150, %151 : vector<2x1024xf32>
    %153 = vector.extract_strided_slice %152 {offsets = [0, 0], sizes = [2, 256], strides = [1, 1]} : vector<2x1024xf32> to vector<2x256xf32>
    %154 = vector.extract_strided_slice %152 {offsets = [0, 256], sizes = [2, 256], strides = [1, 1]} : vector<2x1024xf32> to vector<2x256xf32>
    %155 = vector.extract_strided_slice %152 {offsets = [0, 512], sizes = [2, 256], strides = [1, 1]} : vector<2x1024xf32> to vector<2x256xf32>
    %156 = vector.extract_strided_slice %152 {offsets = [0, 768], sizes = [2, 256], strides = [1, 1]} : vector<2x1024xf32> to vector<2x256xf32>
    %157 = arith.mulf %154, %138 : vector<2x256xf32>
    %158 = arith.mulf %153, %155 : vector<2x256xf32>
    %159 = arith.addf %157, %158 : vector<2x256xf32>
    %160 = math.tanh %159 : vector<2x256xf32>
    %161 = arith.mulf %156, %160 : vector<2x256xf32>
    %162 = vector.broadcast %c4_i32 : i32 to vector<2x1xi32>
    %163 = arith.cmpi slt, %162, %0 : vector<2x1xi32>
    %164 = vector.shape_cast %163 : vector<2x1xi1> to vector<2x1xi1>
    %165 = vector.broadcast %164 : vector<2x1xi1> to vector<2x256xi1>
    %166 = arith.select %165, %161, %135 : vector<2x256xi1>, vector<2x256xf32>
    %167 = vector.shape_cast %163 : vector<2x1xi1> to vector<2x1xi1>
    %168 = vector.broadcast %167 : vector<2x1xi1> to vector<2x256xi1>
    %169 = arith.select %168, %159, %138 : vector<2x256xi1>, vector<2x256xf32>
    %c5_i32 = arith.constant 5 : i32
    %170 = arith.index_cast %c5_i32 : i32 to index
    %c0_31 = arith.constant 0 : index
    %c0_32 = arith.constant 0 : index
    %171 = vector.load %arg1[%170, %c0_31, %c0_32] : memref<8x2x1024xf32, #tpu.memory_space<vmem>>, vector<1x2x1024xf32>
    %172 = vector.shape_cast %171 : vector<1x2x1024xf32> to vector<2x1024xf32>
    %173 = arith.truncf %166 : vector<2x256xf32> to vector<2x256xbf16>
    %c0_33 = arith.constant 0 : index
    %c0_34 = arith.constant 0 : index
    %174 = vector.load %arg2[%c0_33, %c0_34] : memref<256x1024xbf16, #tpu.memory_space<vmem>>, vector<256x1024xbf16>
    %cst_35 = arith.constant dense<0.000000e+00> : vector<2x1024xf32>
    %175 = tpu.matmul %173, %174, %cst_35 {dimension_numbers = #tpu.dot_dimension_numbers<[1], [0], [0], [1], [0, 0, 1, 1], [], []>} : vector<2x256xbf16>, vector<256x1024xbf16>, vector<2x1024xf32> -> vector<2x1024xf32>
    %176 = arith.addf %172, %175 : vector<2x1024xf32>
    %177 = vector.broadcast %9 : vector<1x1024xf32> to vector<2x1024xf32>
    %178 = arith.mulf %176, %177 : vector<2x1024xf32>
    %179 = math.tanh %178 : vector<2x1024xf32>
    %180 = vector.broadcast %9 : vector<1x1024xf32> to vector<2x1024xf32>
    %181 = arith.mulf %179, %180 : vector<2x1024xf32>
    %182 = vector.broadcast %12 : vector<1x1024xf32> to vector<2x1024xf32>
    %183 = arith.addf %181, %182 : vector<2x1024xf32>
    %184 = vector.extract_strided_slice %183 {offsets = [0, 0], sizes = [2, 256], strides = [1, 1]} : vector<2x1024xf32> to vector<2x256xf32>
    %185 = vector.extract_strided_slice %183 {offsets = [0, 256], sizes = [2, 256], strides = [1, 1]} : vector<2x1024xf32> to vector<2x256xf32>
    %186 = vector.extract_strided_slice %183 {offsets = [0, 512], sizes = [2, 256], strides = [1, 1]} : vector<2x1024xf32> to vector<2x256xf32>
    %187 = vector.extract_strided_slice %183 {offsets = [0, 768], sizes = [2, 256], strides = [1, 1]} : vector<2x1024xf32> to vector<2x256xf32>
    %188 = arith.mulf %185, %169 : vector<2x256xf32>
    %189 = arith.mulf %184, %186 : vector<2x256xf32>
    %190 = arith.addf %188, %189 : vector<2x256xf32>
    %191 = math.tanh %190 : vector<2x256xf32>
    %192 = arith.mulf %187, %191 : vector<2x256xf32>
    %193 = vector.broadcast %c5_i32 : i32 to vector<2x1xi32>
    %194 = arith.cmpi slt, %193, %0 : vector<2x1xi32>
    %195 = vector.shape_cast %194 : vector<2x1xi1> to vector<2x1xi1>
    %196 = vector.broadcast %195 : vector<2x1xi1> to vector<2x256xi1>
    %197 = arith.select %196, %192, %166 : vector<2x256xi1>, vector<2x256xf32>
    %198 = vector.shape_cast %194 : vector<2x1xi1> to vector<2x1xi1>
    %199 = vector.broadcast %198 : vector<2x1xi1> to vector<2x256xi1>
    %200 = arith.select %199, %190, %169 : vector<2x256xi1>, vector<2x256xf32>
    %c6_i32 = arith.constant 6 : i32
    %201 = arith.index_cast %c6_i32 : i32 to index
    %c0_36 = arith.constant 0 : index
    %c0_37 = arith.constant 0 : index
    %202 = vector.load %arg1[%201, %c0_36, %c0_37] : memref<8x2x1024xf32, #tpu.memory_space<vmem>>, vector<1x2x1024xf32>
    %203 = vector.shape_cast %202 : vector<1x2x1024xf32> to vector<2x1024xf32>
    %204 = arith.truncf %197 : vector<2x256xf32> to vector<2x256xbf16>
    %c0_38 = arith.constant 0 : index
    %c0_39 = arith.constant 0 : index
    %205 = vector.load %arg2[%c0_38, %c0_39] : memref<256x1024xbf16, #tpu.memory_space<vmem>>, vector<256x1024xbf16>
    %cst_40 = arith.constant dense<0.000000e+00> : vector<2x1024xf32>
    %206 = tpu.matmul %204, %205, %cst_40 {dimension_numbers = #tpu.dot_dimension_numbers<[1], [0], [0], [1], [0, 0, 1, 1], [], []>} : vector<2x256xbf16>, vector<256x1024xbf16>, vector<2x1024xf32> -> vector<2x1024xf32>
    %207 = arith.addf %203, %206 : vector<2x1024xf32>
    %208 = vector.broadcast %9 : vector<1x1024xf32> to vector<2x1024xf32>
    %209 = arith.mulf %207, %208 : vector<2x1024xf32>
    %210 = math.tanh %209 : vector<2x1024xf32>
    %211 = vector.broadcast %9 : vector<1x1024xf32> to vector<2x1024xf32>
    %212 = arith.mulf %210, %211 : vector<2x1024xf32>
    %213 = vector.broadcast %12 : vector<1x1024xf32> to vector<2x1024xf32>
    %214 = arith.addf %212, %213 : vector<2x1024xf32>
    %215 = vector.extract_strided_slice %214 {offsets = [0, 0], sizes = [2, 256], strides = [1, 1]} : vector<2x1024xf32> to vector<2x256xf32>
    %216 = vector.extract_strided_slice %214 {offsets = [0, 256], sizes = [2, 256], strides = [1, 1]} : vector<2x1024xf32> to vector<2x256xf32>
    %217 = vector.extract_strided_slice %214 {offsets = [0, 512], sizes = [2, 256], strides = [1, 1]} : vector<2x1024xf32> to vector<2x256xf32>
    %218 = vector.extract_strided_slice %214 {offsets = [0, 768], sizes = [2, 256], strides = [1, 1]} : vector<2x1024xf32> to vector<2x256xf32>
    %219 = arith.mulf %216, %200 : vector<2x256xf32>
    %220 = arith.mulf %215, %217 : vector<2x256xf32>
    %221 = arith.addf %219, %220 : vector<2x256xf32>
    %222 = math.tanh %221 : vector<2x256xf32>
    %223 = arith.mulf %218, %222 : vector<2x256xf32>
    %224 = vector.broadcast %c6_i32 : i32 to vector<2x1xi32>
    %225 = arith.cmpi slt, %224, %0 : vector<2x1xi32>
    %226 = vector.shape_cast %225 : vector<2x1xi1> to vector<2x1xi1>
    %227 = vector.broadcast %226 : vector<2x1xi1> to vector<2x256xi1>
    %228 = arith.select %227, %223, %197 : vector<2x256xi1>, vector<2x256xf32>
    %229 = vector.shape_cast %225 : vector<2x1xi1> to vector<2x1xi1>
    %230 = vector.broadcast %229 : vector<2x1xi1> to vector<2x256xi1>
    %231 = arith.select %230, %221, %200 : vector<2x256xi1>, vector<2x256xf32>
    %c7_i32 = arith.constant 7 : i32
    %232 = arith.index_cast %c7_i32 : i32 to index
    %c0_41 = arith.constant 0 : index
    %c0_42 = arith.constant 0 : index
    %233 = vector.load %arg1[%232, %c0_41, %c0_42] : memref<8x2x1024xf32, #tpu.memory_space<vmem>>, vector<1x2x1024xf32>
    %234 = vector.shape_cast %233 : vector<1x2x1024xf32> to vector<2x1024xf32>
    %235 = arith.truncf %228 : vector<2x256xf32> to vector<2x256xbf16>
    %c0_43 = arith.constant 0 : index
    %c0_44 = arith.constant 0 : index
    %236 = vector.load %arg2[%c0_43, %c0_44] : memref<256x1024xbf16, #tpu.memory_space<vmem>>, vector<256x1024xbf16>
    %cst_45 = arith.constant dense<0.000000e+00> : vector<2x1024xf32>
    %237 = tpu.matmul %235, %236, %cst_45 {dimension_numbers = #tpu.dot_dimension_numbers<[1], [0], [0], [1], [0, 0, 1, 1], [], []>} : vector<2x256xbf16>, vector<256x1024xbf16>, vector<2x1024xf32> -> vector<2x1024xf32>
    %238 = arith.addf %234, %237 : vector<2x1024xf32>
    %239 = vector.broadcast %9 : vector<1x1024xf32> to vector<2x1024xf32>
    %240 = arith.mulf %238, %239 : vector<2x1024xf32>
    %241 = math.tanh %240 : vector<2x1024xf32>
    %242 = vector.broadcast %9 : vector<1x1024xf32> to vector<2x1024xf32>
    %243 = arith.mulf %241, %242 : vector<2x1024xf32>
    %244 = vector.broadcast %12 : vector<1x1024xf32> to vector<2x1024xf32>
    %245 = arith.addf %243, %244 : vector<2x1024xf32>
    %246 = vector.extract_strided_slice %245 {offsets = [0, 0], sizes = [2, 256], strides = [1, 1]} : vector<2x1024xf32> to vector<2x256xf32>
    %247 = vector.extract_strided_slice %245 {offsets = [0, 256], sizes = [2, 256], strides = [1, 1]} : vector<2x1024xf32> to vector<2x256xf32>
    %248 = vector.extract_strided_slice %245 {offsets = [0, 512], sizes = [2, 256], strides = [1, 1]} : vector<2x1024xf32> to vector<2x256xf32>
    %249 = vector.extract_strided_slice %245 {offsets = [0, 768], sizes = [2, 256], strides = [1, 1]} : vector<2x1024xf32> to vector<2x256xf32>
    %250 = arith.mulf %247, %231 : vector<2x256xf32>
    %251 = arith.mulf %246, %248 : vector<2x256xf32>
    %252 = arith.addf %250, %251 : vector<2x256xf32>
    %253 = math.tanh %252 : vector<2x256xf32>
    %254 = arith.mulf %249, %253 : vector<2x256xf32>
    %255 = vector.broadcast %c7_i32 : i32 to vector<2x1xi32>
    %256 = arith.cmpi slt, %255, %0 : vector<2x1xi32>
    %257 = vector.shape_cast %256 : vector<2x1xi1> to vector<2x1xi1>
    %258 = vector.broadcast %257 : vector<2x1xi1> to vector<2x256xi1>
    %259 = arith.select %258, %254, %228 : vector<2x256xi1>, vector<2x256xf32>
    %260 = vector.shape_cast %256 : vector<2x1xi1> to vector<2x1xi1>
    %261 = vector.broadcast %260 : vector<2x1xi1> to vector<2x256xi1>
    %262 = arith.select %261, %252, %231 : vector<2x256xi1>, vector<2x256xf32>
    %c8_i32 = arith.constant 8 : i32
    %c0_46 = arith.constant 0 : index
    %c0_47 = arith.constant 0 : index
    %263 = vector.load %arg3[%c0_46, %c0_47] : memref<256x128xf32, #tpu.memory_space<vmem>>, vector<256x128xf32>
    %cst_48 = arith.constant dense<0.000000e+00> : vector<2x128xf32>
    %264 = tpu.matmul %259, %263, %cst_48 {dimension_numbers = #tpu.dot_dimension_numbers<[1], [0], [0], [1], [0, 0, 1, 1], [], []>} : vector<2x256xf32>, vector<256x128xf32>, vector<2x128xf32> -> vector<2x128xf32>
    %c0_49 = arith.constant 0 : index
    %c0_50 = arith.constant 0 : index
    %265 = vector.load %arg4[%c0_49, %c0_50] : memref<1x128xf32, #tpu.memory_space<vmem>>, vector<1x128xf32>
    %266 = vector.broadcast %265 : vector<1x128xf32> to vector<2x128xf32>
    %267 = arith.addf %264, %266 : vector<2x128xf32>
    %cst_51 = arith.constant 0.000000e+00 : f32
    %268 = vector.broadcast %cst_51 : f32 to vector<2x128xf32>
    %269 = arith.maximumf %267, %268 : vector<2x128xf32>
    %270 = tpu.iota {dimensions = array<i32: 1>} : vector<2x128xi32>
    %c7_i32_52 = arith.constant 7 : i32
    %271 = vector.broadcast %c7_i32_52 : i32 to vector<2x128xi32>
    %272 = arith.cmpi slt, %270, %271 : vector<2x128xi32>
    %cst_53 = arith.constant -1.000000e+30 : f32
    %273 = vector.broadcast %cst_53 : f32 to vector<2x128xf32>
    %274 = arith.select %272, %269, %273 : vector<2x128xi1>, vector<2x128xf32>
    %cst_54 = arith.constant dense<0xFF800000> : vector<2xf32>
    %275 = vector.multi_reduction <maximumf>, %274, %cst_54 [1] : vector<2x128xf32> to vector<2xf32>
    %276 = vector.shape_cast %275 : vector<2xf32> to vector<2x1xf32>
    %277 = vector.broadcast %276 : vector<2x1xf32> to vector<2x128xf32>
    %278 = arith.subf %274, %277 : vector<2x128xf32>
    %279 = math.exp %278 : vector<2x128xf32>
    %cst_55 = arith.constant dense<0.000000e+00> : vector<2xf32>
    %280 = vector.multi_reduction <add>, %279, %cst_55 [1] : vector<2x128xf32> to vector<2xf32>
    %281 = vector.shape_cast %280 : vector<2xf32> to vector<2x1xf32>
    %282 = tpu.reciprocal %281 {approx = true} : vector<2x1xf32> -> vector<2x1xf32>
    %283 = vector.broadcast %282 : vector<2x1xf32> to vector<2x128xf32>
    %284 = arith.mulf %279, %283 : vector<2x128xf32>
    %c0_56 = arith.constant 0 : index
    %c0_57 = arith.constant 0 : index
    %285 = vector.load %arg5[%c0_56, %c0_57] : memref<2x128xf32, #tpu.memory_space<vmem>>, vector<2x128xf32>
    tpu.vector_store %arg5[%c0_56, %c0_57], %284 {strides = array<i32>} : memref<2x128xf32, #tpu.memory_space<vmem>>, vector<2x128xf32>,
    return
  }
}

</mosaic_0001>

<llo_original>
// kernel: tpu_custom_call.1
$region0: #{tpu_custom_call.1}
  #allocation0 [shape = 'u32[]', space=smem, size = 0x4, offset = 0x4, fixed_abs, tag = 'smem constant byte address 0x4 - core index']
  #allocation1 [shape = 'u32[72,128]{1,0:T(1,128)}', space=vmem, size = 0x9000, scoped, tag = 'internal scratch']
  %s0 = inlined_call_operand.vmem [shape: s32[2,1], index: 0, kind: input, shape index: {}]
  %s1 = inlined_call_operand.hbm [shape: f32[8,2,1024], index: 1, kind: input, shape index: {}]
  %s2 = inlined_call_operand.hbm [shape: bf16[256,1024], index: 2, kind: input, shape index: {}]
  %s3 = inlined_call_operand.hbm [shape: f32[256,128], index: 3, kind: input, shape index: {}]
  %s4 = inlined_call_operand.vmem [shape: f32[1,128], index: 4, kind: input, shape index: {}]
  %s5 = inlined_call_operand.hbm [shape: f32[2,128], index: 5, kind: output, shape index: {}]
  %s6 = sld [smem:[#allocation0]]
  $region42: #{tpu_custom_call.1} parent=0
    _
  %s8 = ssub.s32 1, %s6
  %s9 = scalar_select 0, %s8, %s6
  $region1: #{tpu_custom_call.1} parent=0
    #allocation2 [shape = 'u8[65536]{0}', space=vmem, size = 0x10000, scoped, tag = 'input window, operand 1, single buffered']
    #allocation3 [shape = 's32[1]{0}', space=sflag, size = 0x4, scoped, tag = 'scoped memory for tpu_custom_call.1']
    #allocation4 [shape = 's32[1]{0}', space=sflag, size = 0x4, scoped, tag = 'scoped memory for tpu_custom_call.1']
    #allocation5 [shape = 'u8[524288]{0}', space=vmem, size = 0x80000, scoped, tag = 'input window, operand 2, single buffered']
    #allocation6 [shape = 's32[1]{0}', space=sflag, size = 0x4, scoped, tag = 'scoped memory for tpu_custom_call.1']
    #allocation7 [shape = 'u8[131072]{0}', space=vmem, size = 0x20000, scoped, tag = 'input window, operand 3, single buffered']
    #allocation8 [shape = 'u8[1024]{0}', space=vmem, size = 0x400, scoped, tag = 'output window, operand 0, single buffered']
    %10 = vsyncpa [#allocation3], 0
    %11 = vsyncpa [#allocation6], 0
    %12 = vsyncpa [#allocation4], 0
    // Predicated region
    $region2: #{tpu_custom_call.1} parent=1 // pred_check
      _
    $region3: #{tpu_custom_call.1} parent=1 // pred_check_branch
      %14 = sbr.rel (0) target = $region5
    $region4: #{tpu_custom_call.1} parent=1 // pred_region
      _
    $region5: #{tpu_custom_call.1} parent=1 // pred_fallthru
      _
    // Predicated region
    $region6: #{tpu_custom_call.1} parent=1 // pred_check
      _
    $region7: #{tpu_custom_call.1} parent=1 // pred_check_branch
      %16 = sbr.rel (0) target = $region9
    $region8: #{tpu_custom_call.1} parent=1 // pred_region
      %18 = vsyncadd [#allocation3], 0
      %s19 = sshll.u32 %s1, 4
      %s20 = int_to_ptr.hbm [resolvable:$true] %s19
      %s21 = sshll.u32 [#allocation2], 4
      %s22 = int_to_ptr.vmem [resolvable:$true] %s21
      %27 = dma.hbm_to_vmem [thread:$0]  %s20, 2048, %s22, [#allocation3], 256, 256, 16
    $region9: #{tpu_custom_call.1} parent=1 // pred_fallthru
      _
    // Predicated region
    $region10: #{tpu_custom_call.1} parent=1 // pred_check
      _
    $region11: #{tpu_custom_call.1} parent=1 // pred_check_branch
      %29 = sbr.rel (0) target = $region13
    $region12: #{tpu_custom_call.1} parent=1 // pred_region
      %31 = vsyncadd [#allocation6], 0
      %s32 = sshll.u32 %s2, 4
      %s33 = int_to_ptr.hbm [resolvable:$true] %s32
      %s34 = sshll.u32 [#allocation5], 4
      %s35 = int_to_ptr.vmem [resolvable:$true] %s34
      %40 = dma.hbm_to_vmem [thread:$0]  %s33, 16384, %s35, [#allocation6], 512, 512, 32
    $region13: #{tpu_custom_call.1} parent=1 // pred_fallthru
      _
    // Predicated region
    $region14: #{tpu_custom_call.1} parent=1 // pred_check
      _
    $region15: #{tpu_custom_call.1} parent=1 // pred_check_branch
      %42 = sbr.rel (0) target = $region17
    $region16: #{tpu_custom_call.1} parent=1 // pred_region
      %44 = vsyncadd [#allocation6], 0
      %s45 = sshll.u32 %s3, 4
      %s46 = int_to_ptr.hbm [resolvable:$true] %s45
      %s47 = sshll.u32 [#allocation7], 4
      %s48 = int_to_ptr.vmem [resolvable:$true] %s47
      %53 = dma.hbm_to_vmem [thread:$0]  %s46, 4096, %s48, [#allocation6], 128, 128, 8
    $region17: #{tpu_custom_call.1} parent=1 // pred_fallthru
      _
    // Predicated region
    $region18: #{tpu_custom_call.1} parent=1 // pred_check
      _
    $region19: #{tpu_custom_call.1} parent=1 // pred_check_branch
      %55 = sbr.rel (0) target = $region21
    $region20: #{tpu_custom_call.1} parent=1 // pred_region
      _
    $region21: #{tpu_custom_call.1} parent=1 // pred_fallthru
      _
    // Predicated region
    $region22: #{tpu_custom_call.1} parent=1 // pred_check
      _
    $region23: #{tpu_custom_call.1} parent=1 // pred_check_branch
      %57 = sbr.rel (0) target = $region25
    $region24: #{tpu_custom_call.1} parent=1 // pred_region
      %59 = dma.done [#allocation3], 2048
    $region25: #{tpu_custom_call.1} parent=1 // pred_fallthru
      _
    // Predicated region
    $region26: #{tpu_custom_call.1} parent=1 // pred_check
      _
    $region27: #{tpu_custom_call.1} parent=1 // pred_check_branch
      %61 = sbr.rel (0) target = $region29
    $region28: #{tpu_custom_call.1} parent=1 // pred_region
      %63 = dma.done [#allocation6], 16384
    $region29: #{tpu_custom_call.1} parent=1 // pred_fallthru
      _
    // Predicated region
    $region30: #{tpu_custom_call.1} parent=1 // pred_check
      _
    $region31: #{tpu_custom_call.1} parent=1 // pred_check_branch
      %65 = sbr.rel (0) target = $region33
    $region32: #{tpu_custom_call.1} parent=1 // pred_region
      %67 = dma.done [#allocation6], 4096
    $region33: #{tpu_custom_call.1} parent=1 // pred_fallthru
      _
    %v69 = vld [vmem:[%s0] sm:$0x3]
    %v70 = vlaneseq
    %v71 = vand.u32 %v70, 127
    %v72 = vadd.s32 %v71, 128
    %v73 = vadd.s32 %v71, 256
    %v74 = vadd.s32 %v71, 384
    %v75 = vadd.s32 %v71, 512
    %v76 = vadd.s32 %v71, 640
    %v77 = vadd.s32 %v71, 768
    %v78 = vadd.s32 %v71, 896
    %vm79 = vcmp.ge.s32.totalorder %v71, 512
    %vm80 = vcmp.ge.s32.totalorder %v72, 512
    %vm81 = vcmp.ge.s32.totalorder %v73, 512
    %vm82 = vcmp.ge.s32.totalorder %v74, 512
    %vm83 = vcmp.ge.s32.totalorder %v75, 512
    %vm84 = vcmp.ge.s32.totalorder %v76, 512
    %vm85 = vcmp.ge.s32.totalorder %v77, 512
    %vm86 = vcmp.ge.s32.totalorder %v78, 512
    %vm87 = vcmp.lt.s32.totalorder %v71, 768
    %vm88 = vcmp.lt.s32.totalorder %v72, 768
    %vm89 = vcmp.lt.s32.totalorder %v73, 768
    %vm90 = vcmp.lt.s32.totalorder %v74, 768
    %vm91 = vcmp.lt.s32.totalorder %v75, 768
    %vm92 = vcmp.lt.s32.totalorder %v76, 768
    %vm93 = vcmp.lt.s32.totalorder %v77, 768
    %vm94 = vcmp.lt.s32.totalorder %v78, 768
    %vm95 = vmand %vm79, %vm87
    %vm96 = vmand %vm80, %vm88
    %vm97 = vmand %vm81, %vm89
    %vm98 = vmand %vm82, %vm90
    %vm99 = vmand %vm83, %vm91
    %vm100 = vmand %vm84, %vm92
    %vm101 = vmand %vm85, %vm93
    %vm102 = vmand %vm86, %vm94
    %v103 = vsel %vm95, 1.0, 0.5
    %v104 = vsel %vm96, 1.0, 0.5
    %v105 = vsel %vm97, 1.0, 0.5
    %v106 = vsel %vm98, 1.0, 0.5
    %v107 = vsel %vm99, 1.0, 0.5
    %v108 = vsel %vm100, 1.0, 0.5
    %v109 = vsel %vm101, 1.0, 0.5
    %v110 = vsel %vm102, 1.0, 0.5
    %v111 = vsel %vm95, 0.0, 0.5
    %v112 = vsel %vm96, 0.0, 0.5
    %v113 = vsel %vm97, 0.0, 0.5
    %v114 = vsel %vm98, 0.0, 0.5
    %v115 = vsel %vm99, 0.0, 0.5
    %v116 = vsel %vm100, 0.0, 0.5
    %v117 = vsel %vm101, 0.0, 0.5
    %v118 = vsel %vm102, 0.0, 0.5
    %v119 = vld [vmem:[#allocation2] sm:$0xff]
    %v120 = vld [vmem:[#allocation2 + $0x8] sm:$0xff]
    %v121 = vld [vmem:[#allocation5] sm:$0xff]
    %v122 = vld [vmem:[#allocation5 + $0x8] sm:$0xff]
    %v123 = vld [vmem:[#allocation5 + $0x10] sm:$0xff]
    %v124 = vld [vmem:[#allocation5 + $0x18] sm:$0xff]
    %v125 = vld [vmem:[#allocation5 + $0x20] sm:$0xff]
    %v126 = vld [vmem:[#allocation5 + $0x28] sm:$0xff]
    %v127 = vld [vmem:[#allocation5 + $0x30] sm:$0xff]
    %v128 = vld [vmem:[#allocation5 + $0x38] sm:$0xff]
    %v129 = vld [vmem:[#allocation5 + $0x40] sm:$0xff]
    %v130 = vld [vmem:[#allocation5 + $0x48] sm:$0xff]
    %v131 = vld [vmem:[#allocation5 + $0x50] sm:$0xff]
    %v132 = vld [vmem:[#allocation5 + $0x58] sm:$0xff]
    %v133 = vld [vmem:[#allocation5 + $0x60] sm:$0xff]
    %v134 = vld [vmem:[#allocation5 + $0x68] sm:$0xff]
    %v135 = vld [vmem:[#allocation5 + $0x70] sm:$0xff]
    %v136 = vld [vmem:[#allocation5 + $0x78] sm:$0xff]
    %v137 = vld [vmem:[#allocation5 + $0x80] sm:$0xff]
    %v138 = vld [vmem:[#allocation5 + $0x88] sm:$0xff]
    %v139 = vld [vmem:[#allocation5 + $0x90] sm:$0xff]
    %v140 = vld [vmem:[#allocation5 + $0x98] sm:$0xff]
    %v141 = vld [vmem:[#allocation5 + $0xa0] sm:$0xff]
    %v142 = vld [vmem:[#allocation5 + $0xa8] sm:$0xff]
    %v143 = vld [vmem:[#allocation5 + $0xb0] sm:$0xff]
    %v144 = vld [vmem:[#allocation5 + $0xb8] sm:$0xff]
    %v145 = vld [vmem:[#allocation5 + $0xc0] sm:$0xff]
    %v146 = vld [vmem:[#allocation5 + $0xc8] sm:$0xff]
    %v147 = vld [vmem:[#allocation5 + $0xd0] sm:$0xff]
    %v148 = vld [vmem:[#allocation5 + $0xd8] sm:$0xff]
    %v149 = vld [vmem:[#allocation5 + $0xe0] sm:$0xff]
    %v150 = vld [vmem:[#allocation5 + $0xe8] sm:$0xff]
    %v151 = vld [vmem:[#allocation5 + $0xf0] sm:$0xff]
    %v152 = vld [vmem:[#allocation5 + $0xf8] sm:$0xff]
    %v153 = vld [vmem:[#allocation5 + $0x100] sm:$0xff]
    %v154 = vld [vmem:[#allocation5 + $0x108] sm:$0xff]
    %v155 = vld [vmem:[#allocation5 + $0x110] sm:$0xff]
    %v156 = vld [vmem:[#allocation5 + $0x118] sm:$0xff]
    %v157 = vld [vmem:[#allocation5 + $0x120] sm:$0xff]
    %v158 = vld [vmem:[#allocation5 + $0x128] sm:$0xff]
    %v159 = vld [vmem:[#allocation5 + $0x130] sm:$0xff]
    %v160 = vld [vmem:[#allocation5 + $0x138] sm:$0xff]
    %v161 = vld [vmem:[#allocation5 + $0x140] sm:$0xff]
    %v162 = vld [vmem:[#allocation5 + $0x148] sm:$0xff]
    %v163 = vld [vmem:[#allocation5 + $0x150] sm:$0xff]
    %v164 = vld [vmem:[#allocation5 + $0x158] sm:$0xff]
    %v165 = vld [vmem:[#allocation5 + $0x160] sm:$0xff]
    %v166 = vld [vmem:[#allocation5 + $0x168] sm:$0xff]
    %v167 = vld [vmem:[#allocation5 + $0x170] sm:$0xff]
    %v168 = vld [vmem:[#allocation5 + $0x178] sm:$0xff]
    %v169 = vld [vmem:[#allocation5 + $0x180] sm:$0xff]
    %v170 = vld [vmem:[#allocation5 + $0x188] sm:$0xff]
    %v171 = vld [vmem:[#allocation5 + $0x190] sm:$0xff]
    %v172 = vld [vmem:[#allocation5 + $0x198] sm:$0xff]
    %v173 = vld [vmem:[#allocation5 + $0x1a0] sm:$0xff]
    %v174 = vld [vmem:[#allocation5 + $0x1a8] sm:$0xff]
    %v175 = vld [vmem:[#allocation5 + $0x1b0] sm:$0xff]
    %v176 = vld [vmem:[#allocation5 + $0x1b8] sm:$0xff]
    %v177 = vld [vmem:[#allocation5 + $0x1c0] sm:$0xff]
    %v178 = vld [vmem:[#allocation5 + $0x1c8] sm:$0xff]
    %v179 = vld [vmem:[#allocation5 + $0x1d0] sm:$0xff]
    %v180 = vld [vmem:[#allocation5 + $0x1d8] sm:$0xff]
    %v181 = vld [vmem:[#allocation5 + $0x1e0] sm:$0xff]
    %v182 = vld [vmem:[#allocation5 + $0x1e8] sm:$0xff]
    %v183 = vld [vmem:[#allocation5 + $0x1f0] sm:$0xff]
    %v184 = vld [vmem:[#allocation5 + $0x1f8] sm:$0xff]
    %v185 = vld [vmem:[#allocation5 + $0x200] sm:$0xff]
    %v186 = vld [vmem:[#allocation5 + $0x208] sm:$0xff]
    %v187 = vld [vmem:[#allocation5 + $0x210] sm:$0xff]
    %v188 = vld [vmem:[#allocation5 + $0x218] sm:$0xff]
    %v189 = vld [vmem:[#allocation5 + $0x220] sm:$0xff]
    %v190 = vld [vmem:[#allocation5 + $0x228] sm:$0xff]
    %v191 = vld [vmem:[#allocation5 + $0x230] sm:$0xff]
    %v192 = vld [vmem:[#allocation5 + $0x238] sm:$0xff]
    %v193 = vld [vmem:[#allocation5 + $0x240] sm:$0xff]
    %v194 = vld [vmem:[#allocation5 + $0x248] sm:$0xff]
    %v195 = vld [vmem:[#allocation5 + $0x250] sm:$0xff]
    %v196 = vld [vmem:[#allocation5 + $0x258] sm:$0xff]
    %v197 = vld [vmem:[#allocation5 + $0x260] sm:$0xff]
    %v198 = vld [vmem:[#allocation5 + $0x268] sm:$0xff]
    %v199 = vld [vmem:[#allocation5 + $0x270] sm:$0xff]
    %v200 = vld [vmem:[#allocation5 + $0x278] sm:$0xff]
    %v201 = vld [vmem:[#allocation5 + $0x280] sm:$0xff]
    %v202 = vld [vmem:[#allocation5 + $0x288] sm:$0xff]
    %v203 = vld [vmem:[#allocation5 + $0x290] sm:$0xff]
    %v204 = vld [vmem:[#allocation5 + $0x298] sm:$0xff]
    %v205 = vld [vmem:[#allocation5 + $0x2a0] sm:$0xff]
    %v206 = vld [vmem:[#allocation5 + $0x2a8] sm:$0xff]
    %v207 = vld [vmem:[#allocation5 + $0x2b0] sm:$0xff]
    %v208 = vld [vmem:[#allocation5 + $0x2b8] sm:$0xff]
    %v209 = vld [vmem:[#allocation5 + $0x2c0] sm:$0xff]
    %v210 = vld [vmem:[#allocation5 + $0x2c8] sm:$0xff]
    %v211 = vld [vmem:[#allocation5 + $0x2d0] sm:$0xff]
    %v212 = vld [vmem:[#allocation5 + $0x2d8] sm:$0xff]
    %v213 = vld [vmem:[#allocation5 + $0x2e0] sm:$0xff]
    %v214 = vld [vmem:[#allocation5 + $0x2e8] sm:$0xff]
    %v215 = vld [vmem:[#allocation5 + $0x2f0] sm:$0xff]
    %v216 = vld [vmem:[#allocation5 + $0x2f8] sm:$0xff]
    %v217 = vld [vmem:[#allocation5 + $0x300] sm:$0xff]
    %v218 = vld [vmem:[#allocation5 + $0x308] sm:$0xff]
    %v219 = vld [vmem:[#allocation5 + $0x310] sm:$0xff]
    %v220 = vld [vmem:[#allocation5 + $0x318] sm:$0xff]
    %v221 = vld [vmem:[#allocation5 + $0x320] sm:$0xff]
    %v222 = vld [vmem:[#allocation5 + $0x328] sm:$0xff]
    %v223 = vld [vmem:[#allocation5 + $0x330] sm:$0xff]
    %v224 = vld [vmem:[#allocation5 + $0x338] sm:$0xff]
    %v225 = vld [vmem:[#allocation5 + $0x340] sm:$0xff]
    %v226 = vld [vmem:[#allocation5 + $0x348] sm:$0xff]
    %v227 = vld [vmem:[#allocation5 + $0x350] sm:$0xff]
    %v228 = vld [vmem:[#allocation5 + $0x358] sm:$0xff]
    %v229 = vld [vmem:[#allocation5 + $0x360] sm:$0xff]
    %v230 = vld [vmem:[#allocation5 + $0x368] sm:$0xff]
    %v231 = vld [vmem:[#allocation5 + $0x370] sm:$0xff]
    %v232 = vld [vmem:[#allocation5 + $0x378] sm:$0xff]
    %v233 = vld [vmem:[#allocation5 + $0x380] sm:$0xff]
    %v234 = vld [vmem:[#allocation5 + $0x388] sm:$0xff]
    %v235 = vld [vmem:[#allocation5 + $0x390] sm:$0xff]
    %v236 = vld [vmem:[#allocation5 + $0x398] sm:$0xff]
    %v237 = vld [vmem:[#allocation5 + $0x3a0] sm:$0xff]
    %v238 = vld [vmem:[#allocation5 + $0x3a8] sm:$0xff]
    %v239 = vld [vmem:[#allocation5 + $0x3b0] sm:$0xff]
    %v240 = vld [vmem:[#allocation5 + $0x3b8] sm:$0xff]
    %v241 = vld [vmem:[#allocation5 + $0x3c0] sm:$0xff]
    %v242 = vld [vmem:[#allocation5 + $0x3c8] sm:$0xff]
    %v243 = vld [vmem:[#allocation5 + $0x3d0] sm:$0xff]
    %v244 = vld [vmem:[#allocation5 + $0x3d8] sm:$0xff]
    %v245 = vld [vmem:[#allocation5 + $0x3e0] sm:$0xff]
    %v246 = vld [vmem:[#allocation5 + $0x3e8] sm:$0xff]
    %v247 = vld [vmem:[#allocation5 + $0x3f0] sm:$0xff]
    %v248 = vld [vmem:[#allocation5 + $0x3f8] sm:$0xff]
    %v377 = vunpack.c.l.b16 %v121
    %v378 = vunpack.c.h.b16 %v121
    %v379 = vunpack.c.l.b16 %v122
    %v380 = vunpack.c.h.b16 %v122
    %v381 = vunpack.c.l.b16 %v123
    %v382 = vunpack.c.h.b16 %v123
    %v383 = vunpack.c.l.b16 %v124
    %v384 = vunpack.c.h.b16 %v124
    %v385 = vunpack.c.l.b16 %v125
    %v386 = vunpack.c.h.b16 %v125
    %v387 = vunpack.c.l.b16 %v126
    %v388 = vunpack.c.h.b16 %v126
    %v389 = vunpack.c.l.b16 %v127
    %v390 = vunpack.c.h.b16 %v127
    %v391 = vunpack.c.l.b16 %v128
    %v392 = vunpack.c.h.b16 %v128
    %v393 = vunpack.c.l.b16 %v129
    %v394 = vunpack.c.h.b16 %v129
    %v395 = vunpack.c.l.b16 %v130
    %v396 = vunpack.c.h.b16 %v130
    %v397 = vunpack.c.l.b16 %v131
    %v398 = vunpack.c.h.b16 %v131
    %v399 = vunpack.c.l.b16 %v132
    %v400 = vunpack.c.h.b16 %v132
    %v401 = vunpack.c.l.b16 %v133
    %v402 = vunpack.c.h.b16 %v133
    %v403 = vunpack.c.l.b16 %v134
    %v404 = vunpack.c.h.b16 %v134
    %v405 = vunpack.c.l.b16 %v135
    %v406 = vunpack.c.h.b16 %v135
    %v407 = vunpack.c.l.b16 %v136
    %v408 = vunpack.c.h.b16 %v136
    %v409 = vunpack.c.l.b16 %v137
    %v410 = vunpack.c.h.b16 %v137
    %v411 = vunpack.c.l.b16 %v138
    %v412 = vunpack.c.h.b16 %v138
    %v413 = vunpack.c.l.b16 %v139
    %v414 = vunpack.c.h.b16 %v139
    %v415 = vunpack.c.l.b16 %v140
    %v416 = vunpack.c.h.b16 %v140
    %v417 = vunpack.c.l.b16 %v141
    %v418 = vunpack.c.h.b16 %v141
    %v419 = vunpack.c.l.b16 %v142
    %v420 = vunpack.c.h.b16 %v142
    %v421 = vunpack.c.l.b16 %v143
    %v422 = vunpack.c.h.b16 %v143
    %v423 = vunpack.c.l.b16 %v144
    %v424 = vunpack.c.h.b16 %v144
    %v425 = vunpack.c.l.b16 %v145
    %v426 = vunpack.c.h.b16 %v145
    %v427 = vunpack.c.l.b16 %v146
    %v428 = vunpack.c.h.b16 %v146
    %v429 = vunpack.c.l.b16 %v147
    %v430 = vunpack.c.h.b16 %v147
    %v431 = vunpack.c.l.b16 %v148
    %v432 = vunpack.c.h.b16 %v148
    %v433 = vunpack.c.l.b16 %v149
    %v434 = vunpack.c.h.b16 %v149
    %v435 = vunpack.c.l.b16 %v150
    %v436 = vunpack.c.h.b16 %v150
    %v437 = vunpack.c.l.b16 %v151
    %v438 = vunpack.c.h.b16 %v151
    %v439 = vunpack.c.l.b16 %v152
    %v440 = vunpack.c.h.b16 %v152
    %v441 = vunpack.c.l.b16 %v153
    %v442 = vunpack.c.h.b16 %v153
    %v443 = vunpack.c.l.b16 %v154
    %v444 = vunpack.c.h.b16 %v154
    %v445 = vunpack.c.l.b16 %v155
    %v446 = vunpack.c.h.b16 %v155
    %v447 = vunpack.c.l.b16 %v156
    %v448 = vunpack.c.h.b16 %v156
    %v449 = vunpack.c.l.b16 %v157
    %v450 = vunpack.c.h.b16 %v157
    %v451 = vunpack.c.l.b16 %v158
    %v452 = vunpack.c.h.b16 %v158
    %v453 = vunpack.c.l.b16 %v159
    %v454 = vunpack.c.h.b16 %v159
    %v455 = vunpack.c.l.b16 %v160
    %v456 = vunpack.c.h.b16 %v160
    %v457 = vunpack.c.l.b16 %v161
    %v458 = vunpack.c.h.b16 %v161
    %v459 = vunpack.c.l.b16 %v162
    %v460 = vunpack.c.h.b16 %v162
    %v461 = vunpack.c.l.b16 %v163
    %v462 = vunpack.c.h.b16 %v163
    %v463 = vunpack.c.l.b16 %v164
    %v464 = vunpack.c.h.b16 %v164
    %v465 = vunpack.c.l.b16 %v165
    %v466 = vunpack.c.h.b16 %v165
    %v467 = vunpack.c.l.b16 %v166
    %v468 = vunpack.c.h.b16 %v166
    %v469 = vunpack.c.l.b16 %v167
    %v470 = vunpack.c.h.b16 %v167
    %v471 = vunpack.c.l.b16 %v168
    %v472 = vunpack.c.h.b16 %v168
    %v473 = vunpack.c.l.b16 %v169
    %v474 = vunpack.c.h.b16 %v169
    %v475 = vunpack.c.l.b16 %v170
    %v476 = vunpack.c.h.b16 %v170
    %v477 = vunpack.c.l.b16 %v171
    %v478 = vunpack.c.h.b16 %v171
    %v479 = vunpack.c.l.b16 %v172
    %v480 = vunpack.c.h.b16 %v172
    %v481 = vunpack.c.l.b16 %v173
    %v482 = vunpack.c.h.b16 %v173
    %v483 = vunpack.c.l.b16 %v174
    %v484 = vunpack.c.h.b16 %v174
    %v485 = vunpack.c.l.b16 %v175
    %v486 = vunpack.c.h.b16 %v175
    %v487 = vunpack.c.l.b16 %v176
    %v488 = vunpack.c.h.b16 %v176
    %v489 = vunpack.c.l.b16 %v177
    %v490 = vunpack.c.h.b16 %v177
    %v491 = vunpack.c.l.b16 %v178
    %v492 = vunpack.c.h.b16 %v178
    %v493 = vunpack.c.l.b16 %v179
    %v494 = vunpack.c.h.b16 %v179
    %v495 = vunpack.c.l.b16 %v180
    %v496 = vunpack.c.h.b16 %v180
    %v497 = vunpack.c.l.b16 %v181
    %v498 = vunpack.c.h.b16 %v181
    %v499 = vunpack.c.l.b16 %v182
    %v500 = vunpack.c.h.b16 %v182
    %v501 = vunpack.c.l.b16 %v183
    %v502 = vunpack.c.h.b16 %v183
    %v503 = vunpack.c.l.b16 %v184
    %v504 = vunpack.c.h.b16 %v184
    %v505 = vunpack.c.l.b16 %v185
    %v506 = vunpack.c.h.b16 %v185
    %v507 = vunpack.c.l.b16 %v186
    %v508 = vunpack.c.h.b16 %v186
    %v509 = vunpack.c.l.b16 %v187
    %v510 = vunpack.c.h.b16 %v187
    %v511 = vunpack.c.l.b16 %v188
    %v512 = vunpack.c.h.b16 %v188
    %v513 = vunpack.c.l.b16 %v189
    %v514 = vunpack.c.h.b16 %v189
    %v515 = vunpack.c.l.b16 %v190
    %v516 = vunpack.c.h.b16 %v190
    %v517 = vunpack.c.l.b16 %v191
    %v518 = vunpack.c.h.b16 %v191
    %v519 = vunpack.c.l.b16 %v192
    %v520 = vunpack.c.h.b16 %v192
    %v521 = vunpack.c.l.b16 %v193
    %v522 = vunpack.c.h.b16 %v193
    %v523 = vunpack.c.l.b16 %v194
    %v524 = vunpack.c.h.b16 %v194
    %v525 = vunpack.c.l.b16 %v195
    %v526 = vunpack.c.h.b16 %v195
    %v527 = vunpack.c.l.b16 %v196
    %v528 = vunpack.c.h.b16 %v196
    %v529 = vunpack.c.l.b16 %v197
    %v530 = vunpack.c.h.b16 %v197
    %v531 = vunpack.c.l.b16 %v198
    %v532 = vunpack.c.h.b16 %v198
    %v533 = vunpack.c.l.b16 %v199
    %v534 = vunpack.c.h.b16 %v199
    %v535 = vunpack.c.l.b16 %v200
    %v536 = vunpack.c.h.b16 %v200
    %v537 = vunpack.c.l.b16 %v201
    %v538 = vunpack.c.h.b16 %v201
    %v539 = vunpack.c.l.b16 %v202
    %v540 = vunpack.c.h.b16 %v202
    %v541 = vunpack.c.l.b16 %v203
    %v542 = vunpack.c.h.b16 %v203
    %v543 = vunpack.c.l.b16 %v204
    %v544 = vunpack.c.h.b16 %v204
    %v545 = vunpack.c.l.b16 %v205
    %v546 = vunpack.c.h.b16 %v205
    %v547 = vunpack.c.l.b16 %v206
    %v548 = vunpack.c.h.b16 %v206
    %v549 = vunpack.c.l.b16 %v207
    %v550 = vunpack.c.h.b16 %v207
    %v551 = vunpack.c.l.b16 %v208
    %v552 = vunpack.c.h.b16 %v208
    %v553 = vunpack.c.l.b16 %v209
    %v554 = vunpack.c.h.b16 %v209
    %v555 = vunpack.c.l.b16 %v210
    %v556 = vunpack.c.h.b16 %v210
    %v557 = vunpack.c.l.b16 %v211
    %v558 = vunpack.c.h.b16 %v211
    %v559 = vunpack.c.l.b16 %v212
    %v560 = vunpack.c.h.b16 %v212
    %v561 = vunpack.c.l.b16 %v213
    %v562 = vunpack.c.h.b16 %v213
    %v563 = vunpack.c.l.b16 %v214
    %v564 = vunpack.c.h.b16 %v214
    %v565 = vunpack.c.l.b16 %v215
    %v566 = vunpack.c.h.b16 %v215
    %v567 = vunpack.c.l.b16 %v216
    %v568 = vunpack.c.h.b16 %v216
    %v569 = vunpack.c.l.b16 %v217
    %v570 = vunpack.c.h.b16 %v217
    %v571 = vunpack.c.l.b16 %v218
    %v572 = vunpack.c.h.b16 %v218
    %v573 = vunpack.c.l.b16 %v219
    %v574 = vunpack.c.h.b16 %v219
    %v575 = vunpack.c.l.b16 %v220
    %v576 = vunpack.c.h.b16 %v220
    %v577 = vunpack.c.l.b16 %v221
    %v578 = vunpack.c.h.b16 %v221
    %v579 = vunpack.c.l.b16 %v222
    %v580 = vunpack.c.h.b16 %v222
    %v581 = vunpack.c.l.b16 %v223
    %v582 = vunpack.c.h.b16 %v223
    %v583 = vunpack.c.l.b16 %v224
    %v584 = vunpack.c.h.b16 %v224
    %v585 = vunpack.c.l.b16 %v225
    %v586 = vunpack.c.h.b16 %v225
    %v587 = vunpack.c.l.b16 %v226
    %v588 = vunpack.c.h.b16 %v226
    %v589 = vunpack.c.l.b16 %v227
    %v590 = vunpack.c.h.b16 %v227
    %v591 = vunpack.c.l.b16 %v228
    %v592 = vunpack.c.h.b16 %v228
    %v593 = vunpack.c.l.b16 %v229
    %v594 = vunpack.c.h.b16 %v229
    %v595 = vunpack.c.l.b16 %v230
    %v596 = vunpack.c.h.b16 %v230
    %v597 = vunpack.c.l.b16 %v231
    %v598 = vunpack.c.h.b16 %v231
    %v599 = vunpack.c.l.b16 %v232
    %v600 = vunpack.c.h.b16 %v232
    %v601 = vunpack.c.l.b16 %v233
    %v602 = vunpack.c.h.b16 %v233
    %v603 = vunpack.c.l.b16 %v234
    %v604 = vunpack.c.h.b16 %v234
    %v605 = vunpack.c.l.b16 %v235
    %v606 = vunpack.c.h.b16 %v235
    %v607 = vunpack.c.l.b16 %v236
    %v608 = vunpack.c.h.b16 %v236
    %v609 = vunpack.c.l.b16 %v237
    %v610 = vunpack.c.h.b16 %v237
    %v611 = vunpack.c.l.b16 %v238
    %v612 = vunpack.c.h.b16 %v238
    %v613 = vunpack.c.l.b16 %v239
    %v614 = vunpack.c.h.b16 %v239
    %v615 = vunpack.c.l.b16 %v240
    %v616 = vunpack.c.h.b16 %v240
    %v617 = vunpack.c.l.b16 %v241
    %v618 = vunpack.c.h.b16 %v241
    %v619 = vunpack.c.l.b16 %v242
    %v620 = vunpack.c.h.b16 %v242
    %v621 = vunpack.c.l.b16 %v243
    %v622 = vunpack.c.h.b16 %v243
    %v623 = vunpack.c.l.b16 %v244
    %v624 = vunpack.c.h.b16 %v244
    %v625 = vunpack.c.l.b16 %v245
    %v626 = vunpack.c.h.b16 %v245
    %v627 = vunpack.c.l.b16 %v246
    %v628 = vunpack.c.h.b16 %v246
    %v629 = vunpack.c.l.b16 %v247
    %v630 = vunpack.c.h.b16 %v247
    %v631 = vunpack.c.l.b16 %v248
    %v632 = vunpack.c.h.b16 %v248
    %v633 = vpack.c.b16 %v385, %v377
    %v634 = vpack.c.b16 %v386, %v378
    %v635 = vpack.c.b16 %v387, %v379
    %v636 = vpack.c.b16 %v388, %v380
    %v637 = vpack.c.b16 %v389, %v381
    %v638 = vpack.c.b16 %v390, %v382
    %v639 = vpack.c.b16 %v391, %v383
    %v640 = vpack.c.b16 %v392, %v384
    %v641 = vpack.c.b16 %v401, %v393
    %v642 = vpack.c.b16 %v402, %v394
    %v643 = vpack.c.b16 %v403, %v395
    %v644 = vpack.c.b16 %v404, %v396
    %v645 = vpack.c.b16 %v405, %v397
    %v646 = vpack.c.b16 %v406, %v398
    %v647 = vpack.c.b16 %v407, %v399
    %v648 = vpack.c.b16 %v408, %v400
    %v649 = vpack.c.b16 %v417, %v409
    %v650 = vpack.c.b16 %v418, %v410
    %v651 = vpack.c.b16 %v419, %v411
    %v652 = vpack.c.b16 %v420, %v412
    %v653 = vpack.c.b16 %v421, %v413
    %v654 = vpack.c.b16 %v422, %v414
    %v655 = vpack.c.b16 %v423, %v415
    %v656 = vpack.c.b16 %v424, %v416
    %v657 = vpack.c.b16 %v433, %v425
    %v658 = vpack.c.b16 %v434, %v426
    %v659 = vpack.c.b16 %v435, %v427
    %v660 = vpack.c.b16 %v436, %v428
    %v661 = vpack.c.b16 %v437, %v429
    %v662 = vpack.c.b16 %v438, %v430
    %v663 = vpack.c.b16 %v439, %v431
    %v664 = vpack.c.b16 %v440, %v432
    %v665 = vpack.c.b16 %v449, %v441
    %v666 = vpack.c.b16 %v450, %v442
    %v667 = vpack.c.b16 %v451, %v443
    %v668 = vpack.c.b16 %v452, %v444
    %v669 = vpack.c.b16 %v453, %v445
    %v670 = vpack.c.b16 %v454, %v446
    %v671 = vpack.c.b16 %v455, %v447
    %v672 = vpack.c.b16 %v456, %v448
    %v673 = vpack.c.b16 %v465, %v457
    %v674 = vpack.c.b16 %v466, %v458
    %v675 = vpack.c.b16 %v467, %v459
    %v676 = vpack.c.b16 %v468, %v460
    %v677 = vpack.c.b16 %v469, %v461
    %v678 = vpack.c.b16 %v470, %v462
    %v679 = vpack.c.b16 %v471, %v463
    %v680 = vpack.c.b16 %v472, %v464
    %v681 = vpack.c.b16 %v481, %v473
    %v682 = vpack.c.b16 %v482, %v474
    %v683 = vpack.c.b16 %v483, %v475
    %v684 = vpack.c.b16 %v484, %v476
    %v685 = vpack.c.b16 %v485, %v477
    %v686 = vpack.c.b16 %v486, %v478
    %v687 = vpack.c.b16 %v487, %v479
    %v688 = vpack.c.b16 %v488, %v480
    %v689 = vpack.c.b16 %v497, %v489
    %v690 = vpack.c.b16 %v498, %v490
    %v691 = vpack.c.b16 %v499, %v491
    %v692 = vpack.c.b16 %v500, %v492
    %v693 = vpack.c.b16 %v501, %v493
    %v694 = vpack.c.b16 %v502, %v494
    %v695 = vpack.c.b16 %v503, %v495
    %v696 = vpack.c.b16 %v504, %v496
    %v697 = vpack.c.b16 %v513, %v505
    %v698 = vpack.c.b16 %v514, %v506
    %v699 = vpack.c.b16 %v515, %v507
    %v700 = vpack.c.b16 %v516, %v508
    %v701 = vpack.c.b16 %v517, %v509
    %v702 = vpack.c.b16 %v518, %v510
    %v703 = vpack.c.b16 %v519, %v511
    %v704 = vpack.c.b16 %v520, %v512
    %v705 = vpack.c.b16 %v529, %v521
    %v706 = vpack.c.b16 %v530, %v522
    %v707 = vpack.c.b16 %v531, %v523
    %v708 = vpack.c.b16 %v532, %v524
    %v709 = vpack.c.b16 %v533, %v525
    %v710 = vpack.c.b16 %v534, %v526
    %v711 = vpack.c.b16 %v535, %v527
    %v712 = vpack.c.b16 %v536, %v528
    %v713 = vpack.c.b16 %v545, %v537
    %v714 = vpack.c.b16 %v546, %v538
    %v715 = vpack.c.b16 %v547, %v539
    %v716 = vpack.c.b16 %v548, %v540
    %v717 = vpack.c.b16 %v549, %v541
    %v718 = vpack.c.b16 %v550, %v542
    %v719 = vpack.c.b16 %v551, %v543
    %v720 = vpack.c.b16 %v552, %v544
    %v721 = vpack.c.b16 %v561, %v553
    %v722 = vpack.c.b16 %v562, %v554
    %v723 = vpack.c.b16 %v563, %v555
    %v724 = vpack.c.b16 %v564, %v556
    %v725 = vpack.c.b16 %v565, %v557
    %v726 = vpack.c.b16 %v566, %v558
    %v727 = vpack.c.b16 %v567, %v559
    %v728 = vpack.c.b16 %v568, %v560
    %v729 = vpack.c.b16 %v577, %v569
    %v730 = vpack.c.b16 %v578, %v570
    %v731 = vpack.c.b16 %v579, %v571
    %v732 = vpack.c.b16 %v580, %v572
    %v733 = vpack.c.b16 %v581, %v573
    %v734 = vpack.c.b16 %v582, %v574
    %v735 = vpack.c.b16 %v583, %v575
    %v736 = vpack.c.b16 %v584, %v576
    %v737 = vpack.c.b16 %v593, %v585
    %v738 = vpack.c.b16 %v594, %v586
    %v739 = vpack.c.b16 %v595, %v587
    %v740 = vpack.c.b16 %v596, %v588
    %v741 = vpack.c.b16 %v597, %v589
    %v742 = vpack.c.b16 %v598, %v590
    %v743 = vpack.c.b16 %v599, %v591
    %v744 = vpack.c.b16 %v600, %v592
    %v745 = vpack.c.b16 %v609, %v601
    %v746 = vpack.c.b16 %v610, %v602
    %v747 = vpack.c.b16 %v611, %v603
    %v748 = vpack.c.b16 %v612, %v604
    %v749 = vpack.c.b16 %v613, %v605
    %v750 = vpack.c.b16 %v614, %v606
    %v751 = vpack.c.b16 %v615, %v607
    %v752 = vpack.c.b16 %v616, %v608
    %v753 = vpack.c.b16 %v625, %v617
    %v754 = vpack.c.b16 %v626, %v618
    %v755 = vpack.c.b16 %v627, %v619
    %v756 = vpack.c.b16 %v628, %v620
    %v757 = vpack.c.b16 %v629, %v621
    %v758 = vpack.c.b16 %v630, %v622
    %v759 = vpack.c.b16 %v631, %v623
    %v760 = vpack.c.b16 %v632, %v624
    %889 = vmatpush.bf16.msra.mxu0 %v689
    %890 = vmatpush.bf16.msra.mxu0 %v681
    %891 = vmatpush.bf16.msra.mxu0 %v673
    %892 = vmatpush.bf16.msra.mxu0 %v665
    %893 = vmatpush.bf16.msra.mxu0 %v657
    %894 = vmatpush.bf16.msra.mxu0 %v649
    %895 = vmatpush.bf16.msra.mxu0 %v641
    %896 = vmatpush.bf16.msra.mxu0 %v633
    %897 = vmatmul.bf16.gmra.mxu0 0
    %v898 = vpop.f32.mrf.mxu0
    %v899 = vadd.f32 0.0, %v898
    %v900 = vpop.f32.mrf.mxu0
    %901 = vdwg.mxu0
    %902 = vmatpush.bf16.msra.mxu0 %v753
    %903 = vmatpush.bf16.msra.mxu0 %v745
    %904 = vmatpush.bf16.msra.mxu0 %v737
    %905 = vmatpush.bf16.msra.mxu0 %v729
    %906 = vmatpush.bf16.msra.mxu0 %v721
    %907 = vmatpush.bf16.msra.mxu0 %v713
    %908 = vmatpush.bf16.msra.mxu0 %v705
    %909 = vmatpush.bf16.msra.mxu0 %v697
    %910 = vmatmul.bf16.gmra.mxu0 0
    %v911 = vpop.f32.mrf.mxu0
    %v912 = vadd.f32 %v899, %v911
    %v913 = vpop.f32.mrf.mxu0
    %914 = vdwg.mxu0
    %915 = vmatpush.bf16.msra.mxu0 %v690
    %916 = vmatpush.bf16.msra.mxu0 %v682
    %917 = vmatpush.bf16.msra.mxu0 %v674
    %918 = vmatpush.bf16.msra.mxu0 %v666
    %919 = vmatpush.bf16.msra.mxu0 %v658
    %920 = vmatpush.bf16.msra.mxu0 %v650
    %921 = vmatpush.bf16.msra.mxu0 %v642
    %922 = vmatpush.bf16.msra.mxu0 %v634
    %923 = vmatmul.bf16.gmra.mxu0 0
    %v924 = vpop.f32.mrf.mxu0
    %v925 = vadd.f32 0.0, %v924
    %v926 = vpop.f32.mrf.mxu0
    %927 = vdwg.mxu0
    %928 = vmatpush.bf16.msra.mxu0 %v754
    %929 = vmatpush.bf16.msra.mxu0 %v746
    %930 = vmatpush.bf16.msra.mxu0 %v738
    %931 = vmatpush.bf16.msra.mxu0 %v730
    %932 = vmatpush.bf16.msra.mxu0 %v722
    %933 = vmatpush.bf16.msra.mxu0 %v714
    %934 = vmatpush.bf16.msra.mxu0 %v706
    %935 = vmatpush.bf16.msra.mxu0 %v698
    %936 = vmatmul.bf16.gmra.mxu0 0
    %v937 = vpop.f32.mrf.mxu0
    %v938 = vadd.f32 %v925, %v937
    %v939 = vpop.f32.mrf.mxu0
    %940 = vdwg.mxu0
    %941 = vmatpush.bf16.msra.mxu0 %v691
    %942 = vmatpush.bf16.msra.mxu0 %v683
    %943 = vmatpush.bf16.msra.mxu0 %v675
    %944 = vmatpush.bf16.msra.mxu0 %v667
    %945 = vmatpush.bf16.msra.mxu0 %v659
    %946 = vmatpush.bf16.msra.mxu0 %v651
    %947 = vmatpush.bf16.msra.mxu0 %v643
    %948 = vmatpush.bf16.msra.mxu0 %v635
    %949 = vmatmul.bf16.gmra.mxu0 0
    %v950 = vpop.f32.mrf.mxu0
    %v951 = vadd.f32 0.0, %v950
    %v952 = vpop.f32.mrf.mxu0
    %953 = vdwg.mxu0
    %954 = vmatpush.bf16.msra.mxu0 %v755
    %955 = vmatpush.bf16.msra.mxu0 %v747
    %956 = vmatpush.bf16.msra.mxu0 %v739
    %957 = vmatpush.bf16.msra.mxu0 %v731
    %958 = vmatpush.bf16.msra.mxu0 %v723
    %959 = vmatpush.bf16.msra.mxu0 %v715
    %960 = vmatpush.bf16.msra.mxu0 %v707
    %961 = vmatpush.bf16.msra.mxu0 %v699
    %962 = vmatmul.bf16.gmra.mxu0 0
    %v963 = vpop.f32.mrf.mxu0
    %v964 = vadd.f32 %v951, %v963
    %v965 = vpop.f32.mrf.mxu0
    %966 = vdwg.mxu0
    %967 = vmatpush.bf16.msra.mxu0 %v692
    %968 = vmatpush.bf16.msra.mxu0 %v684
    %969 = vmatpush.bf16.msra.mxu0 %v676
    %970 = vmatpush.bf16.msra.mxu0 %v668
    %971 = vmatpush.bf16.msra.mxu0 %v660
    %972 = vmatpush.bf16.msra.mxu0 %v652
    %973 = vmatpush.bf16.msra.mxu0 %v644
    %974 = vmatpush.bf16.msra.mxu0 %v636
    %975 = vmatmul.bf16.gmra.mxu0 0
    %v976 = vpop.f32.mrf.mxu0
    %v977 = vadd.f32 0.0, %v976
    %v978 = vpop.f32.mrf.mxu0
    %979 = vdwg.mxu0
    %980 = vmatpush.bf16.msra.mxu0 %v756
    %981 = vmatpush.bf16.msra.mxu0 %v748
    %982 = vmatpush.bf16.msra.mxu0 %v740
    %983 = vmatpush.bf16.msra.mxu0 %v732
    %984 = vmatpush.bf16.msra.mxu0 %v724
    %985 = vmatpush.bf16.msra.mxu0 %v716
    %986 = vmatpush.bf16.msra.mxu0 %v708
    %987 = vmatpush.bf16.msra.mxu0 %v700
    %988 = vmatmul.bf16.gmra.mxu0 0
    %v989 = vpop.f32.mrf.mxu0
    %v990 = vadd.f32 %v977, %v989
    %v991 = vpop.f32.mrf.mxu0
    %992 = vdwg.mxu0
    %993 = vmatpush.bf16.msra.mxu0 %v693
    %994 = vmatpush.bf16.msra.mxu0 %v685
    %995 = vmatpush.bf16.msra.mxu0 %v677
    %996 = vmatpush.bf16.msra.mxu0 %v669
    %997 = vmatpush.bf16.msra.mxu0 %v661
    %998 = vmatpush.bf16.msra.mxu0 %v653
    %999 = vmatpush.bf16.msra.mxu0 %v645
    %1000 = vmatpush.bf16.msra.mxu0 %v637
    %1001 = vmatmul.bf16.gmra.mxu0 0
    %v1002 = vpop.f32.mrf.mxu0
    %v1003 = vadd.f32 0.0, %v1002
    %v1004 = vpop.f32.mrf.mxu0
    %1005 = vdwg.mxu0
    %1006 = vmatpush.bf16.msra.mxu0 %v757
    %1007 = vmatpush.bf16.msra.mxu0 %v749
    %1008 = vmatpush.bf16.msra.mxu0 %v741
    %1009 = vmatpush.bf16.msra.mxu0 %v733
    %1010 = vmatpush.bf16.msra.mxu0 %v725
    %1011 = vmatpush.bf16.msra.mxu0 %v717
    %1012 = vmatpush.bf16.msra.mxu0 %v709
    %1013 = vmatpush.bf16.msra.mxu0 %v701
    %1014 = vmatmul.bf16.gmra.mxu0 0
    %v1015 = vpop.f32.mrf.mxu0
    %v1016 = vadd.f32 %v1003, %v1015
    %v1017 = vpop.f32.mrf.mxu0
    %1018 = vdwg.mxu0
    %1019 = vmatpush.bf16.msra.mxu0 %v694
    %1020 = vmatpush.bf16.msra.mxu0 %v686
    %1021 = vmatpush.bf16.msra.mxu0 %v678
    %1022 = vmatpush.bf16.msra.mxu0 %v670
    %1023 = vmatpush.bf16.msra.mxu0 %v662
    %1024 = vmatpush.bf16.msra.mxu0 %v654
    %1025 = vmatpush.bf16.msra.mxu0 %v646
    %1026 = vmatpush.bf16.msra.mxu0 %v638
    %1027 = vmatmul.bf16.gmra.mxu0 0
    %v1028 = vpop.f32.mrf.mxu0
    %v1029 = vadd.f32 0.0, %v1028
    %v1030 = vpop.f32.mrf.mxu0
    %1031 = vdwg.mxu0
    %1032 = vmatpush.bf16.msra.mxu0 %v758
    %1033 = vmatpush.bf16.msra.mxu0 %v750
    %1034 = vmatpush.bf16.msra.mxu0 %v742
    %1035 = vmatpush.bf16.msra.mxu0 %v734
    %1036 = vmatpush.bf16.msra.mxu0 %v726
    %1037 = vmatpush.bf16.msra.mxu0 %v718
    %1038 = vmatpush.bf16.msra.mxu0 %v710
    %1039 = vmatpush.bf16.msra.mxu0 %v702
    %1040 = vmatmul.bf16.gmra.mxu0 0
    %v1041 = vpop.f32.mrf.mxu0
    %v1042 = vadd.f32 %v1029, %v1041
    %v1043 = vpop.f32.mrf.mxu0
    %1044 = vdwg.mxu0
    %1045 = vmatpush.bf16.msra.mxu0 %v695
    %1046 = vmatpush.bf16.msra.mxu0 %v687
    %1047 = vmatpush.bf16.msra.mxu0 %v679
    %1048 = vmatpush.bf16.msra.mxu0 %v671
    %1049 = vmatpush.bf16.msra.mxu0 %v663
    %1050 = vmatpush.bf16.msra.mxu0 %v655
    %1051 = vmatpush.bf16.msra.mxu0 %v647
    %1052 = vmatpush.bf16.msra.mxu0 %v639
    %1053 = vmatmul.bf16.gmra.mxu0 0
    %v1054 = vpop.f32.mrf.mxu0
    %v1055 = vadd.f32 0.0, %v1054
    %v1056 = vpop.f32.mrf.mxu0
    %1057 = vdwg.mxu0
    %1058 = vmatpush.bf16.msra.mxu0 %v759
    %1059 = vmatpush.bf16.msra.mxu0 %v751
    %1060 = vmatpush.bf16.msra.mxu0 %v743
    %1061 = vmatpush.bf16.msra.mxu0 %v735
    %1062 = vmatpush.bf16.msra.mxu0 %v727
    %1063 = vmatpush.bf16.msra.mxu0 %v719
    %1064 = vmatpush.bf16.msra.mxu0 %v711
    %1065 = vmatpush.bf16.msra.mxu0 %v703
    %1066 = vmatmul.bf16.gmra.mxu0 0
    %v1067 = vpop.f32.mrf.mxu0
    %v1068 = vadd.f32 %v1055, %v1067
    %v1069 = vpop.f32.mrf.mxu0
    %1070 = vdwg.mxu0
    %1071 = vmatpush.bf16.msra.mxu0 %v696
    %1072 = vmatpush.bf16.msra.mxu0 %v688
    %1073 = vmatpush.bf16.msra.mxu0 %v680
    %1074 = vmatpush.bf16.msra.mxu0 %v672
    %1075 = vmatpush.bf16.msra.mxu0 %v664
    %1076 = vmatpush.bf16.msra.mxu0 %v656
    %1077 = vmatpush.bf16.msra.mxu0 %v648
    %1078 = vmatpush.bf16.msra.mxu0 %v640
    %1079 = vmatmul.bf16.gmra.mxu0 0
    %v1080 = vpop.f32.mrf.mxu0
    %v1081 = vadd.f32 0.0, %v1080
    %v1082 = vpop.f32.mrf.mxu0
    %1083 = vdwg.mxu0
    %1084 = vmatpush.bf16.msra.mxu0 %v760
    %1085 = vmatpush.bf16.msra.mxu0 %v752
    %1086 = vmatpush.bf16.msra.mxu0 %v744
    %1087 = vmatpush.bf16.msra.mxu0 %v736
    %1088 = vmatpush.bf16.msra.mxu0 %v728
    %1089 = vmatpush.bf16.msra.mxu0 %v720
    %1090 = vmatpush.bf16.msra.mxu0 %v712
    %1091 = vmatpush.bf16.msra.mxu0 %v704
    %1092 = vmatmul.bf16.gmra.mxu0 0
    %v1093 = vpop.f32.mrf.mxu0
    %v1094 = vadd.f32 %v1081, %v1093
    %v1095 = vpop.f32.mrf.mxu0
    %1096 = vdwg.mxu0
    %v1105 = vrot.slane %v938, 6
    %v1106 = vrot.slane %v964, 4
    %v1107 = vrot.slane %v990, 2
    %v1108 = vrot.slane %v1042, 6
    %v1109 = vrot.slane %v1068, 4
    %v1110 = vrot.slane %v1094, 2
    %vm1111 = vcmask 1041408
    %v1112 = vsel %vm1111, %v912, %v1105
    %vm1113 = vcmask 1045508
    %v1114 = vsel %vm1113, %v1106, %v1107
    %vm1115 = vcmask 1043456
    %v1116 = vsel %vm1115, %v1112, %v1114
    %v1117 = vsel %vm1111, %v1016, %v1108
    %v1118 = vsel %vm1113, %v1109, %v1110
    %v1119 = vsel %vm1115, %v1117, %v1118
    %v1122 = vadd.f32 %v119, %v1116
    %v1123 = vadd.f32 %v120, %v1119
    %v1132 = vrot.slane %v104, 6
    %v1133 = vrot.slane %v105, 4
    %v1134 = vrot.slane %v106, 2
    %v1135 = vrot.slane %v108, 6
    %v1136 = vrot.slane %v109, 4
    %v1137 = vrot.slane %v110, 2
    %v1138 = vsel %vm1111, %v103, %v1132
    %v1139 = vsel %vm1113, %v1133, %v1134
    %v1140 = vsel %vm1115, %v1138, %v1139
    %v1141 = vsel %vm1111, %v107, %v1135
    %v1142 = vsel %vm1113, %v1136, %v1137
    %v1143 = vsel %vm1115, %v1141, %v1142
    %v1146 = vmul.f32 %v1122, %v1140
    %v1147 = vmul.f32 %v1123, %v1143
    %v1148 = vtanh.pop %v1146
    %v1149 = vtanh.pop %v1147
    %v1150 = vmul.f32 %v1148, %v1140
    %v1151 = vmul.f32 %v1149, %v1143
    %v1160 = vrot.slane %v112, 6
    %v1161 = vrot.slane %v113, 4
    %v1162 = vrot.slane %v114, 2
    %v1163 = vrot.slane %v116, 6
    %v1164 = vrot.slane %v117, 4
    %v1165 = vrot.slane %v118, 2
    %v1166 = vsel %vm1111, %v111, %v1160
    %v1167 = vsel %vm1113, %v1161, %v1162
    %v1168 = vsel %vm1115, %v1166, %v1167
    %v1169 = vsel %vm1111, %v115, %v1163
    %v1170 = vsel %vm1113, %v1164, %v1165
    %v1171 = vsel %vm1115, %v1169, %v1170
    %v1174 = vadd.f32 %v1150, %v1168
    %v1175 = vadd.f32 %v1151, %v1171
    %v1177 = vrot.slane %v1174, 4
    %v1179 = vmul.f32 %v1177, 0.0
    %v1180 = vmul.f32 %v1174, %v1175
    %v1181 = vadd.f32 %v1179, %v1180
    %v1182 = vtanh.pop %v1181
    %v1184 = vrot.slane %v1175, 4
    %v1186 = vmul.f32 %v1184, %v1182
    %vm1187 = vcmp.gt.s32.totalorder %v69, 0
    %v1188 = vsel %vm1187, 1, 0
    %1189 = vset.pattern.permute.xlu0 0
    %1190 = vperm.xlu0 %1189, %v1188
    %v1191 = vpop.permute.xlu0 %1190
    %vm1192 = vcmp.eq.s32.totalorder %v1191, 1
    %1194 = vst [vmem:[#allocation1] ss:$4 sm:$0xff] %v1186
    %v1195 = vld.sshfl [vmem:[#allocation1] sm:$0xff pattern:$0x73625140]
    %v1196 = vld.sshfl [vmem:[#allocation1 + $0x8] sm:$0xff pattern:$0x73625140]
    %v1199 = vsel %vm1192, %v1195, 0.0
    %v1200 = vsel %vm1192, %v1196, 0.0
    %1202 = vst [vmem:[#allocation1] ss:$4 sm:$0xff] %v1181
    %v1203 = vld.sshfl [vmem:[#allocation1] sm:$0xff pattern:$0x73625140]
    %v1204 = vld.sshfl [vmem:[#allocation1 + $0x8] sm:$0xff pattern:$0x73625140]
    %v1207 = vsel %vm1192, %v1203, 0.0
    %v1208 = vsel %vm1192, %v1204, 0.0
    %s1209 = scalar_lea.vmem [#allocation2], 16
    %v1210 = vld [vmem:[%s1209] sm:$0xff]
    %v1211 = vld [vmem:[%s1209 + $0x8] sm:$0xff]
    %v1212 = vpack.c.bf16 %v1199, %v1199
    %v1213 = vpack.c.bf16 %v1200, %v1200
    %1214 = vmatpush.bf16.msra.mxu0 %v689
    %1215 = vmatpush.bf16.msra.mxu0 %v681
    %1216 = vmatpush.bf16.msra.mxu0 %v673
    %1217 = vmatpush.bf16.msra.mxu0 %v665
    %1218 = vmatpush.bf16.msra.mxu0 %v657
    %1219 = vmatpush.bf16.msra.mxu0 %v649
    %1220 = vmatpush.bf16.msra.mxu0 %v641
    %1221 = vmatpush.bf16.msra.mxu0 %v633
    %1222 = vmatmul.bf16.gmra.mxu0 %v1212
    %v1223 = vpop.f32.mrf.mxu0
    %v1224 = vadd.f32 0.0, %v1223
    %v1225 = vpop.f32.mrf.mxu0
    %1226 = vdwg.mxu0
    %1227 = vmatpush.bf16.msra.mxu0 %v753
    %1228 = vmatpush.bf16.msra.mxu0 %v745
    %1229 = vmatpush.bf16.msra.mxu0 %v737
    %1230 = vmatpush.bf16.msra.mxu0 %v729
    %1231 = vmatpush.bf16.msra.mxu0 %v721
    %1232 = vmatpush.bf16.msra.mxu0 %v713
    %1233 = vmatpush.bf16.msra.mxu0 %v705
    %1234 = vmatpush.bf16.msra.mxu0 %v697
    %1235 = vmatmul.bf16.gmra.mxu0 %v1213
    %v1236 = vpop.f32.mrf.mxu0
    %v1237 = vadd.f32 %v1224, %v1236
    %v1238 = vpop.f32.mrf.mxu0
    %1239 = vdwg.mxu0
    %1240 = vmatpush.bf16.msra.mxu0 %v690
    %1241 = vmatpush.bf16.msra.mxu0 %v682
    %1242 = vmatpush.bf16.msra.mxu0 %v674
    %1243 = vmatpush.bf16.msra.mxu0 %v666
    %1244 = vmatpush.bf16.msra.mxu0 %v658
    %1245 = vmatpush.bf16.msra.mxu0 %v650
    %1246 = vmatpush.bf16.msra.mxu0 %v642
    %1247 = vmatpush.bf16.msra.mxu0 %v634
    %1248 = vmatmul.bf16.gmra.mxu0 %v1212
    %v1249 = vpop.f32.mrf.mxu0
    %v1250 = vadd.f32 0.0, %v1249
    %v1251 = vpop.f32.mrf.mxu0
    %1252 = vdwg.mxu0
    %1253 = vmatpush.bf16.msra.mxu0 %v754
    %1254 = vmatpush.bf16.msra.mxu0 %v746
    %1255 = vmatpush.bf16.msra.mxu0 %v738
    %1256 = vmatpush.bf16.msra.mxu0 %v730
    %1257 = vmatpush.bf16.msra.mxu0 %v722
    %1258 = vmatpush.bf16.msra.mxu0 %v714
    %1259 = vmatpush.bf16.msra.mxu0 %v706
    %1260 = vmatpush.bf16.msra.mxu0 %v698
    %1261 = vmatmul.bf16.gmra.mxu0 %v1213
    %v1262 = vpop.f32.mrf.mxu0
    %v1263 = vadd.f32 %v1250, %v1262
    %v1264 = vpop.f32.mrf.mxu0
    %1265 = vdwg.mxu0
    %1266 = vmatpush.bf16.msra.mxu0 %v691
    %1267 = vmatpush.bf16.msra.mxu0 %v683
    %1268 = vmatpush.bf16.msra.mxu0 %v675
    %1269 = vmatpush.bf16.msra.mxu0 %v667
    %1270 = vmatpush.bf16.msra.mxu0 %v659
    %1271 = vmatpush.bf16.msra.mxu0 %v651
    %1272 = vmatpush.bf16.msra.mxu0 %v643
    %1273 = vmatpush.bf16.msra.mxu0 %v635
    %1274 = vmatmul.bf16.gmra.mxu0 %v1212
    %v1275 = vpop.f32.mrf.mxu0
    %v1276 = vadd.f32 0.0, %v1275
    %v1277 = vpop.f32.mrf.mxu0
    %1278 = vdwg.mxu0
    %1279 = vmatpush.bf16.msra.mxu0 %v755
    %1280 = vmatpush.bf16.msra.mxu0 %v747
    %1281 = vmatpush.bf16.msra.mxu0 %v739
    %1282 = vmatpush.bf16.msra.mxu0 %v731
    %1283 = vmatpush.bf16.msra.mxu0 %v723
    %1284 = vmatpush.bf16.msra.mxu0 %v715
    %1285 = vmatpush.bf16.msra.mxu0 %v707
    %1286 = vmatpush.bf16.msra.mxu0 %v699
    %1287 = vmatmul.bf16.gmra.mxu0 %v1213
    %v1288 = vpop.f32.mrf.mxu0
    %v1289 = vadd.f32 %v1276, %v1288
    %v1290 = vpop.f32.mrf.mxu0
    %1291 = vdwg.mxu0
    %1292 = vmatpush.bf16.msra.mxu0 %v692
    %1293 = vmatpush.bf16.msra.mxu0 %v684
    %1294 = vmatpush.bf16.msra.mxu0 %v676
    %1295 = vmatpush.bf16.msra.mxu0 %v668
    %1296 = vmatpush.bf16.msra.mxu0 %v660
    %1297 = vmatpush.bf16.msra.mxu0 %v652
    %1298 = vmatpush.bf16.msra.mxu0 %v644
    %1299 = vmatpush.bf16.msra.mxu0 %v636
    %1300 = vmatmul.bf16.gmra.mxu0 %v1212
    %v1301 = vpop.f32.mrf.mxu0
    %v1302 = vadd.f32 0.0, %v1301
    %v1303 = vpop.f32.mrf.mxu0
    %1304 = vdwg.mxu0
    %1305 = vmatpush.bf16.msra.mxu0 %v756
    %1306 = vmatpush.bf16.msra.mxu0 %v748
    %1307 = vmatpush.bf16.msra.mxu0 %v740
    %1308 = vmatpush.bf16.msra.mxu0 %v732
    %1309 = vmatpush.bf16.msra.mxu0 %v724
    %1310 = vmatpush.bf16.msra.mxu0 %v716
    %1311 = vmatpush.bf16.msra.mxu0 %v708
    %1312 = vmatpush.bf16.msra.mxu0 %v700
    %1313 = vmatmul.bf16.gmra.mxu0 %v1213
    %v1314 = vpop.f32.mrf.mxu0
    %v1315 = vadd.f32 %v1302, %v1314
    %v1316 = vpop.f32.mrf.mxu0
    %1317 = vdwg.mxu0
    %1318 = vmatpush.bf16.msra.mxu0 %v693
    %1319 = vmatpush.bf16.msra.mxu0 %v685
    %1320 = vmatpush.bf16.msra.mxu0 %v677
    %1321 = vmatpush.bf16.msra.mxu0 %v669
    %1322 = vmatpush.bf16.msra.mxu0 %v661
    %1323 = vmatpush.bf16.msra.mxu0 %v653
    %1324 = vmatpush.bf16.msra.mxu0 %v645
    %1325 = vmatpush.bf16.msra.mxu0 %v637
    %1326 = vmatmul.bf16.gmra.mxu0 %v1212
    %v1327 = vpop.f32.mrf.mxu0
    %v1328 = vadd.f32 0.0, %v1327
    %v1329 = vpop.f32.mrf.mxu0
    %1330 = vdwg.mxu0
    %1331 = vmatpush.bf16.msra.mxu0 %v757
    %1332 = vmatpush.bf16.msra.mxu0 %v749
    %1333 = vmatpush.bf16.msra.mxu0 %v741
    %1334 = vmatpush.bf16.msra.mxu0 %v733
    %1335 = vmatpush.bf16.msra.mxu0 %v725
    %1336 = vmatpush.bf16.msra.mxu0 %v717
    %1337 = vmatpush.bf16.msra.mxu0 %v709
    %1338 = vmatpush.bf16.msra.mxu0 %v701
    %1339 = vmatmul.bf16.gmra.mxu0 %v1213
    %v1340 = vpop.f32.mrf.mxu0
    %v1341 = vadd.f32 %v1328, %v1340
    %v1342 = vpop.f32.mrf.mxu0
    %1343 = vdwg.mxu0
    %1344 = vmatpush.bf16.msra.mxu0 %v694
    %1345 = vmatpush.bf16.msra.mxu0 %v686
    %1346 = vmatpush.bf16.msra.mxu0 %v678
    %1347 = vmatpush.bf16.msra.mxu0 %v670
    %1348 = vmatpush.bf16.msra.mxu0 %v662
    %1349 = vmatpush.bf16.msra.mxu0 %v654
    %1350 = vmatpush.bf16.msra.mxu0 %v646
    %1351 = vmatpush.bf16.msra.mxu0 %v638
    %1352 = vmatmul.bf16.gmra.mxu0 %v1212
    %v1353 = vpop.f32.mrf.mxu0
    %v1354 = vadd.f32 0.0, %v1353
    %v1355 = vpop.f32.mrf.mxu0
    %1356 = vdwg.mxu0
    %1357 = vmatpush.bf16.msra.mxu0 %v758
    %1358 = vmatpush.bf16.msra.mxu0 %v750
    %1359 = vmatpush.bf16.msra.mxu0 %v742
    %1360 = vmatpush.bf16.msra.mxu0 %v734
    %1361 = vmatpush.bf16.msra.mxu0 %v726
    %1362 = vmatpush.bf16.msra.mxu0 %v718
    %1363 = vmatpush.bf16.msra.mxu0 %v710
    %1364 = vmatpush.bf16.msra.mxu0 %v702
    %1365 = vmatmul.bf16.gmra.mxu0 %v1213
    %v1366 = vpop.f32.mrf.mxu0
    %v1367 = vadd.f32 %v1354, %v1366
    %v1368 = vpop.f32.mrf.mxu0
    %1369 = vdwg.mxu0
    %1370 = vmatpush.bf16.msra.mxu0 %v695
    %1371 = vmatpush.bf16.msra.mxu0 %v687
    %1372 = vmatpush.bf16.msra.mxu0 %v679
    %1373 = vmatpush.bf16.msra.mxu0 %v671
    %1374 = vmatpush.bf16.msra.mxu0 %v663
    %1375 = vmatpush.bf16.msra.mxu0 %v655
    %1376 = vmatpush.bf16.msra.mxu0 %v647
    %1377 = vmatpush.bf16.msra.mxu0 %v639
    %1378 = vmatmul.bf16.gmra.mxu0 %v1212
    %v1379 = vpop.f32.mrf.mxu0
    %v1380 = vadd.f32 0.0, %v1379
    %v1381 = vpop.f32.mrf.mxu0
    %1382 = vdwg.mxu0
    %1383 = vmatpush.bf16.msra.mxu0 %v759
    %1384 = vmatpush.bf16.msra.mxu0 %v751
    %1385 = vmatpush.bf16.msra.mxu0 %v743
    %1386 = vmatpush.bf16.msra.mxu0 %v735
    %1387 = vmatpush.bf16.msra.mxu0 %v727
    %1388 = vmatpush.bf16.msra.mxu0 %v719
    %1389 = vmatpush.bf16.msra.mxu0 %v711
    %1390 = vmatpush.bf16.msra.mxu0 %v703
    %1391 = vmatmul.bf16.gmra.mxu0 %v1213
    %v1392 = vpop.f32.mrf.mxu0
    %v1393 = vadd.f32 %v1380, %v1392
    %v1394 = vpop.f32.mrf.mxu0
    %1395 = vdwg.mxu0
    %1396 = vmatpush.bf16.msra.mxu0 %v696
    %1397 = vmatpush.bf16.msra.mxu0 %v688
    %1398 = vmatpush.bf16.msra.mxu0 %v680
    %1399 = vmatpush.bf16.msra.mxu0 %v672
    %1400 = vmatpush.bf16.msra.mxu0 %v664
    %1401 = vmatpush.bf16.msra.mxu0 %v656
    %1402 = vmatpush.bf16.msra.mxu0 %v648
    %1403 = vmatpush.bf16.msra.mxu0 %v640
    %1404 = vmatmul.bf16.gmra.mxu0 %v1212
    %v1405 = vpop.f32.mrf.mxu0
    %v1406 = vadd.f32 0.0, %v1405
    %v1407 = vpop.f32.mrf.mxu0
    %1408 = vdwg.mxu0
    %1409 = vmatpush.bf16.msra.mxu0 %v760
    %1410 = vmatpush.bf16.msra.mxu0 %v752
    %1411 = vmatpush.bf16.msra.mxu0 %v744
    %1412 = vmatpush.bf16.msra.mxu0 %v736
    %1413 = vmatpush.bf16.msra.mxu0 %v728
    %1414 = vmatpush.bf16.msra.mxu0 %v720
    %1415 = vmatpush.bf16.msra.mxu0 %v712
    %1416 = vmatpush.bf16.msra.mxu0 %v704
    %1417 = vmatmul.bf16.gmra.mxu0 %v1213
    %v1418 = vpop.f32.mrf.mxu0
    %v1419 = vadd.f32 %v1406, %v1418
    %v1420 = vpop.f32.mrf.mxu0
    %1421 = vdwg.mxu0
    %v1430 = vrot.slane %v1263, 6
    %v1431 = vrot.slane %v1289, 4
    %v1432 = vrot.slane %v1315, 2
    %v1433 = vrot.slane %v1367, 6
    %v1434 = vrot.slane %v1393, 4
    %v1435 = vrot.slane %v1419, 2
    %v1436 = vsel %vm1111, %v1237, %v1430
    %v1437 = vsel %vm1113, %v1431, %v1432
    %v1438 = vsel %vm1115, %v1436, %v1437
    %v1439 = vsel %vm1111, %v1341, %v1433
    %v1440 = vsel %vm1113, %v1434, %v1435
    %v1441 = vsel %vm1115, %v1439, %v1440
    %v1444 = vadd.f32 %v1210, %v1438
    %v1445 = vadd.f32 %v1211, %v1441
    %v1446 = vmul.f32 %v1444, %v1140
    %v1447 = vmul.f32 %v1445, %v1143
    %v1448 = vtanh.pop %v1446
    %v1449 = vtanh.pop %v1447
    %v1450 = vmul.f32 %v1448, %v1140
    %v1451 = vmul.f32 %v1449, %v1143
    %v1452 = vadd.f32 %v1450, %v1168
    %v1453 = vadd.f32 %v1451, %v1171
    %v1455 = vrot.slane %v1452, 4
    %v1459 = vrot.slane %v1208, 6
    %v1460 = vsel %vm1111, %v1207, %v1459
    %v1462 = vmul.f32 %v1455, %v1460
    %v1463 = vmul.f32 %v1452, %v1453
    %v1464 = vadd.f32 %v1462, %v1463
    %v1465 = vtanh.pop %v1464
    %v1467 = vrot.slane %v1453, 4
    %v1469 = vmul.f32 %v1467, %v1465
    %vm1470 = vcmp.gt.s32.totalorder %v69, 1
    %v1471 = vsel %vm1470, 1, 0
    %1472 = vset.pattern.permute.xlu0 0
    %1473 = vperm.xlu0 %1472, %v1471
    %v1474 = vpop.permute.xlu0 %1473
    %vm1475 = vcmp.eq.s32.totalorder %v1474, 1
    %1477 = vst [vmem:[#allocation1] ss:$4 sm:$0xff] %v1469
    %v1478 = vld.sshfl [vmem:[#allocation1] sm:$0xff pattern:$0x73625140]
    %v1479 = vld.sshfl [vmem:[#allocation1 + $0x8] sm:$0xff pattern:$0x73625140]
    %v1482 = vsel %vm1475, %v1478, %v1199
    %v1483 = vsel %vm1475, %v1479, %v1200
    %1485 = vst [vmem:[#allocation1] ss:$4 sm:$0xff] %v1464
    %v1486 = vld.sshfl [vmem:[#allocation1] sm:$0xff pattern:$0x73625140]
    %v1487 = vld.sshfl [vmem:[#allocation1 + $0x8] sm:$0xff pattern:$0x73625140]
    %v1490 = vsel %vm1475, %v1486, %v1207
    %v1491 = vsel %vm1475, %v1487, %v1208
    %s1492 = scalar_lea.vmem [#allocation2], 32
    %v1493 = vld [vmem:[%s1492] sm:$0xff]
    %v1494 = vld [vmem:[%s1492 + $0x8] sm:$0xff]
    %v1495 = vpack.c.bf16 %v1482, %v1482
    %v1496 = vpack.c.bf16 %v1483, %v1483
    %1497 = vmatpush.bf16.msra.mxu0 %v689
    %1498 = vmatpush.bf16.msra.mxu0 %v681
    %1499 = vmatpush.bf16.msra.mxu0 %v673
    %1500 = vmatpush.bf16.msra.mxu0 %v665
    %1501 = vmatpush.bf16.msra.mxu0 %v657
    %1502 = vmatpush.bf16.msra.mxu0 %v649
    %1503 = vmatpush.bf16.msra.mxu0 %v641
    %1504 = vmatpush.bf16.msra.mxu0 %v633
    %1505 = vmatmul.bf16.gmra.mxu0 %v1495
    %v1506 = vpop.f32.mrf.mxu0
    %v1507 = vadd.f32 0.0, %v1506
    %v1508 = vpop.f32.mrf.mxu0
    %1509 = vdwg.mxu0
    %1510 = vmatpush.bf16.msra.mxu0 %v753
    %1511 = vmatpush.bf16.msra.mxu0 %v745
    %1512 = vmatpush.bf16.msra.mxu0 %v737
    %1513 = vmatpush.bf16.msra.mxu0 %v729
    %1514 = vmatpush.bf16.msra.mxu0 %v721
    %1515 = vmatpush.bf16.msra.mxu0 %v713
    %1516 = vmatpush.bf16.msra.mxu0 %v705
    %1517 = vmatpush.bf16.msra.mxu0 %v697
    %1518 = vmatmul.bf16.gmra.mxu0 %v1496
    %v1519 = vpop.f32.mrf.mxu0
    %v1520 = vadd.f32 %v1507, %v1519
    %v1521 = vpop.f32.mrf.mxu0
    %1522 = vdwg.mxu0
    %1523 = vmatpush.bf16.msra.mxu0 %v690
    %1524 = vmatpush.bf16.msra.mxu0 %v682
    %1525 = vmatpush.bf16.msra.mxu0 %v674
    %1526 = vmatpush.bf16.msra.mxu0 %v666
    %1527 = vmatpush.bf16.msra.mxu0 %v658
    %1528 = vmatpush.bf16.msra.mxu0 %v650
    %1529 = vmatpush.bf16.msra.mxu0 %v642
    %1530 = vmatpush.bf16.msra.mxu0 %v634
    %1531 = vmatmul.bf16.gmra.mxu0 %v1495
    %v1532 = vpop.f32.mrf.mxu0
    %v1533 = vadd.f32 0.0, %v1532
    %v1534 = vpop.f32.mrf.mxu0
    %1535 = vdwg.mxu0
    %1536 = vmatpush.bf16.msra.mxu0 %v754
    %1537 = vmatpush.bf16.msra.mxu0 %v746
    %1538 = vmatpush.bf16.msra.mxu0 %v738
    %1539 = vmatpush.bf16.msra.mxu0 %v730
    %1540 = vmatpush.bf16.msra.mxu0 %v722
    %1541 = vmatpush.bf16.msra.mxu0 %v714
    %1542 = vmatpush.bf16.msra.mxu0 %v706
    %1543 = vmatpush.bf16.msra.mxu0 %v698
    %1544 = vmatmul.bf16.gmra.mxu0 %v1496
    %v1545 = vpop.f32.mrf.mxu0
    %v1546 = vadd.f32 %v1533, %v1545
    %v1547 = vpop.f32.mrf.mxu0
    %1548 = vdwg.mxu0
    %1549 = vmatpush.bf16.msra.mxu0 %v691
    %1550 = vmatpush.bf16.msra.mxu0 %v683
    %1551 = vmatpush.bf16.msra.mxu0 %v675
    %1552 = vmatpush.bf16.msra.mxu0 %v667
    %1553 = vmatpush.bf16.msra.mxu0 %v659
    %1554 = vmatpush.bf16.msra.mxu0 %v651
    %1555 = vmatpush.bf16.msra.mxu0 %v643
    %1556 = vmatpush.bf16.msra.mxu0 %v635
    %1557 = vmatmul.bf16.gmra.mxu0 %v1495
    %v1558 = vpop.f32.mrf.mxu0
    %v1559 = vadd.f32 0.0, %v1558
    %v1560 = vpop.f32.mrf.mxu0
    %1561 = vdwg.mxu0
    %1562 = vmatpush.bf16.msra.mxu0 %v755
    %1563 = vmatpush.bf16.msra.mxu0 %v747
    %1564 = vmatpush.bf16.msra.mxu0 %v739
    %1565 = vmatpush.bf16.msra.mxu0 %v731
    %1566 = vmatpush.bf16.msra.mxu0 %v723
    %1567 = vmatpush.bf16.msra.mxu0 %v715
    %1568 = vmatpush.bf16.msra.mxu0 %v707
    %1569 = vmatpush.bf16.msra.mxu0 %v699
    %1570 = vmatmul.bf16.gmra.mxu0 %v1496
    %v1571 = vpop.f32.mrf.mxu0
    %v1572 = vadd.f32 %v1559, %v1571
    %v1573 = vpop.f32.mrf.mxu0
    %1574 = vdwg.mxu0
    %1575 = vmatpush.bf16.msra.mxu0 %v692
    %1576 = vmatpush.bf16.msra.mxu0 %v684
    %1577 = vmatpush.bf16.msra.mxu0 %v676
    %1578 = vmatpush.bf16.msra.mxu0 %v668
    %1579 = vmatpush.bf16.msra.mxu0 %v660
    %1580 = vmatpush.bf16.msra.mxu0 %v652
    %1581 = vmatpush.bf16.msra.mxu0 %v644
    %1582 = vmatpush.bf16.msra.mxu0 %v636
    %1583 = vmatmul.bf16.gmra.mxu0 %v1495
    %v1584 = vpop.f32.mrf.mxu0
    %v1585 = vadd.f32 0.0, %v1584
    %v1586 = vpop.f32.mrf.mxu0
    %1587 = vdwg.mxu0
    %1588 = vmatpush.bf16.msra.mxu0 %v756
    %1589 = vmatpush.bf16.msra.mxu0 %v748
    %1590 = vmatpush.bf16.msra.mxu0 %v740
    %1591 = vmatpush.bf16.msra.mxu0 %v732
    %1592 = vmatpush.bf16.msra.mxu0 %v724
    %1593 = vmatpush.bf16.msra.mxu0 %v716
    %1594 = vmatpush.bf16.msra.mxu0 %v708
    %1595 = vmatpush.bf16.msra.mxu0 %v700
    %1596 = vmatmul.bf16.gmra.mxu0 %v1496
    %v1597 = vpop.f32.mrf.mxu0
    %v1598 = vadd.f32 %v1585, %v1597
    %v1599 = vpop.f32.mrf.mxu0
    %1600 = vdwg.mxu0
    %1601 = vmatpush.bf16.msra.mxu0 %v693
    %1602 = vmatpush.bf16.msra.mxu0 %v685
    %1603 = vmatpush.bf16.msra.mxu0 %v677
    %1604 = vmatpush.bf16.msra.mxu0 %v669
    %1605 = vmatpush.bf16.msra.mxu0 %v661
    %1606 = vmatpush.bf16.msra.mxu0 %v653
    %1607 = vmatpush.bf16.msra.mxu0 %v645
    %1608 = vmatpush.bf16.msra.mxu0 %v637
    %1609 = vmatmul.bf16.gmra.mxu0 %v1495
    %v1610 = vpop.f32.mrf.mxu0
    %v1611 = vadd.f32 0.0, %v1610
    %v1612 = vpop.f32.mrf.mxu0
    %1613 = vdwg.mxu0
    %1614 = vmatpush.bf16.msra.mxu0 %v757
    %1615 = vmatpush.bf16.msra.mxu0 %v749
    %1616 = vmatpush.bf16.msra.mxu0 %v741
    %1617 = vmatpush.bf16.msra.mxu0 %v733
    %1618 = vmatpush.bf16.msra.mxu0 %v725
    %1619 = vmatpush.bf16.msra.mxu0 %v717
    %1620 = vmatpush.bf16.msra.mxu0 %v709
    %1621 = vmatpush.bf16.msra.mxu0 %v701
    %1622 = vmatmul.bf16.gmra.mxu0 %v1496
    %v1623 = vpop.f32.mrf.mxu0
    %v1624 = vadd.f32 %v1611, %v1623
    %v1625 = vpop.f32.mrf.mxu0
    %1626 = vdwg.mxu0
    %1627 = vmatpush.bf16.msra.mxu0 %v694
    %1628 = vmatpush.bf16.msra.mxu0 %v686
    %1629 = vmatpush.bf16.msra.mxu0 %v678
    %1630 = vmatpush.bf16.msra.mxu0 %v670
    %1631 = vmatpush.bf16.msra.mxu0 %v662
    %1632 = vmatpush.bf16.msra.mxu0 %v654
    %1633 = vmatpush.bf16.msra.mxu0 %v646
    %1634 = vmatpush.bf16.msra.mxu0 %v638
    %1635 = vmatmul.bf16.gmra.mxu0 %v1495
    %v1636 = vpop.f32.mrf.mxu0
    %v1637 = vadd.f32 0.0, %v1636
    %v1638 = vpop.f32.mrf.mxu0
    %1639 = vdwg.mxu0
    %1640 = vmatpush.bf16.msra.mxu0 %v758
    %1641 = vmatpush.bf16.msra.mxu0 %v750
    %1642 = vmatpush.bf16.msra.mxu0 %v742
    %1643 = vmatpush.bf16.msra.mxu0 %v734
    %1644 = vmatpush.bf16.msra.mxu0 %v726
    %1645 = vmatpush.bf16.msra.mxu0 %v718
    %1646 = vmatpush.bf16.msra.mxu0 %v710
    %1647 = vmatpush.bf16.msra.mxu0 %v702
    %1648 = vmatmul.bf16.gmra.mxu0 %v1496
    %v1649 = vpop.f32.mrf.mxu0
    %v1650 = vadd.f32 %v1637, %v1649
    %v1651 = vpop.f32.mrf.mxu0
    %1652 = vdwg.mxu0
    %1653 = vmatpush.bf16.msra.mxu0 %v695
    %1654 = vmatpush.bf16.msra.mxu0 %v687
    %1655 = vmatpush.bf16.msra.mxu0 %v679
    %1656 = vmatpush.bf16.msra.mxu0 %v671
    %1657 = vmatpush.bf16.msra.mxu0 %v663
    %1658 = vmatpush.bf16.msra.mxu0 %v655
    %1659 = vmatpush.bf16.msra.mxu0 %v647
    %1660 = vmatpush.bf16.msra.mxu0 %v639
    %1661 = vmatmul.bf16.gmra.mxu0 %v1495
    %v1662 = vpop.f32.mrf.mxu0
    %v1663 = vadd.f32 0.0, %v1662
    %v1664 = vpop.f32.mrf.mxu0
    %1665 = vdwg.mxu0
    %1666 = vmatpush.bf16.msra.mxu0 %v759
    %1667 = vmatpush.bf16.msra.mxu0 %v751
    %1668 = vmatpush.bf16.msra.mxu0 %v743
    %1669 = vmatpush.bf16.msra.mxu0 %v735
    %1670 = vmatpush.bf16.msra.mxu0 %v727
    %1671 = vmatpush.bf16.msra.mxu0 %v719
    %1672 = vmatpush.bf16.msra.mxu0 %v711
    %1673 = vmatpush.bf16.msra.mxu0 %v703
    %1674 = vmatmul.bf16.gmra.mxu0 %v1496
    %v1675 = vpop.f32.mrf.mxu0
    %v1676 = vadd.f32 %v1663, %v1675
    %v1677 = vpop.f32.mrf.mxu0
    %1678 = vdwg.mxu0
    %1679 = vmatpush.bf16.msra.mxu0 %v696
    %1680 = vmatpush.bf16.msra.mxu0 %v688
    %1681 = vmatpush.bf16.msra.mxu0 %v680
    %1682 = vmatpush.bf16.msra.mxu0 %v672
    %1683 = vmatpush.bf16.msra.mxu0 %v664
    %1684 = vmatpush.bf16.msra.mxu0 %v656
    %1685 = vmatpush.bf16.msra.mxu0 %v648
    %1686 = vmatpush.bf16.msra.mxu0 %v640
    %1687 = vmatmul.bf16.gmra.mxu0 %v1495
    %v1688 = vpop.f32.mrf.mxu0
    %v1689 = vadd.f32 0.0, %v1688
    %v1690 = vpop.f32.mrf.mxu0
    %1691 = vdwg.mxu0
    %1692 = vmatpush.bf16.msra.mxu0 %v760
    %1693 = vmatpush.bf16.msra.mxu0 %v752
    %1694 = vmatpush.bf16.msra.mxu0 %v744
    %1695 = vmatpush.bf16.msra.mxu0 %v736
    %1696 = vmatpush.bf16.msra.mxu0 %v728
    %1697 = vmatpush.bf16.msra.mxu0 %v720
    %1698 = vmatpush.bf16.msra.mxu0 %v712
    %1699 = vmatpush.bf16.msra.mxu0 %v704
    %1700 = vmatmul.bf16.gmra.mxu0 %v1496
    %v1701 = vpop.f32.mrf.mxu0
    %v1702 = vadd.f32 %v1689, %v1701
    %v1703 = vpop.f32.mrf.mxu0
    %1704 = vdwg.mxu0
    %v1713 = vrot.slane %v1546, 6
    %v1714 = vrot.slane %v1572, 4
    %v1715 = vrot.slane %v1598, 2
    %v1716 = vrot.slane %v1650, 6
    %v1717 = vrot.slane %v1676, 4
    %v1718 = vrot.slane %v1702, 2
    %v1719 = vsel %vm1111, %v1520, %v1713
    %v1720 = vsel %vm1113, %v1714, %v1715
    %v1721 = vsel %vm1115, %v1719, %v1720
    %v1722 = vsel %vm1111, %v1624, %v1716
    %v1723 = vsel %vm1113, %v1717, %v1718
    %v1724 = vsel %vm1115, %v1722, %v1723
    %v1727 = vadd.f32 %v1493, %v1721
    %v1728 = vadd.f32 %v1494, %v1724
    %v1729 = vmul.f32 %v1727, %v1140
    %v1730 = vmul.f32 %v1728, %v1143
    %v1731 = vtanh.pop %v1729
    %v1732 = vtanh.pop %v1730
    %v1733 = vmul.f32 %v1731, %v1140
    %v1734 = vmul.f32 %v1732, %v1143
    %v1735 = vadd.f32 %v1733, %v1168
    %v1736 = vadd.f32 %v1734, %v1171
    %v1738 = vrot.slane %v1735, 4
    %v1742 = vrot.slane %v1491, 6
    %v1743 = vsel %vm1111, %v1490, %v1742
    %v1745 = vmul.f32 %v1738, %v1743
    %v1746 = vmul.f32 %v1735, %v1736
    %v1747 = vadd.f32 %v1745, %v1746
    %v1748 = vtanh.pop %v1747
    %v1750 = vrot.slane %v1736, 4
    %v1752 = vmul.f32 %v1750, %v1748
    %vm1753 = vcmp.gt.s32.totalorder %v69, 2
    %v1754 = vsel %vm1753, 1, 0
    %1755 = vset.pattern.permute.xlu0 0
    %1756 = vperm.xlu0 %1755, %v1754
    %v1757 = vpop.permute.xlu0 %1756
    %vm1758 = vcmp.eq.s32.totalorder %v1757, 1
    %1760 = vst [vmem:[#allocation1] ss:$4 sm:$0xff] %v1752
    %v1761 = vld.sshfl [vmem:[#allocation1] sm:$0xff pattern:$0x73625140]
    %v1762 = vld.sshfl [vmem:[#allocation1 + $0x8] sm:$0xff pattern:$0x73625140]
    %v1765 = vsel %vm1758, %v1761, %v1482
    %v1766 = vsel %vm1758, %v1762, %v1483
    %1768 = vst [vmem:[#allocation1] ss:$4 sm:$0xff] %v1747
    %v1769 = vld.sshfl [vmem:[#allocation1] sm:$0xff pattern:$0x73625140]
    %v1770 = vld.sshfl [vmem:[#allocation1 + $0x8] sm:$0xff pattern:$0x73625140]
    %v1773 = vsel %vm1758, %v1769, %v1490
    %v1774 = vsel %vm1758, %v1770, %v1491
    %s1775 = scalar_lea.vmem [#allocation2], 48
    %v1776 = vld [vmem:[%s1775] sm:$0xff]
    %v1777 = vld [vmem:[%s1775 + $0x8] sm:$0xff]
    %v1778 = vpack.c.bf16 %v1765, %v1765
    %v1779 = vpack.c.bf16 %v1766, %v1766
    %1780 = vmatpush.bf16.msra.mxu0 %v689
    %1781 = vmatpush.bf16.msra.mxu0 %v681
    %1782 = vmatpush.bf16.msra.mxu0 %v673
    %1783 = vmatpush.bf16.msra.mxu0 %v665
    %1784 = vmatpush.bf16.msra.mxu0 %v657
    %1785 = vmatpush.bf16.msra.mxu0 %v649
    %1786 = vmatpush.bf16.msra.mxu0 %v641
    %1787 = vmatpush.bf16.msra.mxu0 %v633
    %1788 = vmatmul.bf16.gmra.mxu0 %v1778
    %v1789 = vpop.f32.mrf.mxu0
    %v1790 = vadd.f32 0.0, %v1789
    %v1791 = vpop.f32.mrf.mxu0
    %1792 = vdwg.mxu0
    %1793 = vmatpush.bf16.msra.mxu0 %v753
    %1794 = vmatpush.bf16.msra.mxu0 %v745
    %1795 = vmatpush.bf16.msra.mxu0 %v737
    %1796 = vmatpush.bf16.msra.mxu0 %v729
    %1797 = vmatpush.bf16.msra.mxu0 %v721
    %1798 = vmatpush.bf16.msra.mxu0 %v713
    %1799 = vmatpush.bf16.msra.mxu0 %v705
    %1800 = vmatpush.bf16.msra.mxu0 %v697
    %1801 = vmatmul.bf16.gmra.mxu0 %v1779
    %v1802 = vpop.f32.mrf.mxu0
    %v1803 = vadd.f32 %v1790, %v1802
    %v1804 = vpop.f32.mrf.mxu0
    %1805 = vdwg.mxu0
    %1806 = vmatpush.bf16.msra.mxu0 %v690
    %1807 = vmatpush.bf16.msra.mxu0 %v682
    %1808 = vmatpush.bf16.msra.mxu0 %v674
    %1809 = vmatpush.bf16.msra.mxu0 %v666
    %1810 = vmatpush.bf16.msra.mxu0 %v658
    %1811 = vmatpush.bf16.msra.mxu0 %v650
    %1812 = vmatpush.bf16.msra.mxu0 %v642
    %1813 = vmatpush.bf16.msra.mxu0 %v634
    %1814 = vmatmul.bf16.gmra.mxu0 %v1778
    %v1815 = vpop.f32.mrf.mxu0
    %v1816 = vadd.f32 0.0, %v1815
    %v1817 = vpop.f32.mrf.mxu0
    %1818 = vdwg.mxu0
    %1819 = vmatpush.bf16.msra.mxu0 %v754
    %1820 = vmatpush.bf16.msra.mxu0 %v746
    %1821 = vmatpush.bf16.msra.mxu0 %v738
    %1822 = vmatpush.bf16.msra.mxu0 %v730
    %1823 = vmatpush.bf16.msra.mxu0 %v722
    %1824 = vmatpush.bf16.msra.mxu0 %v714
    %1825 = vmatpush.bf16.msra.mxu0 %v706
    %1826 = vmatpush.bf16.msra.mxu0 %v698
    %1827 = vmatmul.bf16.gmra.mxu0 %v1779
    %v1828 = vpop.f32.mrf.mxu0
    %v1829 = vadd.f32 %v1816, %v1828
    %v1830 = vpop.f32.mrf.mxu0
    %1831 = vdwg.mxu0
    %1832 = vmatpush.bf16.msra.mxu0 %v691
    %1833 = vmatpush.bf16.msra.mxu0 %v683
    %1834 = vmatpush.bf16.msra.mxu0 %v675
    %1835 = vmatpush.bf16.msra.mxu0 %v667
    %1836 = vmatpush.bf16.msra.mxu0 %v659
    %1837 = vmatpush.bf16.msra.mxu0 %v651
    %1838 = vmatpush.bf16.msra.mxu0 %v643
    %1839 = vmatpush.bf16.msra.mxu0 %v635
    %1840 = vmatmul.bf16.gmra.mxu0 %v1778
    %v1841 = vpop.f32.mrf.mxu0
    %v1842 = vadd.f32 0.0, %v1841
    %v1843 = vpop.f32.mrf.mxu0
    %1844 = vdwg.mxu0
    %1845 = vmatpush.bf16.msra.mxu0 %v755
    %1846 = vmatpush.bf16.msra.mxu0 %v747
    %1847 = vmatpush.bf16.msra.mxu0 %v739
    %1848 = vmatpush.bf16.msra.mxu0 %v731
    %1849 = vmatpush.bf16.msra.mxu0 %v723
    %1850 = vmatpush.bf16.msra.mxu0 %v715
    %1851 = vmatpush.bf16.msra.mxu0 %v707
    %1852 = vmatpush.bf16.msra.mxu0 %v699
    %1853 = vmatmul.bf16.gmra.mxu0 %v1779
    %v1854 = vpop.f32.mrf.mxu0
    %v1855 = vadd.f32 %v1842, %v1854
    %v1856 = vpop.f32.mrf.mxu0
    %1857 = vdwg.mxu0
    %1858 = vmatpush.bf16.msra.mxu0 %v692
    %1859 = vmatpush.bf16.msra.mxu0 %v684
    %1860 = vmatpush.bf16.msra.mxu0 %v676
    %1861 = vmatpush.bf16.msra.mxu0 %v668
    %1862 = vmatpush.bf16.msra.mxu0 %v660
    %1863 = vmatpush.bf16.msra.mxu0 %v652
    %1864 = vmatpush.bf16.msra.mxu0 %v644
    %1865 = vmatpush.bf16.msra.mxu0 %v636
    %1866 = vmatmul.bf16.gmra.mxu0 %v1778
    %v1867 = vpop.f32.mrf.mxu0
    %v1868 = vadd.f32 0.0, %v1867
    %v1869 = vpop.f32.mrf.mxu0
    %1870 = vdwg.mxu0
    %1871 = vmatpush.bf16.msra.mxu0 %v756
    %1872 = vmatpush.bf16.msra.mxu0 %v748
    %1873 = vmatpush.bf16.msra.mxu0 %v740
    %1874 = vmatpush.bf16.msra.mxu0 %v732
    %1875 = vmatpush.bf16.msra.mxu0 %v724
    %1876 = vmatpush.bf16.msra.mxu0 %v716
    %1877 = vmatpush.bf16.msra.mxu0 %v708
    %1878 = vmatpush.bf16.msra.mxu0 %v700
    %1879 = vmatmul.bf16.gmra.mxu0 %v1779
    %v1880 = vpop.f32.mrf.mxu0
    %v1881 = vadd.f32 %v1868, %v1880
    %v1882 = vpop.f32.mrf.mxu0
    %1883 = vdwg.mxu0
    %1884 = vmatpush.bf16.msra.mxu0 %v693
    %1885 = vmatpush.bf16.msra.mxu0 %v685
    %1886 = vmatpush.bf16.msra.mxu0 %v677
    %1887 = vmatpush.bf16.msra.mxu0 %v669
    %1888 = vmatpush.bf16.msra.mxu0 %v661
    %1889 = vmatpush.bf16.msra.mxu0 %v653
    %1890 = vmatpush.bf16.msra.mxu0 %v645
    %1891 = vmatpush.bf16.msra.mxu0 %v637
    %1892 = vmatmul.bf16.gmra.mxu0 %v1778
    %v1893 = vpop.f32.mrf.mxu0
    %v1894 = vadd.f32 0.0, %v1893
    %v1895 = vpop.f32.mrf.mxu0
    %1896 = vdwg.mxu0
    %1897 = vmatpush.bf16.msra.mxu0 %v757
    %1898 = vmatpush.bf16.msra.mxu0 %v749
    %1899 = vmatpush.bf16.msra.mxu0 %v741
    %1900 = vmatpush.bf16.msra.mxu0 %v733
    %1901 = vmatpush.bf16.msra.mxu0 %v725
    %1902 = vmatpush.bf16.msra.mxu0 %v717
    %1903 = vmatpush.bf16.msra.mxu0 %v709
    %1904 = vmatpush.bf16.msra.mxu0 %v701
    %1905 = vmatmul.bf16.gmra.mxu0 %v1779
    %v1906 = vpop.f32.mrf.mxu0
    %v1907 = vadd.f32 %v1894, %v1906
    %v1908 = vpop.f32.mrf.mxu0
    %1909 = vdwg.mxu0
    %1910 = vmatpush.bf16.msra.mxu0 %v694
    %1911 = vmatpush.bf16.msra.mxu0 %v686
    %1912 = vmatpush.bf16.msra.mxu0 %v678
    %1913 = vmatpush.bf16.msra.mxu0 %v670
    %1914 = vmatpush.bf16.msra.mxu0 %v662
    %1915 = vmatpush.bf16.msra.mxu0 %v654
    %1916 = vmatpush.bf16.msra.mxu0 %v646
    %1917 = vmatpush.bf16.msra.mxu0 %v638
    %1918 = vmatmul.bf16.gmra.mxu0 %v1778
    %v1919 = vpop.f32.mrf.mxu0
    %v1920 = vadd.f32 0.0, %v1919
    %v1921 = vpop.f32.mrf.mxu0
    %1922 = vdwg.mxu0
    %1923 = vmatpush.bf16.msra.mxu0 %v758
    %1924 = vmatpush.bf16.msra.mxu0 %v750
    %1925 = vmatpush.bf16.msra.mxu0 %v742
    %1926 = vmatpush.bf16.msra.mxu0 %v734
    %1927 = vmatpush.bf16.msra.mxu0 %v726
    %1928 = vmatpush.bf16.msra.mxu0 %v718
    %1929 = vmatpush.bf16.msra.mxu0 %v710
    %1930 = vmatpush.bf16.msra.mxu0 %v702
    %1931 = vmatmul.bf16.gmra.mxu0 %v1779
    %v1932 = vpop.f32.mrf.mxu0
    %v1933 = vadd.f32 %v1920, %v1932
    %v1934 = vpop.f32.mrf.mxu0
    %1935 = vdwg.mxu0
    %1936 = vmatpush.bf16.msra.mxu0 %v695
    %1937 = vmatpush.bf16.msra.mxu0 %v687
    %1938 = vmatpush.bf16.msra.mxu0 %v679
    %1939 = vmatpush.bf16.msra.mxu0 %v671
    %1940 = vmatpush.bf16.msra.mxu0 %v663
    %1941 = vmatpush.bf16.msra.mxu0 %v655
    %1942 = vmatpush.bf16.msra.mxu0 %v647
    %1943 = vmatpush.bf16.msra.mxu0 %v639
    %1944 = vmatmul.bf16.gmra.mxu0 %v1778
    %v1945 = vpop.f32.mrf.mxu0
    %v1946 = vadd.f32 0.0, %v1945
    %v1947 = vpop.f32.mrf.mxu0
    %1948 = vdwg.mxu0
    %1949 = vmatpush.bf16.msra.mxu0 %v759
    %1950 = vmatpush.bf16.msra.mxu0 %v751
    %1951 = vmatpush.bf16.msra.mxu0 %v743
    %1952 = vmatpush.bf16.msra.mxu0 %v735
    %1953 = vmatpush.bf16.msra.mxu0 %v727
    %1954 = vmatpush.bf16.msra.mxu0 %v719
    %1955 = vmatpush.bf16.msra.mxu0 %v711
    %1956 = vmatpush.bf16.msra.mxu0 %v703
    %1957 = vmatmul.bf16.gmra.mxu0 %v1779
    %v1958 = vpop.f32.mrf.mxu0
    %v1959 = vadd.f32 %v1946, %v1958
    %v1960 = vpop.f32.mrf.mxu0
    %1961 = vdwg.mxu0
    %1962 = vmatpush.bf16.msra.mxu0 %v696
    %1963 = vmatpush.bf16.msra.mxu0 %v688
    %1964 = vmatpush.bf16.msra.mxu0 %v680
    %1965 = vmatpush.bf16.msra.mxu0 %v672
    %1966 = vmatpush.bf16.msra.mxu0 %v664
    %1967 = vmatpush.bf16.msra.mxu0 %v656
    %1968 = vmatpush.bf16.msra.mxu0 %v648
    %1969 = vmatpush.bf16.msra.mxu0 %v640
    %1970 = vmatmul.bf16.gmra.mxu0 %v1778
    %v1971 = vpop.f32.mrf.mxu0
    %v1972 = vadd.f32 0.0, %v1971
    %v1973 = vpop.f32.mrf.mxu0
    %1974 = vdwg.mxu0
    %1975 = vmatpush.bf16.msra.mxu0 %v760
    %1976 = vmatpush.bf16.msra.mxu0 %v752
    %1977 = vmatpush.bf16.msra.mxu0 %v744
    %1978 = vmatpush.bf16.msra.mxu0 %v736
    %1979 = vmatpush.bf16.msra.mxu0 %v728
    %1980 = vmatpush.bf16.msra.mxu0 %v720
    %1981 = vmatpush.bf16.msra.mxu0 %v712
    %1982 = vmatpush.bf16.msra.mxu0 %v704
    %1983 = vmatmul.bf16.gmra.mxu0 %v1779
    %v1984 = vpop.f32.mrf.mxu0
    %v1985 = vadd.f32 %v1972, %v1984
    %v1986 = vpop.f32.mrf.mxu0
    %1987 = vdwg.mxu0
    %v1996 = vrot.slane %v1829, 6
    %v1997 = vrot.slane %v1855, 4
    %v1998 = vrot.slane %v1881, 2
    %v1999 = vrot.slane %v1933, 6
    %v2000 = vrot.slane %v1959, 4
    %v2001 = vrot.slane %v1985, 2
    %v2002 = vsel %vm1111, %v1803, %v1996
    %v2003 = vsel %vm1113, %v1997, %v1998
    %v2004 = vsel %vm1115, %v2002, %v2003
    %v2005 = vsel %vm1111, %v1907, %v1999
    %v2006 = vsel %vm1113, %v2000, %v2001
    %v2007 = vsel %vm1115, %v2005, %v2006
    %v2010 = vadd.f32 %v1776, %v2004
    %v2011 = vadd.f32 %v1777, %v2007
    %v2012 = vmul.f32 %v2010, %v1140
    %v2013 = vmul.f32 %v2011, %v1143
    %v2014 = vtanh.pop %v2012
    %v2015 = vtanh.pop %v2013
    %v2016 = vmul.f32 %v2014, %v1140
    %v2017 = vmul.f32 %v2015, %v1143
    %v2018 = vadd.f32 %v2016, %v1168
    %v2019 = vadd.f32 %v2017, %v1171
    %v2021 = vrot.slane %v2018, 4
    %v2025 = vrot.slane %v1774, 6
    %v2026 = vsel %vm1111, %v1773, %v2025
    %v2028 = vmul.f32 %v2021, %v2026
    %v2029 = vmul.f32 %v2018, %v2019
    %v2030 = vadd.f32 %v2028, %v2029
    %v2031 = vtanh.pop %v2030
    %v2033 = vrot.slane %v2019, 4
    %v2035 = vmul.f32 %v2033, %v2031
    %vm2036 = vcmp.gt.s32.totalorder %v69, 3
    %v2037 = vsel %vm2036, 1, 0
    %2038 = vset.pattern.permute.xlu0 0
    %2039 = vperm.xlu0 %2038, %v2037
    %v2040 = vpop.permute.xlu0 %2039
    %vm2041 = vcmp.eq.s32.totalorder %v2040, 1
    %2043 = vst [vmem:[#allocation1] ss:$4 sm:$0xff] %v2035
    %v2044 = vld.sshfl [vmem:[#allocation1] sm:$0xff pattern:$0x73625140]
    %v2045 = vld.sshfl [vmem:[#allocation1 + $0x8] sm:$0xff pattern:$0x73625140]
    %v2048 = vsel %vm2041, %v2044, %v1765
    %v2049 = vsel %vm2041, %v2045, %v1766
    %2051 = vst [vmem:[#allocation1] ss:$4 sm:$0xff] %v2030
    %v2052 = vld.sshfl [vmem:[#allocation1] sm:$0xff pattern:$0x73625140]
    %v2053 = vld.sshfl [vmem:[#allocation1 + $0x8] sm:$0xff pattern:$0x73625140]
    %v2056 = vsel %vm2041, %v2052, %v1773
    %v2057 = vsel %vm2041, %v2053, %v1774
    %s2058 = scalar_lea.vmem [#allocation2], 64
    %v2059 = vld [vmem:[%s2058] sm:$0xff]
    %v2060 = vld [vmem:[%s2058 + $0x8] sm:$0xff]
    %v2061 = vpack.c.bf16 %v2048, %v2048
    %v2062 = vpack.c.bf16 %v2049, %v2049
    %2063 = vmatpush.bf16.msra.mxu0 %v689
    %2064 = vmatpush.bf16.msra.mxu0 %v681
    %2065 = vmatpush.bf16.msra.mxu0 %v673
    %2066 = vmatpush.bf16.msra.mxu0 %v665
    %2067 = vmatpush.bf16.msra.mxu0 %v657
    %2068 = vmatpush.bf16.msra.mxu0 %v649
    %2069 = vmatpush.bf16.msra.mxu0 %v641
    %2070 = vmatpush.bf16.msra.mxu0 %v633
    %2071 = vmatmul.bf16.gmra.mxu0 %v2061
    %v2072 = vpop.f32.mrf.mxu0
    %v2073 = vadd.f32 0.0, %v2072
    %v2074 = vpop.f32.mrf.mxu0
    %2075 = vdwg.mxu0
    %2076 = vmatpush.bf16.msra.mxu0 %v753
    %2077 = vmatpush.bf16.msra.mxu0 %v745
    %2078 = vmatpush.bf16.msra.mxu0 %v737
    %2079 = vmatpush.bf16.msra.mxu0 %v729
    %2080 = vmatpush.bf16.msra.mxu0 %v721
    %2081 = vmatpush.bf16.msra.mxu0 %v713
    %2082 = vmatpush.bf16.msra.mxu0 %v705
    %2083 = vmatpush.bf16.msra.mxu0 %v697
    %2084 = vmatmul.bf16.gmra.mxu0 %v2062
    %v2085 = vpop.f32.mrf.mxu0
    %v2086 = vadd.f32 %v2073, %v2085
    %v2087 = vpop.f32.mrf.mxu0
    %2088 = vdwg.mxu0
    %2089 = vmatpush.bf16.msra.mxu0 %v690
    %2090 = vmatpush.bf16.msra.mxu0 %v682
    %2091 = vmatpush.bf16.msra.mxu0 %v674
    %2092 = vmatpush.bf16.msra.mxu0 %v666
    %2093 = vmatpush.bf16.msra.mxu0 %v658
    %2094 = vmatpush.bf16.msra.mxu0 %v650
    %2095 = vmatpush.bf16.msra.mxu0 %v642
    %2096 = vmatpush.bf16.msra.mxu0 %v634
    %2097 = vmatmul.bf16.gmra.mxu0 %v2061
    %v2098 = vpop.f32.mrf.mxu0
    %v2099 = vadd.f32 0.0, %v2098
    %v2100 = vpop.f32.mrf.mxu0
    %2101 = vdwg.mxu0
    %2102 = vmatpush.bf16.msra.mxu0 %v754
    %2103 = vmatpush.bf16.msra.mxu0 %v746
    %2104 = vmatpush.bf16.msra.mxu0 %v738
    %2105 = vmatpush.bf16.msra.mxu0 %v730
    %2106 = vmatpush.bf16.msra.mxu0 %v722
    %2107 = vmatpush.bf16.msra.mxu0 %v714
    %2108 = vmatpush.bf16.msra.mxu0 %v706
    %2109 = vmatpush.bf16.msra.mxu0 %v698
    %2110 = vmatmul.bf16.gmra.mxu0 %v2062
    %v2111 = vpop.f32.mrf.mxu0
    %v2112 = vadd.f32 %v2099, %v2111
    %v2113 = vpop.f32.mrf.mxu0
    %2114 = vdwg.mxu0
    %2115 = vmatpush.bf16.msra.mxu0 %v691
    %2116 = vmatpush.bf16.msra.mxu0 %v683
    %2117 = vmatpush.bf16.msra.mxu0 %v675
    %2118 = vmatpush.bf16.msra.mxu0 %v667
    %2119 = vmatpush.bf16.msra.mxu0 %v659
    %2120 = vmatpush.bf16.msra.mxu0 %v651
    %2121 = vmatpush.bf16.msra.mxu0 %v643
    %2122 = vmatpush.bf16.msra.mxu0 %v635
    %2123 = vmatmul.bf16.gmra.mxu0 %v2061
    %v2124 = vpop.f32.mrf.mxu0
    %v2125 = vadd.f32 0.0, %v2124
    %v2126 = vpop.f32.mrf.mxu0
    %2127 = vdwg.mxu0
    %2128 = vmatpush.bf16.msra.mxu0 %v755
    %2129 = vmatpush.bf16.msra.mxu0 %v747
    %2130 = vmatpush.bf16.msra.mxu0 %v739
    %2131 = vmatpush.bf16.msra.mxu0 %v731
    %2132 = vmatpush.bf16.msra.mxu0 %v723
    %2133 = vmatpush.bf16.msra.mxu0 %v715
    %2134 = vmatpush.bf16.msra.mxu0 %v707
    %2135 = vmatpush.bf16.msra.mxu0 %v699
    %2136 = vmatmul.bf16.gmra.mxu0 %v2062
    %v2137 = vpop.f32.mrf.mxu0
    %v2138 = vadd.f32 %v2125, %v2137
    %v2139 = vpop.f32.mrf.mxu0
    %2140 = vdwg.mxu0
    %2141 = vmatpush.bf16.msra.mxu0 %v692
    %2142 = vmatpush.bf16.msra.mxu0 %v684
    %2143 = vmatpush.bf16.msra.mxu0 %v676
    %2144 = vmatpush.bf16.msra.mxu0 %v668
    %2145 = vmatpush.bf16.msra.mxu0 %v660
    %2146 = vmatpush.bf16.msra.mxu0 %v652
    %2147 = vmatpush.bf16.msra.mxu0 %v644
    %2148 = vmatpush.bf16.msra.mxu0 %v636
    %2149 = vmatmul.bf16.gmra.mxu0 %v2061
    %v2150 = vpop.f32.mrf.mxu0
    %v2151 = vadd.f32 0.0, %v2150
    %v2152 = vpop.f32.mrf.mxu0
    %2153 = vdwg.mxu0
    %2154 = vmatpush.bf16.msra.mxu0 %v756
    %2155 = vmatpush.bf16.msra.mxu0 %v748
    %2156 = vmatpush.bf16.msra.mxu0 %v740
    %2157 = vmatpush.bf16.msra.mxu0 %v732
    %2158 = vmatpush.bf16.msra.mxu0 %v724
    %2159 = vmatpush.bf16.msra.mxu0 %v716
    %2160 = vmatpush.bf16.msra.mxu0 %v708
    %2161 = vmatpush.bf16.msra.mxu0 %v700
    %2162 = vmatmul.bf16.gmra.mxu0 %v2062
    %v2163 = vpop.f32.mrf.mxu0
    %v2164 = vadd.f32 %v2151, %v2163
    %v2165 = vpop.f32.mrf.mxu0
    %2166 = vdwg.mxu0
    %2167 = vmatpush.bf16.msra.mxu0 %v693
    %2168 = vmatpush.bf16.msra.mxu0 %v685
    %2169 = vmatpush.bf16.msra.mxu0 %v677
    %2170 = vmatpush.bf16.msra.mxu0 %v669
    %2171 = vmatpush.bf16.msra.mxu0 %v661
    %2172 = vmatpush.bf16.msra.mxu0 %v653
    %2173 = vmatpush.bf16.msra.mxu0 %v645
    %2174 = vmatpush.bf16.msra.mxu0 %v637
    %2175 = vmatmul.bf16.gmra.mxu0 %v2061
    %v2176 = vpop.f32.mrf.mxu0
    %v2177 = vadd.f32 0.0, %v2176
    %v2178 = vpop.f32.mrf.mxu0
    %2179 = vdwg.mxu0
    %2180 = vmatpush.bf16.msra.mxu0 %v757
    %2181 = vmatpush.bf16.msra.mxu0 %v749
    %2182 = vmatpush.bf16.msra.mxu0 %v741
    %2183 = vmatpush.bf16.msra.mxu0 %v733
    %2184 = vmatpush.bf16.msra.mxu0 %v725
    %2185 = vmatpush.bf16.msra.mxu0 %v717
    %2186 = vmatpush.bf16.msra.mxu0 %v709
    %2187 = vmatpush.bf16.msra.mxu0 %v701
    %2188 = vmatmul.bf16.gmra.mxu0 %v2062
    %v2189 = vpop.f32.mrf.mxu0
    %v2190 = vadd.f32 %v2177, %v2189
    %v2191 = vpop.f32.mrf.mxu0
    %2192 = vdwg.mxu0
    %2193 = vmatpush.bf16.msra.mxu0 %v694
    %2194 = vmatpush.bf16.msra.mxu0 %v686
    %2195 = vmatpush.bf16.msra.mxu0 %v678
    %2196 = vmatpush.bf16.msra.mxu0 %v670
    %2197 = vmatpush.bf16.msra.mxu0 %v662
    %2198 = vmatpush.bf16.msra.mxu0 %v654
    %2199 = vmatpush.bf16.msra.mxu0 %v646
    %2200 = vmatpush.bf16.msra.mxu0 %v638
    %2201 = vmatmul.bf16.gmra.mxu0 %v2061
    %v2202 = vpop.f32.mrf.mxu0
    %v2203 = vadd.f32 0.0, %v2202
    %v2204 = vpop.f32.mrf.mxu0
    %2205 = vdwg.mxu0
    %2206 = vmatpush.bf16.msra.mxu0 %v758
    %2207 = vmatpush.bf16.msra.mxu0 %v750
    %2208 = vmatpush.bf16.msra.mxu0 %v742
    %2209 = vmatpush.bf16.msra.mxu0 %v734
    %2210 = vmatpush.bf16.msra.mxu0 %v726
    %2211 = vmatpush.bf16.msra.mxu0 %v718
    %2212 = vmatpush.bf16.msra.mxu0 %v710
    %2213 = vmatpush.bf16.msra.mxu0 %v702
    %2214 = vmatmul.bf16.gmra.mxu0 %v2062
    %v2215 = vpop.f32.mrf.mxu0
    %v2216 = vadd.f32 %v2203, %v2215
    %v2217 = vpop.f32.mrf.mxu0
    %2218 = vdwg.mxu0
    %2219 = vmatpush.bf16.msra.mxu0 %v695
    %2220 = vmatpush.bf16.msra.mxu0 %v687
    %2221 = vmatpush.bf16.msra.mxu0 %v679
    %2222 = vmatpush.bf16.msra.mxu0 %v671
    %2223 = vmatpush.bf16.msra.mxu0 %v663
    %2224 = vmatpush.bf16.msra.mxu0 %v655
    %2225 = vmatpush.bf16.msra.mxu0 %v647
    %2226 = vmatpush.bf16.msra.mxu0 %v639
    %2227 = vmatmul.bf16.gmra.mxu0 %v2061
    %v2228 = vpop.f32.mrf.mxu0
    %v2229 = vadd.f32 0.0, %v2228
    %v2230 = vpop.f32.mrf.mxu0
    %2231 = vdwg.mxu0
    %2232 = vmatpush.bf16.msra.mxu0 %v759
    %2233 = vmatpush.bf16.msra.mxu0 %v751
    %2234 = vmatpush.bf16.msra.mxu0 %v743
    %2235 = vmatpush.bf16.msra.mxu0 %v735
    %2236 = vmatpush.bf16.msra.mxu0 %v727
    %2237 = vmatpush.bf16.msra.mxu0 %v719
    %2238 = vmatpush.bf16.msra.mxu0 %v711
    %2239 = vmatpush.bf16.msra.mxu0 %v703
    %2240 = vmatmul.bf16.gmra.mxu0 %v2062
    %v2241 = vpop.f32.mrf.mxu0
    %v2242 = vadd.f32 %v2229, %v2241
    %v2243 = vpop.f32.mrf.mxu0
    %2244 = vdwg.mxu0
    %2245 = vmatpush.bf16.msra.mxu0 %v696
    %2246 = vmatpush.bf16.msra.mxu0 %v688
    %2247 = vmatpush.bf16.msra.mxu0 %v680
    %2248 = vmatpush.bf16.msra.mxu0 %v672
    %2249 = vmatpush.bf16.msra.mxu0 %v664
    %2250 = vmatpush.bf16.msra.mxu0 %v656
    %2251 = vmatpush.bf16.msra.mxu0 %v648
    %2252 = vmatpush.bf16.msra.mxu0 %v640
    %2253 = vmatmul.bf16.gmra.mxu0 %v2061
    %v2254 = vpop.f32.mrf.mxu0
    %v2255 = vadd.f32 0.0, %v2254
    %v2256 = vpop.f32.mrf.mxu0
    %2257 = vdwg.mxu0
    %2258 = vmatpush.bf16.msra.mxu0 %v760
    %2259 = vmatpush.bf16.msra.mxu0 %v752
    %2260 = vmatpush.bf16.msra.mxu0 %v744
    %2261 = vmatpush.bf16.msra.mxu0 %v736
    %2262 = vmatpush.bf16.msra.mxu0 %v728
    %2263 = vmatpush.bf16.msra.mxu0 %v720
    %2264 = vmatpush.bf16.msra.mxu0 %v712
    %2265 = vmatpush.bf16.msra.mxu0 %v704
    %2266 = vmatmul.bf16.gmra.mxu0 %v2062
    %v2267 = vpop.f32.mrf.mxu0
    %v2268 = vadd.f32 %v2255, %v2267
    %v2269 = vpop.f32.mrf.mxu0
    %2270 = vdwg.mxu0
    %v2279 = vrot.slane %v2112, 6
    %v2280 = vrot.slane %v2138, 4
    %v2281 = vrot.slane %v2164, 2
    %v2282 = vrot.slane %v2216, 6
    %v2283 = vrot.slane %v2242, 4
    %v2284 = vrot.slane %v2268, 2
    %v2285 = vsel %vm1111, %v2086, %v2279
    %v2286 = vsel %vm1113, %v2280, %v2281
    %v2287 = vsel %vm1115, %v2285, %v2286
    %v2288 = vsel %vm1111, %v2190, %v2282
    %v2289 = vsel %vm1113, %v2283, %v2284
    %v2290 = vsel %vm1115, %v2288, %v2289
    %v2293 = vadd.f32 %v2059, %v2287
    %v2294 = vadd.f32 %v2060, %v2290
    %v2295 = vmul.f32 %v2293, %v1140
    %v2296 = vmul.f32 %v2294, %v1143
    %v2297 = vtanh.pop %v2295
    %v2298 = vtanh.pop %v2296
    %v2299 = vmul.f32 %v2297, %v1140
    %v2300 = vmul.f32 %v2298, %v1143
    %v2301 = vadd.f32 %v2299, %v1168
    %v2302 = vadd.f32 %v2300, %v1171
    %v2304 = vrot.slane %v2301, 4
    %v2308 = vrot.slane %v2057, 6
    %v2309 = vsel %vm1111, %v2056, %v2308
    %v2311 = vmul.f32 %v2304, %v2309
    %v2312 = vmul.f32 %v2301, %v2302
    %v2313 = vadd.f32 %v2311, %v2312
    %v2314 = vtanh.pop %v2313
    %v2316 = vrot.slane %v2302, 4
    %v2318 = vmul.f32 %v2316, %v2314
    %vm2319 = vcmp.gt.s32.totalorder %v69, 4
    %v2320 = vsel %vm2319, 1, 0
    %2321 = vset.pattern.permute.xlu0 0
    %2322 = vperm.xlu0 %2321, %v2320
    %v2323 = vpop.permute.xlu0 %2322
    %vm2324 = vcmp.eq.s32.totalorder %v2323, 1
    %2326 = vst [vmem:[#allocation1] ss:$4 sm:$0xff] %v2318
    %v2327 = vld.sshfl [vmem:[#allocation1] sm:$0xff pattern:$0x73625140]
    %v2328 = vld.sshfl [vmem:[#allocation1 + $0x8] sm:$0xff pattern:$0x73625140]
    %v2331 = vsel %vm2324, %v2327, %v2048
    %v2332 = vsel %vm2324, %v2328, %v2049
    %2334 = vst [vmem:[#allocation1] ss:$4 sm:$0xff] %v2313
    %v2335 = vld.sshfl [vmem:[#allocation1] sm:$0xff pattern:$0x73625140]
    %v2336 = vld.sshfl [vmem:[#allocation1 + $0x8] sm:$0xff pattern:$0x73625140]
    %v2339 = vsel %vm2324, %v2335, %v2056
    %v2340 = vsel %vm2324, %v2336, %v2057
    %s2341 = scalar_lea.vmem [#allocation2], 80
    %v2342 = vld [vmem:[%s2341] sm:$0xff]
    %v2343 = vld [vmem:[%s2341 + $0x8] sm:$0xff]
    %v2344 = vpack.c.bf16 %v2331, %v2331
    %v2345 = vpack.c.bf16 %v2332, %v2332
    %2346 = vmatpush.bf16.msra.mxu0 %v689
    %2347 = vmatpush.bf16.msra.mxu0 %v681
    %2348 = vmatpush.bf16.msra.mxu0 %v673
    %2349 = vmatpush.bf16.msra.mxu0 %v665
    %2350 = vmatpush.bf16.msra.mxu0 %v657
    %2351 = vmatpush.bf16.msra.mxu0 %v649
    %2352 = vmatpush.bf16.msra.mxu0 %v641
    %2353 = vmatpush.bf16.msra.mxu0 %v633
    %2354 = vmatmul.bf16.gmra.mxu0 %v2344
    %v2355 = vpop.f32.mrf.mxu0
    %v2356 = vadd.f32 0.0, %v2355
    %v2357 = vpop.f32.mrf.mxu0
    %2358 = vdwg.mxu0
    %2359 = vmatpush.bf16.msra.mxu0 %v753
    %2360 = vmatpush.bf16.msra.mxu0 %v745
    %2361 = vmatpush.bf16.msra.mxu0 %v737
    %2362 = vmatpush.bf16.msra.mxu0 %v729
    %2363 = vmatpush.bf16.msra.mxu0 %v721
    %2364 = vmatpush.bf16.msra.mxu0 %v713
    %2365 = vmatpush.bf16.msra.mxu0 %v705
    %2366 = vmatpush.bf16.msra.mxu0 %v697
    %2367 = vmatmul.bf16.gmra.mxu0 %v2345
    %v2368 = vpop.f32.mrf.mxu0
    %v2369 = vadd.f32 %v2356, %v2368
    %v2370 = vpop.f32.mrf.mxu0
    %2371 = vdwg.mxu0
    %2372 = vmatpush.bf16.msra.mxu0 %v690
    %2373 = vmatpush.bf16.msra.mxu0 %v682
    %2374 = vmatpush.bf16.msra.mxu0 %v674
    %2375 = vmatpush.bf16.msra.mxu0 %v666
    %2376 = vmatpush.bf16.msra.mxu0 %v658
    %2377 = vmatpush.bf16.msra.mxu0 %v650
    %2378 = vmatpush.bf16.msra.mxu0 %v642
    %2379 = vmatpush.bf16.msra.mxu0 %v634
    %2380 = vmatmul.bf16.gmra.mxu0 %v2344
    %v2381 = vpop.f32.mrf.mxu0
    %v2382 = vadd.f32 0.0, %v2381
    %v2383 = vpop.f32.mrf.mxu0
    %2384 = vdwg.mxu0
    %2385 = vmatpush.bf16.msra.mxu0 %v754
    %2386 = vmatpush.bf16.msra.mxu0 %v746
    %2387 = vmatpush.bf16.msra.mxu0 %v738
    %2388 = vmatpush.bf16.msra.mxu0 %v730
    %2389 = vmatpush.bf16.msra.mxu0 %v722
    %2390 = vmatpush.bf16.msra.mxu0 %v714
    %2391 = vmatpush.bf16.msra.mxu0 %v706
    %2392 = vmatpush.bf16.msra.mxu0 %v698
    %2393 = vmatmul.bf16.gmra.mxu0 %v2345
    %v2394 = vpop.f32.mrf.mxu0
    %v2395 = vadd.f32 %v2382, %v2394
    %v2396 = vpop.f32.mrf.mxu0
    %2397 = vdwg.mxu0
    %2398 = vmatpush.bf16.msra.mxu0 %v691
    %2399 = vmatpush.bf16.msra.mxu0 %v683
    %2400 = vmatpush.bf16.msra.mxu0 %v675
    %2401 = vmatpush.bf16.msra.mxu0 %v667
    %2402 = vmatpush.bf16.msra.mxu0 %v659
    %2403 = vmatpush.bf16.msra.mxu0 %v651
    %2404 = vmatpush.bf16.msra.mxu0 %v643
    %2405 = vmatpush.bf16.msra.mxu0 %v635
    %2406 = vmatmul.bf16.gmra.mxu0 %v2344
    %v2407 = vpop.f32.mrf.mxu0
    %v2408 = vadd.f32 0.0, %v2407
    %v2409 = vpop.f32.mrf.mxu0
    %2410 = vdwg.mxu0
    %2411 = vmatpush.bf16.msra.mxu0 %v755
    %2412 = vmatpush.bf16.msra.mxu0 %v747
    %2413 = vmatpush.bf16.msra.mxu0 %v739
    %2414 = vmatpush.bf16.msra.mxu0 %v731
    %2415 = vmatpush.bf16.msra.mxu0 %v723
    %2416 = vmatpush.bf16.msra.mxu0 %v715
    %2417 = vmatpush.bf16.msra.mxu0 %v707
    %2418 = vmatpush.bf16.msra.mxu0 %v699
    %2419 = vmatmul.bf16.gmra.mxu0 %v2345
    %v2420 = vpop.f32.mrf.mxu0
    %v2421 = vadd.f32 %v2408, %v2420
    %v2422 = vpop.f32.mrf.mxu0
    %2423 = vdwg.mxu0
    %2424 = vmatpush.bf16.msra.mxu0 %v692
    %2425 = vmatpush.bf16.msra.mxu0 %v684
    %2426 = vmatpush.bf16.msra.mxu0 %v676
    %2427 = vmatpush.bf16.msra.mxu0 %v668
    %2428 = vmatpush.bf16.msra.mxu0 %v660
    %2429 = vmatpush.bf16.msra.mxu0 %v652
    %2430 = vmatpush.bf16.msra.mxu0 %v644
    %2431 = vmatpush.bf16.msra.mxu0 %v636
    %2432 = vmatmul.bf16.gmra.mxu0 %v2344
    %v2433 = vpop.f32.mrf.mxu0
    %v2434 = vadd.f32 0.0, %v2433
    %v2435 = vpop.f32.mrf.mxu0
    %2436 = vdwg.mxu0
    %2437 = vmatpush.bf16.msra.mxu0 %v756
    %2438 = vmatpush.bf16.msra.mxu0 %v748
    %2439 = vmatpush.bf16.msra.mxu0 %v740
    %2440 = vmatpush.bf16.msra.mxu0 %v732
    %2441 = vmatpush.bf16.msra.mxu0 %v724
    %2442 = vmatpush.bf16.msra.mxu0 %v716
    %2443 = vmatpush.bf16.msra.mxu0 %v708
    %2444 = vmatpush.bf16.msra.mxu0 %v700
    %2445 = vmatmul.bf16.gmra.mxu0 %v2345
    %v2446 = vpop.f32.mrf.mxu0
    %v2447 = vadd.f32 %v2434, %v2446
    %v2448 = vpop.f32.mrf.mxu0
    %2449 = vdwg.mxu0
    %2450 = vmatpush.bf16.msra.mxu0 %v693
    %2451 = vmatpush.bf16.msra.mxu0 %v685
    %2452 = vmatpush.bf16.msra.mxu0 %v677
    %2453 = vmatpush.bf16.msra.mxu0 %v669
    %2454 = vmatpush.bf16.msra.mxu0 %v661
    %2455 = vmatpush.bf16.msra.mxu0 %v653
    %2456 = vmatpush.bf16.msra.mxu0 %v645
    %2457 = vmatpush.bf16.msra.mxu0 %v637
    %2458 = vmatmul.bf16.gmra.mxu0 %v2344
    %v2459 = vpop.f32.mrf.mxu0
    %v2460 = vadd.f32 0.0, %v2459
    %v2461 = vpop.f32.mrf.mxu0
    %2462 = vdwg.mxu0
    %2463 = vmatpush.bf16.msra.mxu0 %v757
    %2464 = vmatpush.bf16.msra.mxu0 %v749
    %2465 = vmatpush.bf16.msra.mxu0 %v741
    %2466 = vmatpush.bf16.msra.mxu0 %v733
    %2467 = vmatpush.bf16.msra.mxu0 %v725
    %2468 = vmatpush.bf16.msra.mxu0 %v717
    %2469 = vmatpush.bf16.msra.mxu0 %v709
    %2470 = vmatpush.bf16.msra.mxu0 %v701
    %2471 = vmatmul.bf16.gmra.mxu0 %v2345
    %v2472 = vpop.f32.mrf.mxu0
    %v2473 = vadd.f32 %v2460, %v2472
    %v2474 = vpop.f32.mrf.mxu0
    %2475 = vdwg.mxu0
    %2476 = vmatpush.bf16.msra.mxu0 %v694
    %2477 = vmatpush.bf16.msra.mxu0 %v686
    %2478 = vmatpush.bf16.msra.mxu0 %v678
    %2479 = vmatpush.bf16.msra.mxu0 %v670
    %2480 = vmatpush.bf16.msra.mxu0 %v662
    %2481 = vmatpush.bf16.msra.mxu0 %v654
    %2482 = vmatpush.bf16.msra.mxu0 %v646
    %2483 = vmatpush.bf16.msra.mxu0 %v638
    %2484 = vmatmul.bf16.gmra.mxu0 %v2344
    %v2485 = vpop.f32.mrf.mxu0
    %v2486 = vadd.f32 0.0, %v2485
    %v2487 = vpop.f32.mrf.mxu0
    %2488 = vdwg.mxu0
    %2489 = vmatpush.bf16.msra.mxu0 %v758
    %2490 = vmatpush.bf16.msra.mxu0 %v750
    %2491 = vmatpush.bf16.msra.mxu0 %v742
    %2492 = vmatpush.bf16.msra.mxu0 %v734
    %2493 = vmatpush.bf16.msra.mxu0 %v726
    %2494 = vmatpush.bf16.msra.mxu0 %v718
    %2495 = vmatpush.bf16.msra.mxu0 %v710
    %2496 = vmatpush.bf16.msra.mxu0 %v702
    %2497 = vmatmul.bf16.gmra.mxu0 %v2345
    %v2498 = vpop.f32.mrf.mxu0
    %v2499 = vadd.f32 %v2486, %v2498
    %v2500 = vpop.f32.mrf.mxu0
    %2501 = vdwg.mxu0
    %2502 = vmatpush.bf16.msra.mxu0 %v695
    %2503 = vmatpush.bf16.msra.mxu0 %v687
    %2504 = vmatpush.bf16.msra.mxu0 %v679
    %2505 = vmatpush.bf16.msra.mxu0 %v671
    %2506 = vmatpush.bf16.msra.mxu0 %v663
    %2507 = vmatpush.bf16.msra.mxu0 %v655
    %2508 = vmatpush.bf16.msra.mxu0 %v647
    %2509 = vmatpush.bf16.msra.mxu0 %v639
    %2510 = vmatmul.bf16.gmra.mxu0 %v2344
    %v2511 = vpop.f32.mrf.mxu0
    %v2512 = vadd.f32 0.0, %v2511
    %v2513 = vpop.f32.mrf.mxu0
    %2514 = vdwg.mxu0
    %2515 = vmatpush.bf16.msra.mxu0 %v759
    %2516 = vmatpush.bf16.msra.mxu0 %v751
    %2517 = vmatpush.bf16.msra.mxu0 %v743
    %2518 = vmatpush.bf16.msra.mxu0 %v735
    %2519 = vmatpush.bf16.msra.mxu0 %v727
    %2520 = vmatpush.bf16.msra.mxu0 %v719
    %2521 = vmatpush.bf16.msra.mxu0 %v711
    %2522 = vmatpush.bf16.msra.mxu0 %v703
    %2523 = vmatmul.bf16.gmra.mxu0 %v2345
    %v2524 = vpop.f32.mrf.mxu0
    %v2525 = vadd.f32 %v2512, %v2524
    %v2526 = vpop.f32.mrf.mxu0
    %2527 = vdwg.mxu0
    %2528 = vmatpush.bf16.msra.mxu0 %v696
    %2529 = vmatpush.bf16.msra.mxu0 %v688
    %2530 = vmatpush.bf16.msra.mxu0 %v680
    %2531 = vmatpush.bf16.msra.mxu0 %v672
    %2532 = vmatpush.bf16.msra.mxu0 %v664
    %2533 = vmatpush.bf16.msra.mxu0 %v656
    %2534 = vmatpush.bf16.msra.mxu0 %v648
    %2535 = vmatpush.bf16.msra.mxu0 %v640
    %2536 = vmatmul.bf16.gmra.mxu0 %v2344
    %v2537 = vpop.f32.mrf.mxu0
    %v2538 = vadd.f32 0.0, %v2537
    %v2539 = vpop.f32.mrf.mxu0
    %2540 = vdwg.mxu0
    %2541 = vmatpush.bf16.msra.mxu0 %v760
    %2542 = vmatpush.bf16.msra.mxu0 %v752
    %2543 = vmatpush.bf16.msra.mxu0 %v744
    %2544 = vmatpush.bf16.msra.mxu0 %v736
    %2545 = vmatpush.bf16.msra.mxu0 %v728
    %2546 = vmatpush.bf16.msra.mxu0 %v720
    %2547 = vmatpush.bf16.msra.mxu0 %v712
    %2548 = vmatpush.bf16.msra.mxu0 %v704
    %2549 = vmatmul.bf16.gmra.mxu0 %v2345
    %v2550 = vpop.f32.mrf.mxu0
    %v2551 = vadd.f32 %v2538, %v2550
    %v2552 = vpop.f32.mrf.mxu0
    %2553 = vdwg.mxu0
    %v2562 = vrot.slane %v2395, 6
    %v2563 = vrot.slane %v2421, 4
    %v2564 = vrot.slane %v2447, 2
    %v2565 = vrot.slane %v2499, 6
    %v2566 = vrot.slane %v2525, 4
    %v2567 = vrot.slane %v2551, 2
    %v2568 = vsel %vm1111, %v2369, %v2562
    %v2569 = vsel %vm1113, %v2563, %v2564
    %v2570 = vsel %vm1115, %v2568, %v2569
    %v2571 = vsel %vm1111, %v2473, %v2565
    %v2572 = vsel %vm1113, %v2566, %v2567
    %v2573 = vsel %vm1115, %v2571, %v2572
    %v2576 = vadd.f32 %v2342, %v2570
    %v2577 = vadd.f32 %v2343, %v2573
    %v2578 = vmul.f32 %v2576, %v1140
    %v2579 = vmul.f32 %v2577, %v1143
    %v2580 = vtanh.pop %v2578
    %v2581 = vtanh.pop %v2579
    %v2582 = vmul.f32 %v2580, %v1140
    %v2583 = vmul.f32 %v2581, %v1143
    %v2584 = vadd.f32 %v2582, %v1168
    %v2585 = vadd.f32 %v2583, %v1171
    %v2587 = vrot.slane %v2584, 4
    %v2591 = vrot.slane %v2340, 6
    %v2592 = vsel %vm1111, %v2339, %v2591
    %v2594 = vmul.f32 %v2587, %v2592
    %v2595 = vmul.f32 %v2584, %v2585
    %v2596 = vadd.f32 %v2594, %v2595
    %v2597 = vtanh.pop %v2596
    %v2599 = vrot.slane %v2585, 4
    %v2601 = vmul.f32 %v2599, %v2597
    %vm2602 = vcmp.gt.s32.totalorder %v69, 5
    %v2603 = vsel %vm2602, 1, 0
    %2604 = vset.pattern.permute.xlu0 0
    %2605 = vperm.xlu0 %2604, %v2603
    %v2606 = vpop.permute.xlu0 %2605
    %vm2607 = vcmp.eq.s32.totalorder %v2606, 1
    %2609 = vst [vmem:[#allocation1] ss:$4 sm:$0xff] %v2601
    %v2610 = vld.sshfl [vmem:[#allocation1] sm:$0xff pattern:$0x73625140]
    %v2611 = vld.sshfl [vmem:[#allocation1 + $0x8] sm:$0xff pattern:$0x73625140]
    %v2614 = vsel %vm2607, %v2610, %v2331
    %v2615 = vsel %vm2607, %v2611, %v2332
    %2617 = vst [vmem:[#allocation1] ss:$4 sm:$0xff] %v2596
    %v2618 = vld.sshfl [vmem:[#allocation1] sm:$0xff pattern:$0x73625140]
    %v2619 = vld.sshfl [vmem:[#allocation1 + $0x8] sm:$0xff pattern:$0x73625140]
    %v2622 = vsel %vm2607, %v2618, %v2339
    %v2623 = vsel %vm2607, %v2619, %v2340
    %s2624 = scalar_lea.vmem [#allocation2], 96
    %v2625 = vld [vmem:[%s2624] sm:$0xff]
    %v2626 = vld [vmem:[%s2624 + $0x8] sm:$0xff]
    %v2627 = vpack.c.bf16 %v2614, %v2614
    %v2628 = vpack.c.bf16 %v2615, %v2615
    %2629 = vmatpush.bf16.msra.mxu0 %v689
    %2630 = vmatpush.bf16.msra.mxu0 %v681
    %2631 = vmatpush.bf16.msra.mxu0 %v673
    %2632 = vmatpush.bf16.msra.mxu0 %v665
    %2633 = vmatpush.bf16.msra.mxu0 %v657
    %2634 = vmatpush.bf16.msra.mxu0 %v649
    %2635 = vmatpush.bf16.msra.mxu0 %v641
    %2636 = vmatpush.bf16.msra.mxu0 %v633
    %2637 = vmatmul.bf16.gmra.mxu0 %v2627
    %v2638 = vpop.f32.mrf.mxu0
    %v2639 = vadd.f32 0.0, %v2638
    %v2640 = vpop.f32.mrf.mxu0
    %2641 = vdwg.mxu0
    %2642 = vmatpush.bf16.msra.mxu0 %v753
    %2643 = vmatpush.bf16.msra.mxu0 %v745
    %2644 = vmatpush.bf16.msra.mxu0 %v737
    %2645 = vmatpush.bf16.msra.mxu0 %v729
    %2646 = vmatpush.bf16.msra.mxu0 %v721
    %2647 = vmatpush.bf16.msra.mxu0 %v713
    %2648 = vmatpush.bf16.msra.mxu0 %v705
    %2649 = vmatpush.bf16.msra.mxu0 %v697
    %2650 = vmatmul.bf16.gmra.mxu0 %v2628
    %v2651 = vpop.f32.mrf.mxu0
    %v2652 = vadd.f32 %v2639, %v2651
    %v2653 = vpop.f32.mrf.mxu0
    %2654 = vdwg.mxu0
    %2655 = vmatpush.bf16.msra.mxu0 %v690
    %2656 = vmatpush.bf16.msra.mxu0 %v682
    %2657 = vmatpush.bf16.msra.mxu0 %v674
    %2658 = vmatpush.bf16.msra.mxu0 %v666
    %2659 = vmatpush.bf16.msra.mxu0 %v658
    %2660 = vmatpush.bf16.msra.mxu0 %v650
    %2661 = vmatpush.bf16.msra.mxu0 %v642
    %2662 = vmatpush.bf16.msra.mxu0 %v634
    %2663 = vmatmul.bf16.gmra.mxu0 %v2627
    %v2664 = vpop.f32.mrf.mxu0
    %v2665 = vadd.f32 0.0, %v2664
    %v2666 = vpop.f32.mrf.mxu0
    %2667 = vdwg.mxu0
    %2668 = vmatpush.bf16.msra.mxu0 %v754
    %2669 = vmatpush.bf16.msra.mxu0 %v746
    %2670 = vmatpush.bf16.msra.mxu0 %v738
    %2671 = vmatpush.bf16.msra.mxu0 %v730
    %2672 = vmatpush.bf16.msra.mxu0 %v722
    %2673 = vmatpush.bf16.msra.mxu0 %v714
    %2674 = vmatpush.bf16.msra.mxu0 %v706
    %2675 = vmatpush.bf16.msra.mxu0 %v698
    %2676 = vmatmul.bf16.gmra.mxu0 %v2628
    %v2677 = vpop.f32.mrf.mxu0
    %v2678 = vadd.f32 %v2665, %v2677
    %v2679 = vpop.f32.mrf.mxu0
    %2680 = vdwg.mxu0
    %2681 = vmatpush.bf16.msra.mxu0 %v691
    %2682 = vmatpush.bf16.msra.mxu0 %v683
    %2683 = vmatpush.bf16.msra.mxu0 %v675
    %2684 = vmatpush.bf16.msra.mxu0 %v667
    %2685 = vmatpush.bf16.msra.mxu0 %v659
    %2686 = vmatpush.bf16.msra.mxu0 %v651
    %2687 = vmatpush.bf16.msra.mxu0 %v643
    %2688 = vmatpush.bf16.msra.mxu0 %v635
    %2689 = vmatmul.bf16.gmra.mxu0 %v2627
    %v2690 = vpop.f32.mrf.mxu0
    %v2691 = vadd.f32 0.0, %v2690
    %v2692 = vpop.f32.mrf.mxu0
    %2693 = vdwg.mxu0
    %2694 = vmatpush.bf16.msra.mxu0 %v755
    %2695 = vmatpush.bf16.msra.mxu0 %v747
    %2696 = vmatpush.bf16.msra.mxu0 %v739
    %2697 = vmatpush.bf16.msra.mxu0 %v731
    %2698 = vmatpush.bf16.msra.mxu0 %v723
    %2699 = vmatpush.bf16.msra.mxu0 %v715
    %2700 = vmatpush.bf16.msra.mxu0 %v707
    %2701 = vmatpush.bf16.msra.mxu0 %v699
    %2702 = vmatmul.bf16.gmra.mxu0 %v2628
    %v2703 = vpop.f32.mrf.mxu0
    %v2704 = vadd.f32 %v2691, %v2703
    %v2705 = vpop.f32.mrf.mxu0
    %2706 = vdwg.mxu0
    %2707 = vmatpush.bf16.msra.mxu0 %v692
    %2708 = vmatpush.bf16.msra.mxu0 %v684
    %2709 = vmatpush.bf16.msra.mxu0 %v676
    %2710 = vmatpush.bf16.msra.mxu0 %v668
    %2711 = vmatpush.bf16.msra.mxu0 %v660
    %2712 = vmatpush.bf16.msra.mxu0 %v652
    %2713 = vmatpush.bf16.msra.mxu0 %v644
    %2714 = vmatpush.bf16.msra.mxu0 %v636
    %2715 = vmatmul.bf16.gmra.mxu0 %v2627
    %v2716 = vpop.f32.mrf.mxu0
    %v2717 = vadd.f32 0.0, %v2716
    %v2718 = vpop.f32.mrf.mxu0
    %2719 = vdwg.mxu0
    %2720 = vmatpush.bf16.msra.mxu0 %v756
    %2721 = vmatpush.bf16.msra.mxu0 %v748
    %2722 = vmatpush.bf16.msra.mxu0 %v740
    %2723 = vmatpush.bf16.msra.mxu0 %v732
    %2724 = vmatpush.bf16.msra.mxu0 %v724
    %2725 = vmatpush.bf16.msra.mxu0 %v716
    %2726 = vmatpush.bf16.msra.mxu0 %v708
    %2727 = vmatpush.bf16.msra.mxu0 %v700
    %2728 = vmatmul.bf16.gmra.mxu0 %v2628
    %v2729 = vpop.f32.mrf.mxu0
    %v2730 = vadd.f32 %v2717, %v2729
    %v2731 = vpop.f32.mrf.mxu0
    %2732 = vdwg.mxu0
    %2733 = vmatpush.bf16.msra.mxu0 %v693
    %2734 = vmatpush.bf16.msra.mxu0 %v685
    %2735 = vmatpush.bf16.msra.mxu0 %v677
    %2736 = vmatpush.bf16.msra.mxu0 %v669
    %2737 = vmatpush.bf16.msra.mxu0 %v661
    %2738 = vmatpush.bf16.msra.mxu0 %v653
    %2739 = vmatpush.bf16.msra.mxu0 %v645
    %2740 = vmatpush.bf16.msra.mxu0 %v637
    %2741 = vmatmul.bf16.gmra.mxu0 %v2627
    %v2742 = vpop.f32.mrf.mxu0
    %v2743 = vadd.f32 0.0, %v2742
    %v2744 = vpop.f32.mrf.mxu0
    %2745 = vdwg.mxu0
    %2746 = vmatpush.bf16.msra.mxu0 %v757
    %2747 = vmatpush.bf16.msra.mxu0 %v749
    %2748 = vmatpush.bf16.msra.mxu0 %v741
    %2749 = vmatpush.bf16.msra.mxu0 %v733
    %2750 = vmatpush.bf16.msra.mxu0 %v725
    %2751 = vmatpush.bf16.msra.mxu0 %v717
    %2752 = vmatpush.bf16.msra.mxu0 %v709
    %2753 = vmatpush.bf16.msra.mxu0 %v701
    %2754 = vmatmul.bf16.gmra.mxu0 %v2628
    %v2755 = vpop.f32.mrf.mxu0
    %v2756 = vadd.f32 %v2743, %v2755
    %v2757 = vpop.f32.mrf.mxu0
    %2758 = vdwg.mxu0
    %2759 = vmatpush.bf16.msra.mxu0 %v694
    %2760 = vmatpush.bf16.msra.mxu0 %v686
    %2761 = vmatpush.bf16.msra.mxu0 %v678
    %2762 = vmatpush.bf16.msra.mxu0 %v670
    %2763 = vmatpush.bf16.msra.mxu0 %v662
    %2764 = vmatpush.bf16.msra.mxu0 %v654
    %2765 = vmatpush.bf16.msra.mxu0 %v646
    %2766 = vmatpush.bf16.msra.mxu0 %v638
    %2767 = vmatmul.bf16.gmra.mxu0 %v2627
    %v2768 = vpop.f32.mrf.mxu0
    %v2769 = vadd.f32 0.0, %v2768
    %v2770 = vpop.f32.mrf.mxu0
    %2771 = vdwg.mxu0
    %2772 = vmatpush.bf16.msra.mxu0 %v758
    %2773 = vmatpush.bf16.msra.mxu0 %v750
    %2774 = vmatpush.bf16.msra.mxu0 %v742
    %2775 = vmatpush.bf16.msra.mxu0 %v734
    %2776 = vmatpush.bf16.msra.mxu0 %v726
    %2777 = vmatpush.bf16.msra.mxu0 %v718
    %2778 = vmatpush.bf16.msra.mxu0 %v710
    %2779 = vmatpush.bf16.msra.mxu0 %v702
    %2780 = vmatmul.bf16.gmra.mxu0 %v2628
    %v2781 = vpop.f32.mrf.mxu0
    %v2782 = vadd.f32 %v2769, %v2781
    %v2783 = vpop.f32.mrf.mxu0
    %2784 = vdwg.mxu0
    %2785 = vmatpush.bf16.msra.mxu0 %v695
    %2786 = vmatpush.bf16.msra.mxu0 %v687
    %2787 = vmatpush.bf16.msra.mxu0 %v679
    %2788 = vmatpush.bf16.msra.mxu0 %v671
    %2789 = vmatpush.bf16.msra.mxu0 %v663
    %2790 = vmatpush.bf16.msra.mxu0 %v655
    %2791 = vmatpush.bf16.msra.mxu0 %v647
    %2792 = vmatpush.bf16.msra.mxu0 %v639
    %2793 = vmatmul.bf16.gmra.mxu0 %v2627
    %v2794 = vpop.f32.mrf.mxu0
    %v2795 = vadd.f32 0.0, %v2794
    %v2796 = vpop.f32.mrf.mxu0
    %2797 = vdwg.mxu0
    %2798 = vmatpush.bf16.msra.mxu0 %v759
    %2799 = vmatpush.bf16.msra.mxu0 %v751
    %2800 = vmatpush.bf16.msra.mxu0 %v743
    %2801 = vmatpush.bf16.msra.mxu0 %v735
    %2802 = vmatpush.bf16.msra.mxu0 %v727
    %2803 = vmatpush.bf16.msra.mxu0 %v719
    %2804 = vmatpush.bf16.msra.mxu0 %v711
    %2805 = vmatpush.bf16.msra.mxu0 %v703
    %2806 = vmatmul.bf16.gmra.mxu0 %v2628
    %v2807 = vpop.f32.mrf.mxu0
    %v2808 = vadd.f32 %v2795, %v2807
    %v2809 = vpop.f32.mrf.mxu0
    %2810 = vdwg.mxu0
    %2811 = vmatpush.bf16.msra.mxu0 %v696
    %2812 = vmatpush.bf16.msra.mxu0 %v688
    %2813 = vmatpush.bf16.msra.mxu0 %v680
    %2814 = vmatpush.bf16.msra.mxu0 %v672
    %2815 = vmatpush.bf16.msra.mxu0 %v664
    %2816 = vmatpush.bf16.msra.mxu0 %v656
    %2817 = vmatpush.bf16.msra.mxu0 %v648
    %2818 = vmatpush.bf16.msra.mxu0 %v640
    %2819 = vmatmul.bf16.gmra.mxu0 %v2627
    %v2820 = vpop.f32.mrf.mxu0
    %v2821 = vadd.f32 0.0, %v2820
    %v2822 = vpop.f32.mrf.mxu0
    %2823 = vdwg.mxu0
    %2824 = vmatpush.bf16.msra.mxu0 %v760
    %2825 = vmatpush.bf16.msra.mxu0 %v752
    %2826 = vmatpush.bf16.msra.mxu0 %v744
    %2827 = vmatpush.bf16.msra.mxu0 %v736
    %2828 = vmatpush.bf16.msra.mxu0 %v728
    %2829 = vmatpush.bf16.msra.mxu0 %v720
    %2830 = vmatpush.bf16.msra.mxu0 %v712
    %2831 = vmatpush.bf16.msra.mxu0 %v704
    %2832 = vmatmul.bf16.gmra.mxu0 %v2628
    %v2833 = vpop.f32.mrf.mxu0
    %v2834 = vadd.f32 %v2821, %v2833
    %v2835 = vpop.f32.mrf.mxu0
    %2836 = vdwg.mxu0
    %v2845 = vrot.slane %v2678, 6
    %v2846 = vrot.slane %v2704, 4
    %v2847 = vrot.slane %v2730, 2
    %v2848 = vrot.slane %v2782, 6
    %v2849 = vrot.slane %v2808, 4
    %v2850 = vrot.slane %v2834, 2
    %v2851 = vsel %vm1111, %v2652, %v2845
    %v2852 = vsel %vm1113, %v2846, %v2847
    %v2853 = vsel %vm1115, %v2851, %v2852
    %v2854 = vsel %vm1111, %v2756, %v2848
    %v2855 = vsel %vm1113, %v2849, %v2850
    %v2856 = vsel %vm1115, %v2854, %v2855
    %v2859 = vadd.f32 %v2625, %v2853
    %v2860 = vadd.f32 %v2626, %v2856
    %v2861 = vmul.f32 %v2859, %v1140
    %v2862 = vmul.f32 %v2860, %v1143
    %v2863 = vtanh.pop %v2861
    %v2864 = vtanh.pop %v2862
    %v2865 = vmul.f32 %v2863, %v1140
    %v2866 = vmul.f32 %v2864, %v1143
    %v2867 = vadd.f32 %v2865, %v1168
    %v2868 = vadd.f32 %v2866, %v1171
    %v2870 = vrot.slane %v2867, 4
    %v2874 = vrot.slane %v2623, 6
    %v2875 = vsel %vm1111, %v2622, %v2874
    %v2877 = vmul.f32 %v2870, %v2875
    %v2878 = vmul.f32 %v2867, %v2868
    %v2879 = vadd.f32 %v2877, %v2878
    %v2880 = vtanh.pop %v2879
    %v2882 = vrot.slane %v2868, 4
    %v2884 = vmul.f32 %v2882, %v2880
    %vm2885 = vcmp.gt.s32.totalorder %v69, 6
    %v2886 = vsel %vm2885, 1, 0
    %2887 = vset.pattern.permute.xlu0 0
    %2888 = vperm.xlu0 %2887, %v2886
    %v2889 = vpop.permute.xlu0 %2888
    %vm2890 = vcmp.eq.s32.totalorder %v2889, 1
    %2892 = vst [vmem:[#allocation1] ss:$4 sm:$0xff] %v2884
    %v2893 = vld.sshfl [vmem:[#allocation1] sm:$0xff pattern:$0x73625140]
    %v2894 = vld.sshfl [vmem:[#allocation1 + $0x8] sm:$0xff pattern:$0x73625140]
    %v2897 = vsel %vm2890, %v2893, %v2614
    %v2898 = vsel %vm2890, %v2894, %v2615
    %2900 = vst [vmem:[#allocation1] ss:$4 sm:$0xff] %v2879
    %v2901 = vld.sshfl [vmem:[#allocation1] sm:$0xff pattern:$0x73625140]
    %v2902 = vld.sshfl [vmem:[#allocation1 + $0x8] sm:$0xff pattern:$0x73625140]
    %v2905 = vsel %vm2890, %v2901, %v2622
    %v2906 = vsel %vm2890, %v2902, %v2623
    %s2907 = scalar_lea.vmem [#allocation2], 112
    %v2908 = vld [vmem:[%s2907] sm:$0xff]
    %v2909 = vld [vmem:[%s2907 + $0x8] sm:$0xff]
    %v2910 = vpack.c.bf16 %v2897, %v2897
    %v2911 = vpack.c.bf16 %v2898, %v2898
    %2912 = vmatpush.bf16.msra.mxu0 %v689
    %2913 = vmatpush.bf16.msra.mxu0 %v681
    %2914 = vmatpush.bf16.msra.mxu0 %v673
    %2915 = vmatpush.bf16.msra.mxu0 %v665
    %2916 = vmatpush.bf16.msra.mxu0 %v657
    %2917 = vmatpush.bf16.msra.mxu0 %v649
    %2918 = vmatpush.bf16.msra.mxu0 %v641
    %2919 = vmatpush.bf16.msra.mxu0 %v633
    %2920 = vmatmul.bf16.gmra.mxu0 %v2910
    %v2921 = vpop.f32.mrf.mxu0
    %v2922 = vadd.f32 0.0, %v2921
    %v2923 = vpop.f32.mrf.mxu0
    %2924 = vdwg.mxu0
    %2925 = vmatpush.bf16.msra.mxu0 %v753
    %2926 = vmatpush.bf16.msra.mxu0 %v745
    %2927 = vmatpush.bf16.msra.mxu0 %v737
    %2928 = vmatpush.bf16.msra.mxu0 %v729
    %2929 = vmatpush.bf16.msra.mxu0 %v721
    %2930 = vmatpush.bf16.msra.mxu0 %v713
    %2931 = vmatpush.bf16.msra.mxu0 %v705
    %2932 = vmatpush.bf16.msra.mxu0 %v697
    %2933 = vmatmul.bf16.gmra.mxu0 %v2911
    %v2934 = vpop.f32.mrf.mxu0
    %v2935 = vadd.f32 %v2922, %v2934
    %v2936 = vpop.f32.mrf.mxu0
    %2937 = vdwg.mxu0
    %2938 = vmatpush.bf16.msra.mxu0 %v690
    %2939 = vmatpush.bf16.msra.mxu0 %v682
    %2940 = vmatpush.bf16.msra.mxu0 %v674
    %2941 = vmatpush.bf16.msra.mxu0 %v666
    %2942 = vmatpush.bf16.msra.mxu0 %v658
    %2943 = vmatpush.bf16.msra.mxu0 %v650
    %2944 = vmatpush.bf16.msra.mxu0 %v642
    %2945 = vmatpush.bf16.msra.mxu0 %v634
    %2946 = vmatmul.bf16.gmra.mxu0 %v2910
    %v2947 = vpop.f32.mrf.mxu0
    %v2948 = vadd.f32 0.0, %v2947
    %v2949 = vpop.f32.mrf.mxu0
    %2950 = vdwg.mxu0
    %2951 = vmatpush.bf16.msra.mxu0 %v754
    %2952 = vmatpush.bf16.msra.mxu0 %v746
    %2953 = vmatpush.bf16.msra.mxu0 %v738
    %2954 = vmatpush.bf16.msra.mxu0 %v730
    %2955 = vmatpush.bf16.msra.mxu0 %v722
    %2956 = vmatpush.bf16.msra.mxu0 %v714
    %2957 = vmatpush.bf16.msra.mxu0 %v706
    %2958 = vmatpush.bf16.msra.mxu0 %v698
    %2959 = vmatmul.bf16.gmra.mxu0 %v2911
    %v2960 = vpop.f32.mrf.mxu0
    %v2961 = vadd.f32 %v2948, %v2960
    %v2962 = vpop.f32.mrf.mxu0
    %2963 = vdwg.mxu0
    %2964 = vmatpush.bf16.msra.mxu0 %v691
    %2965 = vmatpush.bf16.msra.mxu0 %v683
    %2966 = vmatpush.bf16.msra.mxu0 %v675
    %2967 = vmatpush.bf16.msra.mxu0 %v667
    %2968 = vmatpush.bf16.msra.mxu0 %v659
    %2969 = vmatpush.bf16.msra.mxu0 %v651
    %2970 = vmatpush.bf16.msra.mxu0 %v643
    %2971 = vmatpush.bf16.msra.mxu0 %v635
    %2972 = vmatmul.bf16.gmra.mxu0 %v2910
    %v2973 = vpop.f32.mrf.mxu0
    %v2974 = vadd.f32 0.0, %v2973
    %v2975 = vpop.f32.mrf.mxu0
    %2976 = vdwg.mxu0
    %2977 = vmatpush.bf16.msra.mxu0 %v755
    %2978 = vmatpush.bf16.msra.mxu0 %v747
    %2979 = vmatpush.bf16.msra.mxu0 %v739
    %2980 = vmatpush.bf16.msra.mxu0 %v731
    %2981 = vmatpush.bf16.msra.mxu0 %v723
    %2982 = vmatpush.bf16.msra.mxu0 %v715
    %2983 = vmatpush.bf16.msra.mxu0 %v707
    %2984 = vmatpush.bf16.msra.mxu0 %v699
    %2985 = vmatmul.bf16.gmra.mxu0 %v2911
    %v2986 = vpop.f32.mrf.mxu0
    %v2987 = vadd.f32 %v2974, %v2986
    %v2988 = vpop.f32.mrf.mxu0
    %2989 = vdwg.mxu0
    %2990 = vmatpush.bf16.msra.mxu0 %v692
    %2991 = vmatpush.bf16.msra.mxu0 %v684
    %2992 = vmatpush.bf16.msra.mxu0 %v676
    %2993 = vmatpush.bf16.msra.mxu0 %v668
    %2994 = vmatpush.bf16.msra.mxu0 %v660
    %2995 = vmatpush.bf16.msra.mxu0 %v652
    %2996 = vmatpush.bf16.msra.mxu0 %v644
    %2997 = vmatpush.bf16.msra.mxu0 %v636
    %2998 = vmatmul.bf16.gmra.mxu0 %v2910
    %v2999 = vpop.f32.mrf.mxu0
    %v3000 = vadd.f32 0.0, %v2999
    %v3001 = vpop.f32.mrf.mxu0
    %3002 = vdwg.mxu0
    %3003 = vmatpush.bf16.msra.mxu0 %v756
    %3004 = vmatpush.bf16.msra.mxu0 %v748
    %3005 = vmatpush.bf16.msra.mxu0 %v740
    %3006 = vmatpush.bf16.msra.mxu0 %v732
    %3007 = vmatpush.bf16.msra.mxu0 %v724
    %3008 = vmatpush.bf16.msra.mxu0 %v716
    %3009 = vmatpush.bf16.msra.mxu0 %v708
    %3010 = vmatpush.bf16.msra.mxu0 %v700
    %3011 = vmatmul.bf16.gmra.mxu0 %v2911
    %v3012 = vpop.f32.mrf.mxu0
    %v3013 = vadd.f32 %v3000, %v3012
    %v3014 = vpop.f32.mrf.mxu0
    %3015 = vdwg.mxu0
    %3016 = vmatpush.bf16.msra.mxu0 %v693
    %3017 = vmatpush.bf16.msra.mxu0 %v685
    %3018 = vmatpush.bf16.msra.mxu0 %v677
    %3019 = vmatpush.bf16.msra.mxu0 %v669
    %3020 = vmatpush.bf16.msra.mxu0 %v661
    %3021 = vmatpush.bf16.msra.mxu0 %v653
    %3022 = vmatpush.bf16.msra.mxu0 %v645
    %3023 = vmatpush.bf16.msra.mxu0 %v637
    %3024 = vmatmul.bf16.gmra.mxu0 %v2910
    %v3025 = vpop.f32.mrf.mxu0
    %v3026 = vadd.f32 0.0, %v3025
    %v3027 = vpop.f32.mrf.mxu0
    %3028 = vdwg.mxu0
    %3029 = vmatpush.bf16.msra.mxu0 %v757
    %3030 = vmatpush.bf16.msra.mxu0 %v749
    %3031 = vmatpush.bf16.msra.mxu0 %v741
    %3032 = vmatpush.bf16.msra.mxu0 %v733
    %3033 = vmatpush.bf16.msra.mxu0 %v725
    %3034 = vmatpush.bf16.msra.mxu0 %v717
    %3035 = vmatpush.bf16.msra.mxu0 %v709
    %3036 = vmatpush.bf16.msra.mxu0 %v701
    %3037 = vmatmul.bf16.gmra.mxu0 %v2911
    %v3038 = vpop.f32.mrf.mxu0
    %v3039 = vadd.f32 %v3026, %v3038
    %v3040 = vpop.f32.mrf.mxu0
    %3041 = vdwg.mxu0
    %3042 = vmatpush.bf16.msra.mxu0 %v694
    %3043 = vmatpush.bf16.msra.mxu0 %v686
    %3044 = vmatpush.bf16.msra.mxu0 %v678
    %3045 = vmatpush.bf16.msra.mxu0 %v670
    %3046 = vmatpush.bf16.msra.mxu0 %v662
    %3047 = vmatpush.bf16.msra.mxu0 %v654
    %3048 = vmatpush.bf16.msra.mxu0 %v646
    %3049 = vmatpush.bf16.msra.mxu0 %v638
    %3050 = vmatmul.bf16.gmra.mxu0 %v2910
    %v3051 = vpop.f32.mrf.mxu0
    %v3052 = vadd.f32 0.0, %v3051
    %v3053 = vpop.f32.mrf.mxu0
    %3054 = vdwg.mxu0
    %3055 = vmatpush.bf16.msra.mxu0 %v758
    %3056 = vmatpush.bf16.msra.mxu0 %v750
    %3057 = vmatpush.bf16.msra.mxu0 %v742
    %3058 = vmatpush.bf16.msra.mxu0 %v734
    %3059 = vmatpush.bf16.msra.mxu0 %v726
    %3060 = vmatpush.bf16.msra.mxu0 %v718
    %3061 = vmatpush.bf16.msra.mxu0 %v710
    %3062 = vmatpush.bf16.msra.mxu0 %v702
    %3063 = vmatmul.bf16.gmra.mxu0 %v2911
    %v3064 = vpop.f32.mrf.mxu0
    %v3065 = vadd.f32 %v3052, %v3064
    %v3066 = vpop.f32.mrf.mxu0
    %3067 = vdwg.mxu0
    %3068 = vmatpush.bf16.msra.mxu0 %v695
    %3069 = vmatpush.bf16.msra.mxu0 %v687
    %3070 = vmatpush.bf16.msra.mxu0 %v679
    %3071 = vmatpush.bf16.msra.mxu0 %v671
    %3072 = vmatpush.bf16.msra.mxu0 %v663
    %3073 = vmatpush.bf16.msra.mxu0 %v655
    %3074 = vmatpush.bf16.msra.mxu0 %v647
    %3075 = vmatpush.bf16.msra.mxu0 %v639
    %3076 = vmatmul.bf16.gmra.mxu0 %v2910
    %v3077 = vpop.f32.mrf.mxu0
    %v3078 = vadd.f32 0.0, %v3077
    %v3079 = vpop.f32.mrf.mxu0
    %3080 = vdwg.mxu0
    %3081 = vmatpush.bf16.msra.mxu0 %v759
    %3082 = vmatpush.bf16.msra.mxu0 %v751
    %3083 = vmatpush.bf16.msra.mxu0 %v743
    %3084 = vmatpush.bf16.msra.mxu0 %v735
    %3085 = vmatpush.bf16.msra.mxu0 %v727
    %3086 = vmatpush.bf16.msra.mxu0 %v719
    %3087 = vmatpush.bf16.msra.mxu0 %v711
    %3088 = vmatpush.bf16.msra.mxu0 %v703
    %3089 = vmatmul.bf16.gmra.mxu0 %v2911
    %v3090 = vpop.f32.mrf.mxu0
    %v3091 = vadd.f32 %v3078, %v3090
    %v3092 = vpop.f32.mrf.mxu0
    %3093 = vdwg.mxu0
    %3094 = vmatpush.bf16.msra.mxu0 %v696
    %3095 = vmatpush.bf16.msra.mxu0 %v688
    %3096 = vmatpush.bf16.msra.mxu0 %v680
    %3097 = vmatpush.bf16.msra.mxu0 %v672
    %3098 = vmatpush.bf16.msra.mxu0 %v664
    %3099 = vmatpush.bf16.msra.mxu0 %v656
    %3100 = vmatpush.bf16.msra.mxu0 %v648
    %3101 = vmatpush.bf16.msra.mxu0 %v640
    %3102 = vmatmul.bf16.gmra.mxu0 %v2910
    %v3103 = vpop.f32.mrf.mxu0
    %v3104 = vadd.f32 0.0, %v3103
    %v3105 = vpop.f32.mrf.mxu0
    %3106 = vdwg.mxu0
    %3107 = vmatpush.bf16.msra.mxu0 %v760
    %3108 = vmatpush.bf16.msra.mxu0 %v752
    %3109 = vmatpush.bf16.msra.mxu0 %v744
    %3110 = vmatpush.bf16.msra.mxu0 %v736
    %3111 = vmatpush.bf16.msra.mxu0 %v728
    %3112 = vmatpush.bf16.msra.mxu0 %v720
    %3113 = vmatpush.bf16.msra.mxu0 %v712
    %3114 = vmatpush.bf16.msra.mxu0 %v704
    %3115 = vmatmul.bf16.gmra.mxu0 %v2911
    %v3116 = vpop.f32.mrf.mxu0
    %v3117 = vadd.f32 %v3104, %v3116
    %v3118 = vpop.f32.mrf.mxu0
    %3119 = vdwg.mxu0
    %v3128 = vrot.slane %v2961, 6
    %v3129 = vrot.slane %v2987, 4
    %v3130 = vrot.slane %v3013, 2
    %v3131 = vrot.slane %v3065, 6
    %v3132 = vrot.slane %v3091, 4
    %v3133 = vrot.slane %v3117, 2
    %v3134 = vsel %vm1111, %v2935, %v3128
    %v3135 = vsel %vm1113, %v3129, %v3130
    %v3136 = vsel %vm1115, %v3134, %v3135
    %v3137 = vsel %vm1111, %v3039, %v3131
    %v3138 = vsel %vm1113, %v3132, %v3133
    %v3139 = vsel %vm1115, %v3137, %v3138
    %v3142 = vadd.f32 %v2908, %v3136
    %v3143 = vadd.f32 %v2909, %v3139
    %v3144 = vmul.f32 %v3142, %v1140
    %v3145 = vmul.f32 %v3143, %v1143
    %v3146 = vtanh.pop %v3144
    %v3147 = vtanh.pop %v3145
    %v3148 = vmul.f32 %v3146, %v1140
    %v3149 = vmul.f32 %v3147, %v1143
    %v3150 = vadd.f32 %v3148, %v1168
    %v3151 = vadd.f32 %v3149, %v1171
    %v3153 = vrot.slane %v3150, 4
    %v3157 = vrot.slane %v2906, 6
    %v3158 = vsel %vm1111, %v2905, %v3157
    %v3160 = vmul.f32 %v3153, %v3158
    %v3161 = vmul.f32 %v3150, %v3151
    %v3162 = vadd.f32 %v3160, %v3161
    %v3163 = vtanh.pop %v3162
    %v3165 = vrot.slane %v3151, 4
    %v3167 = vmul.f32 %v3165, %v3163
    %vm3168 = vcmp.gt.s32.totalorder %v69, 7
    %v3169 = vsel %vm3168, 1, 0
    %3170 = vset.pattern.permute.xlu0 0
    %3171 = vperm.xlu0 %3170, %v3169
    %v3172 = vpop.permute.xlu0 %3171
    %vm3173 = vcmp.eq.s32.totalorder %v3172, 1
    %3175 = vst [vmem:[#allocation1] ss:$4 sm:$0xff] %v3167
    %v3176 = vld.sshfl [vmem:[#allocation1] sm:$0xff pattern:$0x73625140]
    %v3177 = vld.sshfl [vmem:[#allocation1 + $0x8] sm:$0xff pattern:$0x73625140]
    %v3180 = vsel %vm3173, %v3176, %v2897
    %v3181 = vsel %vm3173, %v3177, %v2898
    %v3182 = vld [vmem:[#allocation7] sm:$0xff]
    %v3183 = vld [vmem:[#allocation7 + $0x8] sm:$0xff]
    %v3184 = vld [vmem:[#allocation7 + $0x10] sm:$0xff]
    %v3185 = vld [vmem:[#allocation7 + $0x18] sm:$0xff]
    %v3186 = vld [vmem:[#allocation7 + $0x20] sm:$0xff]
    %v3187 = vld [vmem:[#allocation7 + $0x28] sm:$0xff]
    %v3188 = vld [vmem:[#allocation7 + $0x30] sm:$0xff]
    %v3189 = vld [vmem:[#allocation7 + $0x38] sm:$0xff]
    %v3190 = vld [vmem:[#allocation7 + $0x40] sm:$0xff]
    %v3191 = vld [vmem:[#allocation7 + $0x48] sm:$0xff]
    %v3192 = vld [vmem:[#allocation7 + $0x50] sm:$0xff]
    %v3193 = vld [vmem:[#allocation7 + $0x58] sm:$0xff]
    %v3194 = vld [vmem:[#allocation7 + $0x60] sm:$0xff]
    %v3195 = vld [vmem:[#allocation7 + $0x68] sm:$0xff]
    %v3196 = vld [vmem:[#allocation7 + $0x70] sm:$0xff]
    %v3197 = vld [vmem:[#allocation7 + $0x78] sm:$0xff]
    %v3198 = vld [vmem:[#allocation7 + $0x80] sm:$0xff]
    %v3199 = vld [vmem:[#allocation7 + $0x88] sm:$0xff]
    %v3200 = vld [vmem:[#allocation7 + $0x90] sm:$0xff]
    %v3201 = vld [vmem:[#allocation7 + $0x98] sm:$0xff]
    %v3202 = vld [vmem:[#allocation7 + $0xa0] sm:$0xff]
    %v3203 = vld [vmem:[#allocation7 + $0xa8] sm:$0xff]
    %v3204 = vld [vmem:[#allocation7 + $0xb0] sm:$0xff]
    %v3205 = vld [vmem:[#allocation7 + $0xb8] sm:$0xff]
    %v3206 = vld [vmem:[#allocation7 + $0xc0] sm:$0xff]
    %v3207 = vld [vmem:[#allocation7 + $0xc8] sm:$0xff]
    %v3208 = vld [vmem:[#allocation7 + $0xd0] sm:$0xff]
    %v3209 = vld [vmem:[#allocation7 + $0xd8] sm:$0xff]
    %v3210 = vld [vmem:[#allocation7 + $0xe0] sm:$0xff]
    %v3211 = vld [vmem:[#allocation7 + $0xe8] sm:$0xff]
    %v3212 = vld [vmem:[#allocation7 + $0xf0] sm:$0xff]
    %v3213 = vld [vmem:[#allocation7 + $0xf8] sm:$0xff]
    %v3214 = vld [vmem:[%s4] sm:$0x1]
    %v3216 = vperm.slane %v3214, 0
    %3218 = vmatpush.msra.mxu0 %v3197
    %3219 = vmatpush.msra.mxu0 %v3196
    %3220 = vmatpush.msra.mxu0 %v3195
    %3221 = vmatpush.msra.mxu0 %v3194
    %3222 = vmatpush.msra.mxu0 %v3193
    %3223 = vmatpush.msra.mxu0 %v3192
    %3224 = vmatpush.msra.mxu0 %v3191
    %3225 = vmatpush.msra.mxu0 %v3190
    %3226 = vmatpush.msra.mxu0 %v3189
    %3227 = vmatpush.msra.mxu0 %v3188
    %3228 = vmatpush.msra.mxu0 %v3187
    %3229 = vmatpush.msra.mxu0 %v3186
    %3230 = vmatpush.msra.mxu0 %v3185
    %3231 = vmatpush.msra.mxu0 %v3184
    %3232 = vmatpush.msra.mxu0 %v3183
    %3233 = vmatpush.msra.mxu0 %v3182
    %3234 = vmatmul.f32.gmra.mxu0 %v3180
    %v3235 = vpop.f32.mrf.mxu0
    %v3236 = vadd.f32 %v3216, %v3235
    %3237 = vdwg.mxu0
    %3238 = vmatpush.msra.mxu0 %v3213
    %3239 = vmatpush.msra.mxu0 %v3212
    %3240 = vmatpush.msra.mxu0 %v3211
    %3241 = vmatpush.msra.mxu0 %v3210
    %3242 = vmatpush.msra.mxu0 %v3209
    %3243 = vmatpush.msra.mxu0 %v3208
    %3244 = vmatpush.msra.mxu0 %v3207
    %3245 = vmatpush.msra.mxu0 %v3206
    %3246 = vmatpush.msra.mxu0 %v3205
    %3247 = vmatpush.msra.mxu0 %v3204
    %3248 = vmatpush.msra.mxu0 %v3203
    %3249 = vmatpush.msra.mxu0 %v3202
    %3250 = vmatpush.msra.mxu0 %v3201
    %3251 = vmatpush.msra.mxu0 %v3200
    %3252 = vmatpush.msra.mxu0 %v3199
    %3253 = vmatpush.msra.mxu0 %v3198
    %3254 = vmatmul.f32.gmra.mxu0 %v3181
    %v3255 = vpop.f32.mrf.mxu0
    %v3256 = vadd.f32 %v3236, %v3255
    %3257 = vdwg.mxu0
    %v3258 = vmax.f32 %v3256, 0.0
    %vm3259 = vcmp.lt.s32.totalorder %v71, 7
    %v3260 = vsel %vm3259, %v3258, -1e+30
    %v3261 = vsel %vm1111, %v3260, -inf
    %3262 = vmax.xlane.f32.xlu0 %v3261
    %v3263 = vpop.xlane.xlu0 %3262
    %v3264 = vsub.f32 %v3260, %v3263
    %v3265 = vmul.f32 %v3264, 1.442695
    %v3266 = vpow.pop %v3265
    %v3267 = vsel %vm1111, %v3266, 0.0
    %3268 = vadd.xlane.f32.xlu0 %v3267
    %v3269 = vpop.xlane.xlu0 %3268
    %v3270 = vrcp.pop %v3269
    %v3271 = vmul.f32 %v3266, %v3270
    %3272 = vst [vmem:[#allocation8] sm:$0x3] %v3271
    // Predicated region
    $region34: #{tpu_custom_call.1} parent=1 // pred_check
      _
    $region35: #{tpu_custom_call.1} parent=1 // pred_check_branch
      %3274 = sbr.rel (0) target = $region37
    $region36: #{tpu_custom_call.1} parent=1 // pred_region
      %3276 = vsyncadd [#allocation4], 0
      %s3278 = sshll.u32 [#allocation8], 4
      %s3279 = int_to_ptr.vmem [resolvable:$true] %s3278
      %s3280 = sshll.u32 %s5, 4
      %s3281 = int_to_ptr.hbm [resolvable:$true] %s3280
      %3283 = dma.vmem_to_hbm [thread:$0]  %s3279, 32, %s3281, [#allocation4]
    $region37: #{tpu_custom_call.1} parent=1 // pred_fallthru
      _
    // Predicated region
    $region38: #{tpu_custom_call.1} parent=1 // pred_check
      _
    $region39: #{tpu_custom_call.1} parent=1 // pred_check_branch
      %3285 = sbr.rel (0) target = $region41
    $region40: #{tpu_custom_call.1} parent=1 // pred_region
      %3287 = dma.done [#allocation4], 32
    $region41: #{tpu_custom_call.1} parent=1 // pred_fallthru
      _
    %3288 = vsyncpa [#allocation3], 1
    %3289 = vsyncpa [#allocation6], 1
    %3290 = vsyncpa [#allocation4], 1

</llo_original>
